<compile_context>
chip_gen: v7x
topology: tpu7x:2x2x1
jax: 0.10.0
libtpu: 0.0.40
codegen_flags: <defaults>
</compile_context>

<pallas_src>
import functools

import jax
import jax.numpy as jnp
from jax import lax
from jax.experimental import pallas as pl
from jax.experimental.pallas import tpu as pltpu


def _round_up(x, m):
    return (x + m - 1) // m * m


def _cdiv(a, b):
    return -(-a // b)


def _vmem_capacity_bytes():
    cap = None
    try:
        info = pltpu.get_tpu_info()
        cap = getattr(info, "vmem_capacity_bytes", None)
    except Exception:
        cap = None
    return int(cap) if cap else (64 << 20)   # conservative (v7x-sized) fallback


def _train_transform_kernel(s_lo_ref, blen_ref, src_ref, x_ref, o_ref, sel_ref,
                            *, tnc, precision):
    """Band-limited one-hot-gather matmul.

    s_lo_ref : SMEM i32[n_o]     first source block needed by output tile o
    blen_ref : SMEM i32[n_o]     number of source blocks needed (0 => all zero fill)
    src_ref  : VMEM i32[1, TO]   flat source index per output pixel (-1 => zero fill)
    x_ref    : VMEM dt[TNC, TS]  row tile of the flattened (rows, HW_src) images
    o_ref    : VMEM dt[rows, TO] output panel; resident across (s, nc); doubles as
                                 the accumulator (bf16 accumulation is exact here)
    sel_ref  : VMEM dt[TS, TO]   scratch: one-hot slab in MXU weight orientation
    """
    o_i = pl.program_id(0)
    s_i = pl.program_id(1)
    nc_i = pl.program_id(2)
    ts, to = sel_ref.shape

    active = s_i < blen_ref[o_i]

    # Build the selection slab once per (o, s) band step; reuse it across nc.
    @pl.when((nc_i == 0) & active)
    def _():
        s_start = (s_lo_ref[o_i] + s_i) * ts
        s_idx = lax.broadcasted_iota(jnp.int32, (ts, to), 0) + s_start
        sel_ref[...] = (s_idx == src_ref[...]).astype(sel_ref.dtype)

    out_dtype = jnp.dtype(o_ref.dtype)
    if o_ref.shape[0] == tnc:                 # single row tile: static slice
        rows = slice(0, tnc)
    else:
        align = 16 if (out_dtype.itemsize < 4 and tnc % 16 == 0) else 8
        rows = pl.ds(pl.multiple_of(nc_i * tnc, align), tnc)

    def part():
        acc = lax.dot_general(
            x_ref[...], sel_ref[...],
            dimension_numbers=(((1,), (0,)), ((), ())),
            preferred_element_type=jnp.float32,
            precision=precision)
        return acc.astype(out_dtype)

    @pl.when(active & (s_i == 0))
    def _():
        o_ref[rows, :] = part()

    @pl.when(active & (s_i > 0))
    def _():
        o_ref[rows, :] = o_ref[rows, :] + part()

    @pl.when(jnp.logical_not(active) & (s_i == 0))
    def _():
        o_ref[rows, :] = jnp.zeros((tnc, to), out_dtype)


def _source_index_map(H, W, angle, flip_h, flip_v):
    """Per output pixel: flat source index in the ORIGINAL image, or -1 (zero fill).

    (maybe h-flip) -> (maybe v-flip) -> rotate(angle), nearest / zero fill /
    expand=False, implemented via the inverse affine map with flips folded in.
    """
    HW = H * W
    o = jnp.arange(HW, dtype=jnp.int32)
    oy = o // W
    ox = o % W
    dx = ox.astype(jnp.float32) + 0.5 - 0.5 * W
    dy = oy.astype(jnp.float32) + 0.5 - 0.5 * H
    cos_a = jnp.cos(angle)
    sin_a = jnp.sin(angle)
    sx = cos_a * dx - sin_a * dy + 0.5 * W - 0.5
    sy = sin_a * dx + cos_a * dy + 0.5 * H - 0.5
    ix = jnp.round(sx).astype(jnp.int32)
    iy = jnp.round(sy).astype(jnp.int32)
    inb = (ix >= 0) & (ix < W) & (iy >= 0) & (iy < H)
    ix = jnp.clip(ix, 0, W - 1)
    iy = jnp.clip(iy, 0, H - 1)
    ix = jnp.where(flip_h, (W - 1) - ix, ix)     # flipped[y, x] = img[y, W-1-x]
    iy = jnp.where(flip_v, (H - 1) - iy, iy)
    src = iy * W + ix
    return jnp.where(inb, src, -1)               # i32[HW]


def _pick_tiles(nc, hw, x_item, out_item, budget):
    """Pick (TNC, TS, TO, slab_rows) under a per-generation VMEM budget.

    TS/TO are multiples of 128.  TS shrinks before TO (TO is the MXU N dim and
    the output-store lane width); TO is kept >= 256 for large images; small
    images use round_up(HW, 128) directly instead of a power-of-two pad.
    """
    hw128 = _round_up(hw, 128)
    big_vmem = budget >= (40 << 20)          # v5e / v6e class budgets
    if hw128 <= 1024:
        ts = to = hw128
    else:
        to = 512
        ts = 1024 if big_vmem else 512

    row_align = 16 if min(x_item, out_item) < 4 else 8
    if nc <= 256:
        tnc = _round_up(nc, row_align)
    else:
        tnc = _round_up(_cdiv(nc, _cdiv(nc, 256)), row_align)

    def fixed_bytes(ts_, to_):
        return (2 * tnc * ts_ * x_item       # x tile, double buffered
                + ts_ * to_ * x_item         # sel scratch
                + 2 * 8 * to_ * 4)           # src row, double buffered (8-sublane pad)

    def max_panel_rows(ts_, to_):
        rem = max(budget - fixed_bytes(ts_, to_), 0)
        rows = rem // (2 * to_ * out_item)   # resident output panel, double buffered
        return (rows // tnc) * tnc

    min_to = min(hw128, 256)
    while max_panel_rows(ts, to) < tnc and ts > 256:
        ts = max(256, _round_up(ts // 2, 128))
    while max_panel_rows(ts, to) < tnc and to > min_to:
        to = max(min_to, _round_up(to // 2, 128))

    slab = min(_round_up(nc, tnc), max(tnc, max_panel_rows(ts, to)), 8192)
    slab = max(tnc, (slab // tnc) * tnc)
    return tnc, ts, to, slab


def _gather_pallas(x_slab, src_row, s_lo, blen, *, tnc, ts, to, n_s, n_o,
                   out_dtype, precision, vmem_limit):
    """One pallas_call over a padded row slab of the flattened images."""
    rows_pad, hw_src = x_slab.shape
    n_nc = rows_pad // tnc
    hw_out = n_o * to
    x_item = jnp.dtype(x_slab.dtype).itemsize
    out_item = jnp.dtype(out_dtype).itemsize

    def x_map(o, s, nc, s_lo_ref, blen_ref):
        b = blen_ref[o]
        srel = jnp.minimum(s, jnp.maximum(b - 1, 0))       # stay inside the band
        col = jnp.minimum(s_lo_ref[o] + srel, n_s - 1)
        row = jnp.where(s < b, nc, 0)                      # park when band exhausted
        return (row, col)

    kernel = functools.partial(_train_transform_kernel, tnc=tnc, precision=precision)
    flops = 2.0 * rows_pad * (n_s * ts) * hw_out           # dense upper bound (advisory)
    bytes_accessed = (n_o * rows_pad * n_s * ts * x_item
                      + rows_pad * hw_out * out_item
                      + hw_out * 4 + 2 * n_o * 4)

    return pl.pallas_call(
        kernel,
        out_shape=jax.ShapeDtypeStruct((rows_pad, hw_out), out_dtype),
        grid_spec=pltpu.PrefetchScalarGridSpec(
            num_scalar_prefetch=2,
            grid=(n_o, n_s, n_nc),                         # o outer, s band, nc inner
            in_specs=[
                pl.BlockSpec((1, to), lambda o, s, nc, s_lo_ref, blen_ref: (0, o)),
                pl.BlockSpec((tnc, ts), x_map),
            ],
            out_specs=pl.BlockSpec((rows_pad, to),
                                   lambda o, s, nc, s_lo_ref, blen_ref: (0, o)),
            scratch_shapes=[pltpu.VMEM((ts, to), x_slab.dtype)],   # cached sel slab
        ),
        compiler_params=pltpu.CompilerParams(
            # o-axis parallel (distinct output panels) -> megacore split on v7x.
            dimension_semantics=("parallel", "arbitrary", "arbitrary"),
            vmem_limit_bytes=int(vmem_limit)),
        cost_estimate=pl.CostEstimate(flops=int(flops), transcendentals=0,
                                      bytes_accessed=int(bytes_accessed)),
    )(s_lo, blen, src_row, x_slab)


def train_transform(img, key, *, compute_dtype=None, precision=None):
    """JAX/Pallas equivalent of Train_transform.forward(img).

    img: [N, C, H, W]; returns the same shape/dtype.
    precision: lax.Precision for the f32 path (default HIGHEST = exact gather;
      DEFAULT is ~3-6x faster on the MXU but truncates pixels to bf16).
    """
    N, C, H, W = img.shape
    NC, HW = N * C, H * W

    # Random draws (glue) in the wrapper.
    k1, k2, k3 = jax.random.split(key, 3)
    flip_h = jax.random.uniform(k1) < 0.5
    flip_v = jax.random.uniform(k2) < 0.5
    angle = jax.random.uniform(k3, minval=-60.0, maxval=60.0) * (jnp.pi / 180.0)

    # Data-independent gather map (O(HW), plain JAX, once per call).
    src = _source_index_map(H, W, angle, flip_h, flip_v)

    if compute_dtype is None:
        compute_dtype = jnp.bfloat16 if img.dtype == jnp.bfloat16 else jnp.float32
    compute_dtype = jnp.dtype(compute_dtype)
    out_dtype = compute_dtype          # bf16 accumulation is exact for a one-hot gather
    if precision is None and compute_dtype == jnp.float32:
        precision = lax.Precision.HIGHEST

    capacity = _vmem_capacity_bytes()
    budget = int(0.45 * capacity)      # ~28 MiB on v7x, ~57 MiB on v5e/v6e
    TNC, TS, TO, slab = _pick_tiles(NC, HW, compute_dtype.itemsize,
                                    out_dtype.itemsize, budget)
    HW_src, HW_out = _round_up(HW, TS), _round_up(HW, TO)
    n_s, n_o = HW_src // TS, HW_out // TO

    # Per-output-tile source band for the scalar-prefetched band limit.
    src_pad = jnp.pad(src, (0, HW_out - HW), constant_values=-1) if HW_out > HW else src
    src_tiles = src_pad.reshape(n_o, TO)
    valid = src_tiles >= 0
    lo = jnp.min(jnp.where(valid, src_tiles, HW), axis=1)
    hi = jnp.max(src_tiles, axis=1)
    s_lo = jnp.where(hi >= 0, lo // TS, 0).astype(jnp.int32)
    blen = jnp.where(hi >= 0, hi // TS - s_lo + 1, 0).astype(jnp.int32)
    src_row = src_pad.reshape(1, HW_out)

    x2d = img.reshape(NC, HW).astype(compute_dtype)

    rows_pad_max = _round_up(min(NC, slab), TNC)
    vmem_est = (2 * TNC * TS * compute_dtype.itemsize
                + TS * TO * compute_dtype.itemsize
                + 2 * 8 * TO * 4
                + 2 * rows_pad_max * TO * out_dtype.itemsize)
    vmem_cap = min(int(0.85 * capacity), 100 << 20)
    vmem_limit = min(vmem_cap, max(32 << 20, 2 * vmem_est, vmem_est + (4 << 20)))

    outs = []
    for r0 in range(0, NC, slab):
        r1 = min(NC, r0 + slab)
        rows = r1 - r0
        rows_pad = _round_up(rows, TNC)
        xs = x2d if rows == NC else x2d[r0:r1]
        if rows_pad > rows or HW_src > HW:
            xs = jnp.pad(xs, ((0, rows_pad - rows), (0, HW_src - HW)))
        o2d = _gather_pallas(xs, src_row, s_lo, blen, tnc=TNC, ts=TS, to=TO,
                             n_s=n_s, n_o=n_o, out_dtype=out_dtype,
                             precision=precision, vmem_limit=vmem_limit)
        if rows_pad > rows or HW_out > HW:
            o2d = o2d[:rows, :HW]
        outs.append(o2d)

    out2d = outs[0] if len(outs) == 1 else jnp.concatenate(outs, axis=0)
    return out2d.reshape(N, C, H, W).astype(img.dtype)


def _reference(img, key):
    """Pure-JAX reference of the same gather (same random draws)."""
    N, C, H, W = img.shape
    k1, k2, k3 = jax.random.split(key, 3)
    flip_h = jax.random.uniform(k1) < 0.5
    flip_v = jax.random.uniform(k2) < 0.5
    angle = jax.random.uniform(k3, minval=-60.0, maxval=60.0) * (jnp.pi / 180.0)
    src = _source_index_map(H, W, angle, flip_h, flip_v)
    flat = img.reshape(N * C, H * W).astype(jnp.float32)
    gathered = jnp.where(src[None, :] >= 0,
                         jnp.take(flat, jnp.maximum(src, 0), axis=1),
                         0.0)
    return gathered.reshape(N, C, H, W).astype(img.dtype)


if __name__ == "__main__":
    key = jax.random.PRNGKey(0)
    k_img, k_aug, k_img2, k_aug2, k_img3, k_aug3 = jax.random.split(key, 6)

    # Primary small test (NCHW: batch=2, channels=4, 16x16) -- single-tile grid, f32.
    x = jax.random.normal(k_img, (2, 4, 16, 16), dtype=jnp.float32)
    y = train_transform(x, k_aug)
    jax.block_until_ready(y)
    assert y.shape == x.shape and y.dtype == x.dtype
    y_ref = _reference(x, k_aug)
    assert jnp.allclose(y, y_ref, atol=1e-5, rtol=1e-5)

    # Multi-tile f32 test: nc > 1 row tiles, HW & NC padding, band-limited sweep.
    x2 = jax.random.normal(k_img2, (66, 4, 24, 24), dtype=jnp.float32)
    y2 = train_transform(x2, k_aug2)
    jax.block_until_ready(y2)
    y2_ref = _reference(x2, k_aug2)
    assert y2.shape == x2.shape and jnp.allclose(y2, y2_ref, atol=1e-5, rtol=1e-5)

    # bf16 path: native bf16 MXU + bf16 accumulation/output (exact one-hot gather).
    x3 = jax.random.normal(k_img3, (2, 4, 16, 16), dtype=jnp.float32).astype(jnp.bfloat16)
    y3 = train_transform(x3, k_aug3)
    jax.block_until_ready(y3)
    assert y3.shape == x3.shape and y3.dtype == jnp.bfloat16
    y3_ref = _reference(x3, k_aug3)
    assert jnp.allclose(y3.astype(jnp.float32), y3_ref.astype(jnp.float32), atol=1e-6)

    print("KERNEL_OK")
</pallas_src>

<mosaic_0001>
module attributes {stable_mosaic.version = 11 : i64} {
  func.func @_train_transform_kernel(%arg0: i32, %arg1: i32, %arg2: i32, %arg3: memref<1xi32, #tpu.memory_space<smem>>, %arg4: memref<1xi32, #tpu.memory_space<smem>>, %arg5: memref<1x256xi32, #tpu.memory_space<vmem>>, %arg6: memref<8x256xf32, #tpu.memory_space<vmem>>, %arg7: memref<8x256xf32, #tpu.memory_space<vmem>>, %arg8: memref<256x256xf32, #tpu.memory_space<vmem>>) attributes {dimension_semantics = [#tpu.dimension_semantics<parallel>, #tpu.dimension_semantics<arbitrary>, #tpu.dimension_semantics<arbitrary>], iteration_bounds = array<i64: 1, 1, 1>, scalar_prefetch = 2 : i64, scratch_operands = 1 : i64, tpu.core_type = #tpu.core_type<tc>, window_params = [{transform_indices = @transform_0, window_bounds = array<i64: 1, 256>}, {transform_indices = @transform_1, window_bounds = array<i64: 8, 256>}, {transform_indices = @transform_2, window_bounds = array<i64: 8, 256>}]} {
    %0 = arith.index_cast %arg0 : i32 to index
    %1 = memref.load %arg4[%0] : memref<1xi32, #tpu.memory_space<smem>>
    %2 = arith.cmpi slt, %arg1, %1 : i32
    %c0_i32 = arith.constant 0 : i32
    %3 = arith.cmpi eq, %arg2, %c0_i32 : i32
    %4 = arith.andi %3, %2 : i1
    %5 = arith.extui %4 : i1 to i32
    %c0_i32_0 = arith.constant 0 : i32
    %6 = arith.cmpi ne, %5, %c0_i32_0 : i32
    scf.if %6 {
      %20 = arith.index_cast %arg0 : i32 to index
      %21 = memref.load %arg3[%20] : memref<1xi32, #tpu.memory_space<smem>>
      %22 = arith.addi %21, %arg1 : i32
      %c256_i32 = arith.constant 256 : i32
      %23 = arith.muli %22, %c256_i32 : i32
      %24 = tpu.iota {dimensions = array<i32: 0>} : vector<256x256xi32>
      %25 = vector.broadcast %23 : i32 to vector<256x256xi32>
      %26 = arith.addi %24, %25 : vector<256x256xi32>
      %c0 = arith.constant 0 : index
      %c0_7 = arith.constant 0 : index
      %27 = vector.load %arg5[%c0, %c0_7] : memref<1x256xi32, #tpu.memory_space<vmem>>, vector<1x256xi32>
      %28 = vector.broadcast %27 : vector<1x256xi32> to vector<256x256xi32>
      %29 = arith.cmpi eq, %26, %28 : vector<256x256xi32>
      %30 = arith.extui %29 : vector<256x256xi1> to vector<256x256xi32>
      %31 = arith.sitofp %30 : vector<256x256xi32> to vector<256x256xf32>
      %c0_8 = arith.constant 0 : index
      %c0_9 = arith.constant 0 : index
      %32 = vector.load %arg8[%c0_8, %c0_9] : memref<256x256xf32, #tpu.memory_space<vmem>>, vector<256x256xf32>
      tpu.vector_store %arg8[%c0_8, %c0_9], %31 {strides = array<i32>} : memref<256x256xf32, #tpu.memory_space<vmem>>, vector<256x256xf32>,
    } else {
    }
    %c0_i32_1 = arith.constant 0 : i32
    %7 = arith.cmpi eq, %arg1, %c0_i32_1 : i32
    %8 = arith.andi %2, %7 : i1
    %9 = arith.extui %8 : i1 to i32
    %c0_i32_2 = arith.constant 0 : i32
    %10 = arith.cmpi ne, %9, %c0_i32_2 : i32
    scf.if %10 {
      %c0 = arith.constant 0 : index
      %c0_7 = arith.constant 0 : index
      %20 = vector.load %arg6[%c0, %c0_7] : memref<8x256xf32, #tpu.memory_space<vmem>>, vector<8x256xf32>
      %c0_8 = arith.constant 0 : index
      %c0_9 = arith.constant 0 : index
      %21 = vector.load %arg8[%c0_8, %c0_9] : memref<256x256xf32, #tpu.memory_space<vmem>>, vector<256x256xf32>
      %cst = arith.constant dense<0.000000e+00> : vector<8x256xf32>
      %22 = tpu.matmul %20, %21, %cst {dimension_numbers = #tpu.dot_dimension_numbers<[1], [0], [0], [1], [0, 0, 1, 1], [], []>, precision = #tpu.contract_precision<fp32>} : vector<8x256xf32>, vector<256x256xf32>, vector<8x256xf32> -> vector<8x256xf32>
      %c0_10 = arith.constant 0 : index
      %c0_11 = arith.constant 0 : index
      %23 = vector.load %arg7[%c0_10, %c0_11] : memref<8x256xf32, #tpu.memory_space<vmem>>, vector<8x256xf32>
      tpu.vector_store %arg7[%c0_10, %c0_11], %22 {strides = array<i32>} : memref<8x256xf32, #tpu.memory_space<vmem>>, vector<8x256xf32>,
    } else {
    }
    %c0_i32_3 = arith.constant 0 : i32
    %11 = arith.cmpi sgt, %arg1, %c0_i32_3 : i32
    %12 = arith.andi %2, %11 : i1
    %13 = arith.extui %12 : i1 to i32
    %c0_i32_4 = arith.constant 0 : i32
    %14 = arith.cmpi ne, %13, %c0_i32_4 : i32
    scf.if %14 {
      %c0 = arith.constant 0 : index
      %c0_7 = arith.constant 0 : index
      %20 = vector.load %arg7[%c0, %c0_7] : memref<8x256xf32, #tpu.memory_space<vmem>>, vector<8x256xf32>
      %c0_8 = arith.constant 0 : index
      %c0_9 = arith.constant 0 : index
      %21 = vector.load %arg6[%c0_8, %c0_9] : memref<8x256xf32, #tpu.memory_space<vmem>>, vector<8x256xf32>
      %c0_10 = arith.constant 0 : index
      %c0_11 = arith.constant 0 : index
      %22 = vector.load %arg8[%c0_10, %c0_11] : memref<256x256xf32, #tpu.memory_space<vmem>>, vector<256x256xf32>
      %cst = arith.constant dense<0.000000e+00> : vector<8x256xf32>
      %23 = tpu.matmul %21, %22, %cst {dimension_numbers = #tpu.dot_dimension_numbers<[1], [0], [0], [1], [0, 0, 1, 1], [], []>, precision = #tpu.contract_precision<fp32>} : vector<8x256xf32>, vector<256x256xf32>, vector<8x256xf32> -> vector<8x256xf32>
      %24 = arith.addf %20, %23 : vector<8x256xf32>
      %c0_12 = arith.constant 0 : index
      %c0_13 = arith.constant 0 : index
      %25 = vector.load %arg7[%c0_12, %c0_13] : memref<8x256xf32, #tpu.memory_space<vmem>>, vector<8x256xf32>
      tpu.vector_store %arg7[%c0_12, %c0_13], %24 {strides = array<i32>} : memref<8x256xf32, #tpu.memory_space<vmem>>, vector<8x256xf32>,
    } else {
    }
    %true = arith.constant true
    %15 = arith.xori %2, %true : i1
    %c0_i32_5 = arith.constant 0 : i32
    %16 = arith.cmpi eq, %arg1, %c0_i32_5 : i32
    %17 = arith.andi %15, %16 : i1
    %18 = arith.extui %17 : i1 to i32
    %c0_i32_6 = arith.constant 0 : i32
    %19 = arith.cmpi ne, %18, %c0_i32_6 : i32
    scf.if %19 {
      %cst = arith.constant 0.000000e+00 : f32
      %20 = vector.broadcast %cst : f32 to vector<8x256xf32>
      %c0 = arith.constant 0 : index
      %c0_7 = arith.constant 0 : index
      %21 = vector.load %arg7[%c0, %c0_7] : memref<8x256xf32, #tpu.memory_space<vmem>>, vector<8x256xf32>
      tpu.vector_store %arg7[%c0, %c0_7], %20 {strides = array<i32>} : memref<8x256xf32, #tpu.memory_space<vmem>>, vector<8x256xf32>,
    } else {
    }
    return
  }
  func.func @transform_0(%arg0: i32, %arg1: i32, %arg2: i32, %arg3: memref<1xi32, #tpu.memory_space<smem>>, %arg4: memref<1xi32, #tpu.memory_space<smem>>) -> (i32, i32) {
    %c0_i32 = arith.constant 0 : i32
    %c0_i32_0 = arith.constant 0 : i32
    return %c0_i32, %arg0 : i32, i32
  }
  func.func @transform_1(%arg0: i32, %arg1: i32, %arg2: i32, %arg3: memref<1xi32, #tpu.memory_space<smem>>, %arg4: memref<1xi32, #tpu.memory_space<smem>>) -> (i32, i32) {
    %0 = arith.index_cast %arg0 : i32 to index
    %1 = memref.load %arg4[%0] : memref<1xi32, #tpu.memory_space<smem>>
    %c1_i32 = arith.constant 1 : i32
    %2 = arith.subi %1, %c1_i32 : i32
    %c0_i32 = arith.constant 0 : i32
    %3 = arith.maxsi %2, %c0_i32 : i32
    %4 = arith.minsi %arg1, %3 : i32
    %5 = arith.index_cast %arg0 : i32 to index
    %6 = memref.load %arg3[%5] : memref<1xi32, #tpu.memory_space<smem>>
    %7 = arith.addi %6, %4 : i32
    %c0_i32_0 = arith.constant 0 : i32
    %8 = arith.minsi %7, %c0_i32_0 : i32
    %9 = arith.cmpi slt, %arg1, %1 : i32
    %c0_i32_1 = arith.constant 0 : i32
    %10 = arith.select %9, %arg2, %c0_i32_1 : i32
    %c0_i32_2 = arith.constant 0 : i32
    return %10, %8 : i32, i32
  }
  func.func @transform_2(%arg0: i32, %arg1: i32, %arg2: i32, %arg3: memref<1xi32, #tpu.memory_space<smem>>, %arg4: memref<1xi32, #tpu.memory_space<smem>>) -> (i32, i32) {
    %c0_i32 = arith.constant 0 : i32
    %c0_i32_0 = arith.constant 0 : i32
    return %c0_i32, %arg0 : i32, i32
  }
}

</mosaic_0001>

<llo_original>
// kernel: tpu_custom_call.1
$region0: #{tpu_custom_call.1}
  #allocation0 [shape = 'u32[]', space=smem, size = 0x4, offset = 0x4, fixed_abs, tag = 'smem constant byte address 0x4 - core index']
  #allocation1 [shape = 'u32[144,128]{1,0:T(1,128)}', space=vmem, size = 0x12000, scoped, tag = 'internal scratch']
  #allocation2 [shape = 'f32[256,256]{1,0:T(8,128)}', space=vmem, size = 0x40000, scoped, tag = 'scratch operand']
  #allocation3 [shape = 's32[1]{0}', space=sflag, size = 0x4, scoped, tag = 'scoped memory for tpu_custom_call.1']
  #allocation4 [shape = 's32[1]{0:T(128)S(6)}', space=smem, size = 0x200, scoped, tag = 'prefetched SMEM operand 0']
  #allocation5 [shape = 's32[1]{0:T(128)S(6)}', space=smem, size = 0x200, scoped, tag = 'prefetched SMEM operand 1']
  %s0 = inlined_call_operand.<no memory space> [shape: s32[1], index: 0, kind: input, shape index: {}]
  %s1 = inlined_call_operand.<no memory space> [shape: s32[1], index: 1, kind: input, shape index: {}]
  %s2 = inlined_call_operand.vmem [shape: s32[1,256], index: 2, kind: input, shape index: {}]
  %s3 = inlined_call_operand.hbm [shape: f32[8,256], index: 3, kind: input, shape index: {}]
  %s4 = inlined_call_operand.hbm [shape: f32[8,256], index: 4, kind: output, shape index: {}]
  %s5 = sld [smem:[#allocation0]]
  $region38: #{tpu_custom_call.1} parent=0
    _
  %s7 = ssub.s32 1, %s5
  %s8 = scalar_select 0, %s7, %s5
  %9 = sst [smem:[#allocation4]] %s0
  %10 = sst [smem:[#allocation5]] %s1
  $region1: #{tpu_custom_call.1} parent=0
    #allocation6 [shape = 'u8[8192]{0}', space=vmem, size = 0x2000, scoped, tag = 'input window, operand 3, single buffered']
    #allocation7 [shape = 's32[1]{0}', space=sflag, size = 0x4, scoped, tag = 'scoped memory for tpu_custom_call.1']
    #allocation8 [shape = 's32[1]{0}', space=sflag, size = 0x4, scoped, tag = 'scoped memory for tpu_custom_call.1']
    #allocation9 [shape = 'u8[8192]{0}', space=vmem, size = 0x2000, scoped, tag = 'output window, operand 0, single buffered']
    %11 = vsyncpa [#allocation7], 0
    %12 = vsyncpa [#allocation8], 0
    // Predicated region
    $region2: #{tpu_custom_call.1} parent=1 // pred_check
      _
    $region3: #{tpu_custom_call.1} parent=1 // pred_check_branch
      %14 = sbr.rel (0) target = $region5
    $region4: #{tpu_custom_call.1} parent=1 // pred_region
      _
    $region5: #{tpu_custom_call.1} parent=1 // pred_fallthru
      _
    // Predicated region
    $region6: #{tpu_custom_call.1} parent=1 // pred_check
      _
    $region7: #{tpu_custom_call.1} parent=1 // pred_check_branch
      %16 = sbr.rel (0) target = $region9
    $region8: #{tpu_custom_call.1} parent=1 // pred_region
      %s17 = sld [smem:[#allocation5]]
      %s18 = ssub.s32 %s17, 1
      %p19 = scmp.gt.s32.totalorder %s18, 0
      %s20 = scalar_select %p19, %s18, 0
      %p21 = scmp.lt.s32.totalorder 0, %s20
      %s22 = scalar_select %p21, 0, %s20
      %s23 = sld [smem:[#allocation4]]
      %s24 = sadd.s32 %s23, %s22
      %p25 = scmp.lt.s32.totalorder %s24, 0
      %s26 = scalar_select %p25, %s24, 0
      %p27 = scmp.lt.s32.totalorder 0, %s17
      %s28 = scalar_select %p27, 0, 0
      %s29 = smul.u32 2, %s26
      %s31 = ssub.s32 256, 256
      %32 = vsyncadd [#allocation7], %s31
      %s33 = smul.addr %s28, 2
      %s34 = sadd.s32 %s29, %s33
      %s35 = smul.addr %s34, 128
      %s36 = scalar_lea.hbm %s3, %s35
      %s38 = sshll.u32 [#allocation6], 4
      %s39 = int_to_ptr.vmem [resolvable:$true] %s38
      %41 = dma.hbm_to_vmem [thread:$0]  %s36, 256, %s39, [#allocation7]
    $region9: #{tpu_custom_call.1} parent=1 // pred_fallthru
      _
    // Predicated region
    $region10: #{tpu_custom_call.1} parent=1 // pred_check
      _
    $region11: #{tpu_custom_call.1} parent=1 // pred_check_branch
      %43 = sbr.rel (0) target = $region13
    $region12: #{tpu_custom_call.1} parent=1 // pred_region
      %44 = dma.done [#allocation7], 256
    $region13: #{tpu_custom_call.1} parent=1 // pred_fallthru
      _
    %s45 = sld [smem:[#allocation5]]
    %s46 = ssub.s32 %s45, 1
    %p47 = scmp.gt.s32.totalorder %s46, 0
    %s48 = scalar_select %p47, %s46, 0
    %p49 = scmp.lt.s32.totalorder 0, %s48
    %s50 = scalar_select %p49, 0, %s48
    %s51 = sld [smem:[#allocation4]]
    %s52 = sadd.s32 %s51, %s50
    %p53 = scmp.lt.s32.totalorder %s52, 0
    %s54 = scalar_select %p53, %s52, 0
    %p55 = scmp.lt.s32.totalorder 0, %s45
    %s56 = scalar_select %p55, 0, 0
    %s57 = smul.u32 2, %s54
    %s58 = sld [smem:[#allocation5]]
    %p59 = scmp.lt.s32.totalorder 0, %s58
    %p60 = scmp.eq.s32.totalorder 0, 0
    %p61 = pnand %p60, %p59
    %p62 = pneg %p61
    // Predicated region
    $region14: #{tpu_custom_call.1} parent=1 // pred_check
      _
    $region15: #{tpu_custom_call.1} parent=1 // pred_check_branch
      %64 = sbr.rel (%p61) target = $region17
    $region16: #{tpu_custom_call.1} parent=1 // pred_region
      %s65 = sld [smem:[#allocation4]]
      %s66 = sadd.s32 %s65, 0
      %s67 = smul.u32 %s66, 256
      %v68 = vlaneseq
      %v69 = vshrl.u32 %v68, 7
      %v70 = vadd.s32 %v69, 8
      %v71 = vadd.s32 %v69, 16
      %v72 = vadd.s32 %v69, 24
      %v73 = vadd.s32 %v69, 32
      %v74 = vadd.s32 %v69, 40
      %v75 = vadd.s32 %v69, 48
      %v76 = vadd.s32 %v69, 56
      %v77 = vadd.s32 %v69, 64
      %v78 = vadd.s32 %v69, 72
      %v79 = vadd.s32 %v69, 80
      %v80 = vadd.s32 %v69, 88
      %v81 = vadd.s32 %v69, 96
      %v82 = vadd.s32 %v69, 104
      %v83 = vadd.s32 %v69, 112
      %v84 = vadd.s32 %v69, 120
      %v85 = vadd.s32 %v69, 128
      %v86 = vadd.s32 %v69, 136
      %v87 = vadd.s32 %v69, 144
      %v88 = vadd.s32 %v69, 152
      %v89 = vadd.s32 %v69, 160
      %v90 = vadd.s32 %v69, 168
      %v91 = vadd.s32 %v69, 176
      %v92 = vadd.s32 %v69, 184
      %v93 = vadd.s32 %v69, 192
      %v94 = vadd.s32 %v69, 200
      %v95 = vadd.s32 %v69, 208
      %v96 = vadd.s32 %v69, 216
      %v97 = vadd.s32 %v69, 224
      %v98 = vadd.s32 %v69, 232
      %v99 = vadd.s32 %v69, 240
      %v100 = vadd.s32 %v69, 248
      %v101 = vstv %s67
      %v102 = vadd.s32 %v69, %v101
      %v103 = vadd.s32 %v70, %v101
      %v104 = vadd.s32 %v71, %v101
      %v105 = vadd.s32 %v72, %v101
      %v106 = vadd.s32 %v73, %v101
      %v107 = vadd.s32 %v74, %v101
      %v108 = vadd.s32 %v75, %v101
      %v109 = vadd.s32 %v76, %v101
      %v110 = vadd.s32 %v77, %v101
      %v111 = vadd.s32 %v78, %v101
      %v112 = vadd.s32 %v79, %v101
      %v113 = vadd.s32 %v80, %v101
      %v114 = vadd.s32 %v81, %v101
      %v115 = vadd.s32 %v82, %v101
      %v116 = vadd.s32 %v83, %v101
      %v117 = vadd.s32 %v84, %v101
      %v118 = vadd.s32 %v85, %v101
      %v119 = vadd.s32 %v86, %v101
      %v120 = vadd.s32 %v87, %v101
      %v121 = vadd.s32 %v88, %v101
      %v122 = vadd.s32 %v89, %v101
      %v123 = vadd.s32 %v90, %v101
      %v124 = vadd.s32 %v91, %v101
      %v125 = vadd.s32 %v92, %v101
      %v126 = vadd.s32 %v93, %v101
      %v127 = vadd.s32 %v94, %v101
      %v128 = vadd.s32 %v95, %v101
      %v129 = vadd.s32 %v96, %v101
      %v130 = vadd.s32 %v97, %v101
      %v131 = vadd.s32 %v98, %v101
      %v132 = vadd.s32 %v99, %v101
      %v133 = vadd.s32 %v100, %v101
      %v134 = vld [vmem:[%s2] sm:$0x3]
      %v135 = vlaneseq
      %v136 = vshrl.u32 %v135, 7
      %v137 = vsub.s32 0, %v136
      %v138 = vrot.slane %v134, %v137
      %v139 = vlaneseq
      %v140 = vshrl.u32 %v139, 7
      %v141 = vsub.s32 1, %v140
      %v142 = vrot.slane %v134, %v141
      %vm143 = vcmp.eq.s32.totalorder %v102, %v138
      %vm144 = vcmp.eq.s32.totalorder %v102, %v142
      %vm145 = vcmp.eq.s32.totalorder %v103, %v138
      %vm146 = vcmp.eq.s32.totalorder %v103, %v142
      %vm147 = vcmp.eq.s32.totalorder %v104, %v138
      %vm148 = vcmp.eq.s32.totalorder %v104, %v142
      %vm149 = vcmp.eq.s32.totalorder %v105, %v138
      %vm150 = vcmp.eq.s32.totalorder %v105, %v142
      %vm151 = vcmp.eq.s32.totalorder %v106, %v138
      %vm152 = vcmp.eq.s32.totalorder %v106, %v142
      %vm153 = vcmp.eq.s32.totalorder %v107, %v138
      %vm154 = vcmp.eq.s32.totalorder %v107, %v142
      %vm155 = vcmp.eq.s32.totalorder %v108, %v138
      %vm156 = vcmp.eq.s32.totalorder %v108, %v142
      %vm157 = vcmp.eq.s32.totalorder %v109, %v138
      %vm158 = vcmp.eq.s32.totalorder %v109, %v142
      %vm159 = vcmp.eq.s32.totalorder %v110, %v138
      %vm160 = vcmp.eq.s32.totalorder %v110, %v142
      %vm161 = vcmp.eq.s32.totalorder %v111, %v138
      %vm162 = vcmp.eq.s32.totalorder %v111, %v142
      %vm163 = vcmp.eq.s32.totalorder %v112, %v138
      %vm164 = vcmp.eq.s32.totalorder %v112, %v142
      %vm165 = vcmp.eq.s32.totalorder %v113, %v138
      %vm166 = vcmp.eq.s32.totalorder %v113, %v142
      %vm167 = vcmp.eq.s32.totalorder %v114, %v138
      %vm168 = vcmp.eq.s32.totalorder %v114, %v142
      %vm169 = vcmp.eq.s32.totalorder %v115, %v138
      %vm170 = vcmp.eq.s32.totalorder %v115, %v142
      %vm171 = vcmp.eq.s32.totalorder %v116, %v138
      %vm172 = vcmp.eq.s32.totalorder %v116, %v142
      %vm173 = vcmp.eq.s32.totalorder %v117, %v138
      %vm174 = vcmp.eq.s32.totalorder %v117, %v142
      %vm175 = vcmp.eq.s32.totalorder %v118, %v138
      %vm176 = vcmp.eq.s32.totalorder %v118, %v142
      %vm177 = vcmp.eq.s32.totalorder %v119, %v138
      %vm178 = vcmp.eq.s32.totalorder %v119, %v142
      %vm179 = vcmp.eq.s32.totalorder %v120, %v138
      %vm180 = vcmp.eq.s32.totalorder %v120, %v142
      %vm181 = vcmp.eq.s32.totalorder %v121, %v138
      %vm182 = vcmp.eq.s32.totalorder %v121, %v142
      %vm183 = vcmp.eq.s32.totalorder %v122, %v138
      %vm184 = vcmp.eq.s32.totalorder %v122, %v142
      %vm185 = vcmp.eq.s32.totalorder %v123, %v138
      %vm186 = vcmp.eq.s32.totalorder %v123, %v142
      %vm187 = vcmp.eq.s32.totalorder %v124, %v138
      %vm188 = vcmp.eq.s32.totalorder %v124, %v142
      %vm189 = vcmp.eq.s32.totalorder %v125, %v138
      %vm190 = vcmp.eq.s32.totalorder %v125, %v142
      %vm191 = vcmp.eq.s32.totalorder %v126, %v138
      %vm192 = vcmp.eq.s32.totalorder %v126, %v142
      %vm193 = vcmp.eq.s32.totalorder %v127, %v138
      %vm194 = vcmp.eq.s32.totalorder %v127, %v142
      %vm195 = vcmp.eq.s32.totalorder %v128, %v138
      %vm196 = vcmp.eq.s32.totalorder %v128, %v142
      %vm197 = vcmp.eq.s32.totalorder %v129, %v138
      %vm198 = vcmp.eq.s32.totalorder %v129, %v142
      %vm199 = vcmp.eq.s32.totalorder %v130, %v138
      %vm200 = vcmp.eq.s32.totalorder %v130, %v142
      %vm201 = vcmp.eq.s32.totalorder %v131, %v138
      %vm202 = vcmp.eq.s32.totalorder %v131, %v142
      %vm203 = vcmp.eq.s32.totalorder %v132, %v138
      %vm204 = vcmp.eq.s32.totalorder %v132, %v142
      %vm205 = vcmp.eq.s32.totalorder %v133, %v138
      %vm206 = vcmp.eq.s32.totalorder %v133, %v142
      %v207 = vsel %vm143, 1, 0
      %v208 = vsel %vm144, 1, 0
      %v209 = vsel %vm145, 1, 0
      %v210 = vsel %vm146, 1, 0
      %v211 = vsel %vm147, 1, 0
      %v212 = vsel %vm148, 1, 0
      %v213 = vsel %vm149, 1, 0
      %v214 = vsel %vm150, 1, 0
      %v215 = vsel %vm151, 1, 0
      %v216 = vsel %vm152, 1, 0
      %v217 = vsel %vm153, 1, 0
      %v218 = vsel %vm154, 1, 0
      %v219 = vsel %vm155, 1, 0
      %v220 = vsel %vm156, 1, 0
      %v221 = vsel %vm157, 1, 0
      %v222 = vsel %vm158, 1, 0
      %v223 = vsel %vm159, 1, 0
      %v224 = vsel %vm160, 1, 0
      %v225 = vsel %vm161, 1, 0
      %v226 = vsel %vm162, 1, 0
      %v227 = vsel %vm163, 1, 0
      %v228 = vsel %vm164, 1, 0
      %v229 = vsel %vm165, 1, 0
      %v230 = vsel %vm166, 1, 0
      %v231 = vsel %vm167, 1, 0
      %v232 = vsel %vm168, 1, 0
      %v233 = vsel %vm169, 1, 0
      %v234 = vsel %vm170, 1, 0
      %v235 = vsel %vm171, 1, 0
      %v236 = vsel %vm172, 1, 0
      %v237 = vsel %vm173, 1, 0
      %v238 = vsel %vm174, 1, 0
      %v239 = vsel %vm175, 1, 0
      %v240 = vsel %vm176, 1, 0
      %v241 = vsel %vm177, 1, 0
      %v242 = vsel %vm178, 1, 0
      %v243 = vsel %vm179, 1, 0
      %v244 = vsel %vm180, 1, 0
      %v245 = vsel %vm181, 1, 0
      %v246 = vsel %vm182, 1, 0
      %v247 = vsel %vm183, 1, 0
      %v248 = vsel %vm184, 1, 0
      %v249 = vsel %vm185, 1, 0
      %v250 = vsel %vm186, 1, 0
      %v251 = vsel %vm187, 1, 0
      %v252 = vsel %vm188, 1, 0
      %v253 = vsel %vm189, 1, 0
      %v254 = vsel %vm190, 1, 0
      %v255 = vsel %vm191, 1, 0
      %v256 = vsel %vm192, 1, 0
      %v257 = vsel %vm193, 1, 0
      %v258 = vsel %vm194, 1, 0
      %v259 = vsel %vm195, 1, 0
      %v260 = vsel %vm196, 1, 0
      %v261 = vsel %vm197, 1, 0
      %v262 = vsel %vm198, 1, 0
      %v263 = vsel %vm199, 1, 0
      %v264 = vsel %vm200, 1, 0
      %v265 = vsel %vm201, 1, 0
      %v266 = vsel %vm202, 1, 0
      %v267 = vsel %vm203, 1, 0
      %v268 = vsel %vm204, 1, 0
      %v269 = vsel %vm205, 1, 0
      %v270 = vsel %vm206, 1, 0
      %v271 = vcvt.s32.f32 %v207
      %v272 = vcvt.s32.f32 %v208
      %v273 = vcvt.s32.f32 %v209
      %v274 = vcvt.s32.f32 %v210
      %v275 = vcvt.s32.f32 %v211
      %v276 = vcvt.s32.f32 %v212
      %v277 = vcvt.s32.f32 %v213
      %v278 = vcvt.s32.f32 %v214
      %v279 = vcvt.s32.f32 %v215
      %v280 = vcvt.s32.f32 %v216
      %v281 = vcvt.s32.f32 %v217
      %v282 = vcvt.s32.f32 %v218
      %v283 = vcvt.s32.f32 %v219
      %v284 = vcvt.s32.f32 %v220
      %v285 = vcvt.s32.f32 %v221
      %v286 = vcvt.s32.f32 %v222
      %v287 = vcvt.s32.f32 %v223
      %v288 = vcvt.s32.f32 %v224
      %v289 = vcvt.s32.f32 %v225
      %v290 = vcvt.s32.f32 %v226
      %v291 = vcvt.s32.f32 %v227
      %v292 = vcvt.s32.f32 %v228
      %v293 = vcvt.s32.f32 %v229
      %v294 = vcvt.s32.f32 %v230
      %v295 = vcvt.s32.f32 %v231
      %v296 = vcvt.s32.f32 %v232
      %v297 = vcvt.s32.f32 %v233
      %v298 = vcvt.s32.f32 %v234
      %v299 = vcvt.s32.f32 %v235
      %v300 = vcvt.s32.f32 %v236
      %v301 = vcvt.s32.f32 %v237
      %v302 = vcvt.s32.f32 %v238
      %v303 = vcvt.s32.f32 %v239
      %v304 = vcvt.s32.f32 %v240
      %v305 = vcvt.s32.f32 %v241
      %v306 = vcvt.s32.f32 %v242
      %v307 = vcvt.s32.f32 %v243
      %v308 = vcvt.s32.f32 %v244
      %v309 = vcvt.s32.f32 %v245
      %v310 = vcvt.s32.f32 %v246
      %v311 = vcvt.s32.f32 %v247
      %v312 = vcvt.s32.f32 %v248
      %v313 = vcvt.s32.f32 %v249
      %v314 = vcvt.s32.f32 %v250
      %v315 = vcvt.s32.f32 %v251
      %v316 = vcvt.s32.f32 %v252
      %v317 = vcvt.s32.f32 %v253
      %v318 = vcvt.s32.f32 %v254
      %v319 = vcvt.s32.f32 %v255
      %v320 = vcvt.s32.f32 %v256
      %v321 = vcvt.s32.f32 %v257
      %v322 = vcvt.s32.f32 %v258
      %v323 = vcvt.s32.f32 %v259
      %v324 = vcvt.s32.f32 %v260
      %v325 = vcvt.s32.f32 %v261
      %v326 = vcvt.s32.f32 %v262
      %v327 = vcvt.s32.f32 %v263
      %v328 = vcvt.s32.f32 %v264
      %v329 = vcvt.s32.f32 %v265
      %v330 = vcvt.s32.f32 %v266
      %v331 = vcvt.s32.f32 %v267
      %v332 = vcvt.s32.f32 %v268
      %v333 = vcvt.s32.f32 %v269
      %v334 = vcvt.s32.f32 %v270
      %335 = vst [vmem:[#allocation2] sm:$0xff] %v271
      %336 = vst [vmem:[#allocation2 + $0x8] sm:$0xff] %v272
      %337 = vst [vmem:[#allocation2 + $0x10] sm:$0xff] %v273
      %338 = vst [vmem:[#allocation2 + $0x18] sm:$0xff] %v274
      %339 = vst [vmem:[#allocation2 + $0x20] sm:$0xff] %v275
      %340 = vst [vmem:[#allocation2 + $0x28] sm:$0xff] %v276
      %341 = vst [vmem:[#allocation2 + $0x30] sm:$0xff] %v277
      %342 = vst [vmem:[#allocation2 + $0x38] sm:$0xff] %v278
      %343 = vst [vmem:[#allocation2 + $0x40] sm:$0xff] %v279
      %344 = vst [vmem:[#allocation2 + $0x48] sm:$0xff] %v280
      %345 = vst [vmem:[#allocation2 + $0x50] sm:$0xff] %v281
      %346 = vst [vmem:[#allocation2 + $0x58] sm:$0xff] %v282
      %347 = vst [vmem:[#allocation2 + $0x60] sm:$0xff] %v283
      %348 = vst [vmem:[#allocation2 + $0x68] sm:$0xff] %v284
      %349 = vst [vmem:[#allocation2 + $0x70] sm:$0xff] %v285
      %350 = vst [vmem:[#allocation2 + $0x78] sm:$0xff] %v286
      %351 = vst [vmem:[#allocation2 + $0x80] sm:$0xff] %v287
      %352 = vst [vmem:[#allocation2 + $0x88] sm:$0xff] %v288
      %353 = vst [vmem:[#allocation2 + $0x90] sm:$0xff] %v289
      %354 = vst [vmem:[#allocation2 + $0x98] sm:$0xff] %v290
      %355 = vst [vmem:[#allocation2 + $0xa0] sm:$0xff] %v291
      %356 = vst [vmem:[#allocation2 + $0xa8] sm:$0xff] %v292
      %357 = vst [vmem:[#allocation2 + $0xb0] sm:$0xff] %v293
      %358 = vst [vmem:[#allocation2 + $0xb8] sm:$0xff] %v294
      %359 = vst [vmem:[#allocation2 + $0xc0] sm:$0xff] %v295
      %360 = vst [vmem:[#allocation2 + $0xc8] sm:$0xff] %v296
      %361 = vst [vmem:[#allocation2 + $0xd0] sm:$0xff] %v297
      %362 = vst [vmem:[#allocation2 + $0xd8] sm:$0xff] %v298
      %363 = vst [vmem:[#allocation2 + $0xe0] sm:$0xff] %v299
      %364 = vst [vmem:[#allocation2 + $0xe8] sm:$0xff] %v300
      %365 = vst [vmem:[#allocation2 + $0xf0] sm:$0xff] %v301
      %366 = vst [vmem:[#allocation2 + $0xf8] sm:$0xff] %v302
      %367 = vst [vmem:[#allocation2 + $0x100] sm:$0xff] %v303
      %368 = vst [vmem:[#allocation2 + $0x108] sm:$0xff] %v304
      %369 = vst [vmem:[#allocation2 + $0x110] sm:$0xff] %v305
      %370 = vst [vmem:[#allocation2 + $0x118] sm:$0xff] %v306
      %371 = vst [vmem:[#allocation2 + $0x120] sm:$0xff] %v307
      %372 = vst [vmem:[#allocation2 + $0x128] sm:$0xff] %v308
      %373 = vst [vmem:[#allocation2 + $0x130] sm:$0xff] %v309
      %374 = vst [vmem:[#allocation2 + $0x138] sm:$0xff] %v310
      %375 = vst [vmem:[#allocation2 + $0x140] sm:$0xff] %v311
      %376 = vst [vmem:[#allocation2 + $0x148] sm:$0xff] %v312
      %377 = vst [vmem:[#allocation2 + $0x150] sm:$0xff] %v313
      %378 = vst [vmem:[#allocation2 + $0x158] sm:$0xff] %v314
      %379 = vst [vmem:[#allocation2 + $0x160] sm:$0xff] %v315
      %380 = vst [vmem:[#allocation2 + $0x168] sm:$0xff] %v316
      %381 = vst [vmem:[#allocation2 + $0x170] sm:$0xff] %v317
      %382 = vst [vmem:[#allocation2 + $0x178] sm:$0xff] %v318
      %383 = vst [vmem:[#allocation2 + $0x180] sm:$0xff] %v319
      %384 = vst [vmem:[#allocation2 + $0x188] sm:$0xff] %v320
      %385 = vst [vmem:[#allocation2 + $0x190] sm:$0xff] %v321
      %386 = vst [vmem:[#allocation2 + $0x198] sm:$0xff] %v322
      %387 = vst [vmem:[#allocation2 + $0x1a0] sm:$0xff] %v323
      %388 = vst [vmem:[#allocation2 + $0x1a8] sm:$0xff] %v324
      %389 = vst [vmem:[#allocation2 + $0x1b0] sm:$0xff] %v325
      %390 = vst [vmem:[#allocation2 + $0x1b8] sm:$0xff] %v326
      %391 = vst [vmem:[#allocation2 + $0x1c0] sm:$0xff] %v327
      %392 = vst [vmem:[#allocation2 + $0x1c8] sm:$0xff] %v328
      %393 = vst [vmem:[#allocation2 + $0x1d0] sm:$0xff] %v329
      %394 = vst [vmem:[#allocation2 + $0x1d8] sm:$0xff] %v330
      %395 = vst [vmem:[#allocation2 + $0x1e0] sm:$0xff] %v331
      %396 = vst [vmem:[#allocation2 + $0x1e8] sm:$0xff] %v332
      %397 = vst [vmem:[#allocation2 + $0x1f0] sm:$0xff] %v333
      %398 = vst [vmem:[#allocation2 + $0x1f8] sm:$0xff] %v334
    $region17: #{tpu_custom_call.1} parent=1 // pred_fallthru
      _
    %p399 = scmp.eq.s32.totalorder 0, 0
    %p400 = pnand %p59, %p399
    %p401 = pneg %p400
    // Predicated region
    $region18: #{tpu_custom_call.1} parent=1 // pred_check
      _
    $region19: #{tpu_custom_call.1} parent=1 // pred_check_branch
      %403 = sbr.rel (%p400) target = $region21
    $region20: #{tpu_custom_call.1} parent=1 // pred_region
      %v404 = vld [vmem:[#allocation6] sm:$0xff]
      %v405 = vld [vmem:[#allocation6 + $0x8] sm:$0xff]
      %v406 = vld [vmem:[#allocation2] sm:$0xff]
      %v407 = vld [vmem:[#allocation2 + $0x8] sm:$0xff]
      %v408 = vld [vmem:[#allocation2 + $0x10] sm:$0xff]
      %v409 = vld [vmem:[#allocation2 + $0x18] sm:$0xff]
      %v410 = vld [vmem:[#allocation2 + $0x20] sm:$0xff]
      %v411 = vld [vmem:[#allocation2 + $0x28] sm:$0xff]
      %v412 = vld [vmem:[#allocation2 + $0x30] sm:$0xff]
      %v413 = vld [vmem:[#allocation2 + $0x38] sm:$0xff]
      %v414 = vld [vmem:[#allocation2 + $0x40] sm:$0xff]
      %v415 = vld [vmem:[#allocation2 + $0x48] sm:$0xff]
      %v416 = vld [vmem:[#allocation2 + $0x50] sm:$0xff]
      %v417 = vld [vmem:[#allocation2 + $0x58] sm:$0xff]
      %v418 = vld [vmem:[#allocation2 + $0x60] sm:$0xff]
      %v419 = vld [vmem:[#allocation2 + $0x68] sm:$0xff]
      %v420 = vld [vmem:[#allocation2 + $0x70] sm:$0xff]
      %v421 = vld [vmem:[#allocation2 + $0x78] sm:$0xff]
      %v422 = vld [vmem:[#allocation2 + $0x80] sm:$0xff]
      %v423 = vld [vmem:[#allocation2 + $0x88] sm:$0xff]
      %v424 = vld [vmem:[#allocation2 + $0x90] sm:$0xff]
      %v425 = vld [vmem:[#allocation2 + $0x98] sm:$0xff]
      %v426 = vld [vmem:[#allocation2 + $0xa0] sm:$0xff]
      %v427 = vld [vmem:[#allocation2 + $0xa8] sm:$0xff]
      %v428 = vld [vmem:[#allocation2 + $0xb0] sm:$0xff]
      %v429 = vld [vmem:[#allocation2 + $0xb8] sm:$0xff]
      %v430 = vld [vmem:[#allocation2 + $0xc0] sm:$0xff]
      %v431 = vld [vmem:[#allocation2 + $0xc8] sm:$0xff]
      %v432 = vld [vmem:[#allocation2 + $0xd0] sm:$0xff]
      %v433 = vld [vmem:[#allocation2 + $0xd8] sm:$0xff]
      %v434 = vld [vmem:[#allocation2 + $0xe0] sm:$0xff]
      %v435 = vld [vmem:[#allocation2 + $0xe8] sm:$0xff]
      %v436 = vld [vmem:[#allocation2 + $0xf0] sm:$0xff]
      %v437 = vld [vmem:[#allocation2 + $0xf8] sm:$0xff]
      %v438 = vld [vmem:[#allocation2 + $0x100] sm:$0xff]
      %v439 = vld [vmem:[#allocation2 + $0x108] sm:$0xff]
      %v440 = vld [vmem:[#allocation2 + $0x110] sm:$0xff]
      %v441 = vld [vmem:[#allocation2 + $0x118] sm:$0xff]
      %v442 = vld [vmem:[#allocation2 + $0x120] sm:$0xff]
      %v443 = vld [vmem:[#allocation2 + $0x128] sm:$0xff]
      %v444 = vld [vmem:[#allocation2 + $0x130] sm:$0xff]
      %v445 = vld [vmem:[#allocation2 + $0x138] sm:$0xff]
      %v446 = vld [vmem:[#allocation2 + $0x140] sm:$0xff]
      %v447 = vld [vmem:[#allocation2 + $0x148] sm:$0xff]
      %v448 = vld [vmem:[#allocation2 + $0x150] sm:$0xff]
      %v449 = vld [vmem:[#allocation2 + $0x158] sm:$0xff]
      %v450 = vld [vmem:[#allocation2 + $0x160] sm:$0xff]
      %v451 = vld [vmem:[#allocation2 + $0x168] sm:$0xff]
      %v452 = vld [vmem:[#allocation2 + $0x170] sm:$0xff]
      %v453 = vld [vmem:[#allocation2 + $0x178] sm:$0xff]
      %v454 = vld [vmem:[#allocation2 + $0x180] sm:$0xff]
      %v455 = vld [vmem:[#allocation2 + $0x188] sm:$0xff]
      %v456 = vld [vmem:[#allocation2 + $0x190] sm:$0xff]
      %v457 = vld [vmem:[#allocation2 + $0x198] sm:$0xff]
      %v458 = vld [vmem:[#allocation2 + $0x1a0] sm:$0xff]
      %v459 = vld [vmem:[#allocation2 + $0x1a8] sm:$0xff]
      %v460 = vld [vmem:[#allocation2 + $0x1b0] sm:$0xff]
      %v461 = vld [vmem:[#allocation2 + $0x1b8] sm:$0xff]
      %v462 = vld [vmem:[#allocation2 + $0x1c0] sm:$0xff]
      %v463 = vld [vmem:[#allocation2 + $0x1c8] sm:$0xff]
      %v464 = vld [vmem:[#allocation2 + $0x1d0] sm:$0xff]
      %v465 = vld [vmem:[#allocation2 + $0x1d8] sm:$0xff]
      %v466 = vld [vmem:[#allocation2 + $0x1e0] sm:$0xff]
      %v467 = vld [vmem:[#allocation2 + $0x1e8] sm:$0xff]
      %v468 = vld [vmem:[#allocation2 + $0x1f0] sm:$0xff]
      %v469 = vld [vmem:[#allocation2 + $0x1f8] sm:$0xff]
      %v470 = vand.u32 %v407, 4294901760
      %471 = vmatprep.subr.mxu0 %v470
      %v472 = vand.u32 %v406, 4294901760
      %473 = vmatpush1.msra.mxu0 %v472
      %v474 = vand.u32 %v409, 4294901760
      %475 = vmatprep.subr.mxu0 %v474
      %v476 = vand.u32 %v408, 4294901760
      %477 = vmatpush1.msra.mxu0 %v476
      %v478 = vand.u32 %v411, 4294901760
      %479 = vmatprep.subr.mxu0 %v478
      %v480 = vand.u32 %v410, 4294901760
      %481 = vmatpush1.msra.mxu0 %v480
      %v482 = vand.u32 %v413, 4294901760
      %483 = vmatprep.subr.mxu0 %v482
      %v484 = vand.u32 %v412, 4294901760
      %485 = vmatpush1.msra.mxu0 %v484
      %v486 = vand.u32 %v415, 4294901760
      %487 = vmatprep.subr.mxu0 %v486
      %v488 = vand.u32 %v414, 4294901760
      %489 = vmatpush1.msra.mxu0 %v488
      %v490 = vand.u32 %v417, 4294901760
      %491 = vmatprep.subr.mxu0 %v490
      %v492 = vand.u32 %v416, 4294901760
      %493 = vmatpush1.msra.mxu0 %v492
      %v494 = vand.u32 %v419, 4294901760
      %495 = vmatprep.subr.mxu0 %v494
      %v496 = vand.u32 %v418, 4294901760
      %497 = vmatpush1.msra.mxu0 %v496
      %v498 = vand.u32 %v421, 4294901760
      %499 = vmatprep.subr.mxu0 %v498
      %v500 = vand.u32 %v420, 4294901760
      %501 = vmatpush1.msra.mxu0 %v500
      %v502 = vand.u32 %v423, 4294901760
      %503 = vmatprep.subr.mxu0 %v502
      %v504 = vand.u32 %v422, 4294901760
      %505 = vmatpush1.msra.mxu0 %v504
      %v506 = vand.u32 %v425, 4294901760
      %507 = vmatprep.subr.mxu0 %v506
      %v508 = vand.u32 %v424, 4294901760
      %509 = vmatpush1.msra.mxu0 %v508
      %v510 = vand.u32 %v427, 4294901760
      %511 = vmatprep.subr.mxu0 %v510
      %v512 = vand.u32 %v426, 4294901760
      %513 = vmatpush1.msra.mxu0 %v512
      %v514 = vand.u32 %v429, 4294901760
      %515 = vmatprep.subr.mxu0 %v514
      %v516 = vand.u32 %v428, 4294901760
      %517 = vmatpush1.msra.mxu0 %v516
      %v518 = vand.u32 %v431, 4294901760
      %519 = vmatprep.subr.mxu0 %v518
      %v520 = vand.u32 %v430, 4294901760
      %521 = vmatpush1.msra.mxu0 %v520
      %v522 = vand.u32 %v433, 4294901760
      %523 = vmatprep.subr.mxu0 %v522
      %v524 = vand.u32 %v432, 4294901760
      %525 = vmatpush1.msra.mxu0 %v524
      %v526 = vand.u32 %v435, 4294901760
      %527 = vmatprep.subr.mxu0 %v526
      %v528 = vand.u32 %v434, 4294901760
      %529 = vmatpush1.msra.mxu0 %v528
      %v530 = vand.u32 %v437, 4294901760
      %531 = vmatprep.subr.mxu0 %v530
      %v532 = vand.u32 %v436, 4294901760
      %533 = vmatpush1.msra.mxu0 %v532
      %v534 = vand.u32 %v439, 4294901760
      %535 = vmatprep.subr.mxu0 %v534
      %v536 = vand.u32 %v438, 4294901760
      %537 = vmatpush1.msra.mxu0 %v536
      %v538 = vand.u32 %v441, 4294901760
      %539 = vmatprep.subr.mxu0 %v538
      %v540 = vand.u32 %v440, 4294901760
      %541 = vmatpush1.msra.mxu0 %v540
      %v542 = vand.u32 %v443, 4294901760
      %543 = vmatprep.subr.mxu0 %v542
      %v544 = vand.u32 %v442, 4294901760
      %545 = vmatpush1.msra.mxu0 %v544
      %v546 = vand.u32 %v445, 4294901760
      %547 = vmatprep.subr.mxu0 %v546
      %v548 = vand.u32 %v444, 4294901760
      %549 = vmatpush1.msra.mxu0 %v548
      %v550 = vand.u32 %v447, 4294901760
      %551 = vmatprep.subr.mxu0 %v550
      %v552 = vand.u32 %v446, 4294901760
      %553 = vmatpush1.msra.mxu0 %v552
      %v554 = vand.u32 %v449, 4294901760
      %555 = vmatprep.subr.mxu0 %v554
      %v556 = vand.u32 %v448, 4294901760
      %557 = vmatpush1.msra.mxu0 %v556
      %v558 = vand.u32 %v451, 4294901760
      %559 = vmatprep.subr.mxu0 %v558
      %v560 = vand.u32 %v450, 4294901760
      %561 = vmatpush1.msra.mxu0 %v560
      %v562 = vand.u32 %v453, 4294901760
      %563 = vmatprep.subr.mxu0 %v562
      %v564 = vand.u32 %v452, 4294901760
      %565 = vmatpush1.msra.mxu0 %v564
      %v566 = vand.u32 %v455, 4294901760
      %567 = vmatprep.subr.mxu0 %v566
      %v568 = vand.u32 %v454, 4294901760
      %569 = vmatpush1.msra.mxu0 %v568
      %v570 = vand.u32 %v457, 4294901760
      %571 = vmatprep.subr.mxu0 %v570
      %v572 = vand.u32 %v456, 4294901760
      %573 = vmatpush1.msra.mxu0 %v572
      %v574 = vand.u32 %v459, 4294901760
      %575 = vmatprep.subr.mxu0 %v574
      %v576 = vand.u32 %v458, 4294901760
      %577 = vmatpush1.msra.mxu0 %v576
      %v578 = vand.u32 %v461, 4294901760
      %579 = vmatprep.subr.mxu0 %v578
      %v580 = vand.u32 %v460, 4294901760
      %581 = vmatpush1.msra.mxu0 %v580
      %v582 = vand.u32 %v463, 4294901760
      %583 = vmatprep.subr.mxu0 %v582
      %v584 = vand.u32 %v462, 4294901760
      %585 = vmatpush1.msra.mxu0 %v584
      %v586 = vand.u32 %v465, 4294901760
      %587 = vmatprep.subr.mxu0 %v586
      %v588 = vand.u32 %v464, 4294901760
      %589 = vmatpush1.msra.mxu0 %v588
      %v590 = vand.u32 %v467, 4294901760
      %591 = vmatprep.subr.mxu0 %v590
      %v592 = vand.u32 %v466, 4294901760
      %593 = vmatpush1.msra.mxu0 %v592
      %v594 = vand.u32 %v469, 4294901760
      %595 = vmatprep.subr.mxu0 %v594
      %v596 = vand.u32 %v468, 4294901760
      %597 = vmatpush1.msra.mxu0 %v596
      %v598 = vand.u32 %v405, 4294901760
      %v599 = vsub.f32 %v405, %v598
      %v600 = vand.u32 %v599, 4294901760
      %v601 = vsub.f32 %v599, %v600
      %v602 = vand.u32 %v601, 4294901760
      %603 = vmatprep.mubr.f32.mxu0 %v602
      %v604 = vand.u32 %v404, 4294901760
      %v605 = vsub.f32 %v404, %v604
      %v606 = vand.u32 %v605, 4294901760
      %v607 = vsub.f32 %v605, %v606
      %v608 = vand.u32 %v607, 4294901760
      %609 = vmatmul.mubr.f32.gmra.mrb[0].mxu0 %v608
      %v610 = vpop.f32.mrb[0].mxu0
      %v611 = vadd.f32 0.0, %v610
      %v612 = vpop.f32.mrb[0].mxu0
      %v613 = vadd.f32 0.0, %v612
      %614 = vdwg.mxu0
      %v615 = vand.u32 %v407, 4294901760
      %v616 = vsub.f32 %v407, %v615
      %v617 = vand.u32 %v616, 4294901760
      %v618 = vsub.f32 %v616, %v617
      %v619 = vand.u32 %v618, 4294901760
      %620 = vmatprep.subr.mxu0 %v619
      %v621 = vand.u32 %v406, 4294901760
      %v622 = vsub.f32 %v406, %v621
      %v623 = vand.u32 %v622, 4294901760
      %v624 = vsub.f32 %v622, %v623
      %v625 = vand.u32 %v624, 4294901760
      %626 = vmatpush1.msra.mxu0 %v625
      %v627 = vand.u32 %v409, 4294901760
      %v628 = vsub.f32 %v409, %v627
      %v629 = vand.u32 %v628, 4294901760
      %v630 = vsub.f32 %v628, %v629
      %v631 = vand.u32 %v630, 4294901760
      %632 = vmatprep.subr.mxu0 %v631
      %v633 = vand.u32 %v408, 4294901760
      %v634 = vsub.f32 %v408, %v633
      %v635 = vand.u32 %v634, 4294901760
      %v636 = vsub.f32 %v634, %v635
      %v637 = vand.u32 %v636, 4294901760
      %638 = vmatpush1.msra.mxu0 %v637
      %v639 = vand.u32 %v411, 4294901760
      %v640 = vsub.f32 %v411, %v639
      %v641 = vand.u32 %v640, 4294901760
      %v642 = vsub.f32 %v640, %v641
      %v643 = vand.u32 %v642, 4294901760
      %644 = vmatprep.subr.mxu0 %v643
      %v645 = vand.u32 %v410, 4294901760
      %v646 = vsub.f32 %v410, %v645
      %v647 = vand.u32 %v646, 4294901760
      %v648 = vsub.f32 %v646, %v647
      %v649 = vand.u32 %v648, 4294901760
      %650 = vmatpush1.msra.mxu0 %v649
      %v651 = vand.u32 %v413, 4294901760
      %v652 = vsub.f32 %v413, %v651
      %v653 = vand.u32 %v652, 4294901760
      %v654 = vsub.f32 %v652, %v653
      %v655 = vand.u32 %v654, 4294901760
      %656 = vmatprep.subr.mxu0 %v655
      %v657 = vand.u32 %v412, 4294901760
      %v658 = vsub.f32 %v412, %v657
      %v659 = vand.u32 %v658, 4294901760
      %v660 = vsub.f32 %v658, %v659
      %v661 = vand.u32 %v660, 4294901760
      %662 = vmatpush1.msra.mxu0 %v661
      %v663 = vand.u32 %v415, 4294901760
      %v664 = vsub.f32 %v415, %v663
      %v665 = vand.u32 %v664, 4294901760
      %v666 = vsub.f32 %v664, %v665
      %v667 = vand.u32 %v666, 4294901760
      %668 = vmatprep.subr.mxu0 %v667
      %v669 = vand.u32 %v414, 4294901760
      %v670 = vsub.f32 %v414, %v669
      %v671 = vand.u32 %v670, 4294901760
      %v672 = vsub.f32 %v670, %v671
      %v673 = vand.u32 %v672, 4294901760
      %674 = vmatpush1.msra.mxu0 %v673
      %v675 = vand.u32 %v417, 4294901760
      %v676 = vsub.f32 %v417, %v675
      %v677 = vand.u32 %v676, 4294901760
      %v678 = vsub.f32 %v676, %v677
      %v679 = vand.u32 %v678, 4294901760
      %680 = vmatprep.subr.mxu0 %v679
      %v681 = vand.u32 %v416, 4294901760
      %v682 = vsub.f32 %v416, %v681
      %v683 = vand.u32 %v682, 4294901760
      %v684 = vsub.f32 %v682, %v683
      %v685 = vand.u32 %v684, 4294901760
      %686 = vmatpush1.msra.mxu0 %v685
      %v687 = vand.u32 %v419, 4294901760
      %v688 = vsub.f32 %v419, %v687
      %v689 = vand.u32 %v688, 4294901760
      %v690 = vsub.f32 %v688, %v689
      %v691 = vand.u32 %v690, 4294901760
      %692 = vmatprep.subr.mxu0 %v691
      %v693 = vand.u32 %v418, 4294901760
      %v694 = vsub.f32 %v418, %v693
      %v695 = vand.u32 %v694, 4294901760
      %v696 = vsub.f32 %v694, %v695
      %v697 = vand.u32 %v696, 4294901760
      %698 = vmatpush1.msra.mxu0 %v697
      %v699 = vand.u32 %v421, 4294901760
      %v700 = vsub.f32 %v421, %v699
      %v701 = vand.u32 %v700, 4294901760
      %v702 = vsub.f32 %v700, %v701
      %v703 = vand.u32 %v702, 4294901760
      %704 = vmatprep.subr.mxu0 %v703
      %v705 = vand.u32 %v420, 4294901760
      %v706 = vsub.f32 %v420, %v705
      %v707 = vand.u32 %v706, 4294901760
      %v708 = vsub.f32 %v706, %v707
      %v709 = vand.u32 %v708, 4294901760
      %710 = vmatpush1.msra.mxu0 %v709
      %v711 = vand.u32 %v423, 4294901760
      %v712 = vsub.f32 %v423, %v711
      %v713 = vand.u32 %v712, 4294901760
      %v714 = vsub.f32 %v712, %v713
      %v715 = vand.u32 %v714, 4294901760
      %716 = vmatprep.subr.mxu0 %v715
      %v717 = vand.u32 %v422, 4294901760
      %v718 = vsub.f32 %v422, %v717
      %v719 = vand.u32 %v718, 4294901760
      %v720 = vsub.f32 %v718, %v719
      %v721 = vand.u32 %v720, 4294901760
      %722 = vmatpush1.msra.mxu0 %v721
      %v723 = vand.u32 %v425, 4294901760
      %v724 = vsub.f32 %v425, %v723
      %v725 = vand.u32 %v724, 4294901760
      %v726 = vsub.f32 %v724, %v725
      %v727 = vand.u32 %v726, 4294901760
      %728 = vmatprep.subr.mxu0 %v727
      %v729 = vand.u32 %v424, 4294901760
      %v730 = vsub.f32 %v424, %v729
      %v731 = vand.u32 %v730, 4294901760
      %v732 = vsub.f32 %v730, %v731
      %v733 = vand.u32 %v732, 4294901760
      %734 = vmatpush1.msra.mxu0 %v733
      %v735 = vand.u32 %v427, 4294901760
      %v736 = vsub.f32 %v427, %v735
      %v737 = vand.u32 %v736, 4294901760
      %v738 = vsub.f32 %v736, %v737
      %v739 = vand.u32 %v738, 4294901760
      %740 = vmatprep.subr.mxu0 %v739
      %v741 = vand.u32 %v426, 4294901760
      %v742 = vsub.f32 %v426, %v741
      %v743 = vand.u32 %v742, 4294901760
      %v744 = vsub.f32 %v742, %v743
      %v745 = vand.u32 %v744, 4294901760
      %746 = vmatpush1.msra.mxu0 %v745
      %v747 = vand.u32 %v429, 4294901760
      %v748 = vsub.f32 %v429, %v747
      %v749 = vand.u32 %v748, 4294901760
      %v750 = vsub.f32 %v748, %v749
      %v751 = vand.u32 %v750, 4294901760
      %752 = vmatprep.subr.mxu0 %v751
      %v753 = vand.u32 %v428, 4294901760
      %v754 = vsub.f32 %v428, %v753
      %v755 = vand.u32 %v754, 4294901760
      %v756 = vsub.f32 %v754, %v755
      %v757 = vand.u32 %v756, 4294901760
      %758 = vmatpush1.msra.mxu0 %v757
      %v759 = vand.u32 %v431, 4294901760
      %v760 = vsub.f32 %v431, %v759
      %v761 = vand.u32 %v760, 4294901760
      %v762 = vsub.f32 %v760, %v761
      %v763 = vand.u32 %v762, 4294901760
      %764 = vmatprep.subr.mxu0 %v763
      %v765 = vand.u32 %v430, 4294901760
      %v766 = vsub.f32 %v430, %v765
      %v767 = vand.u32 %v766, 4294901760
      %v768 = vsub.f32 %v766, %v767
      %v769 = vand.u32 %v768, 4294901760
      %770 = vmatpush1.msra.mxu0 %v769
      %v771 = vand.u32 %v433, 4294901760
      %v772 = vsub.f32 %v433, %v771
      %v773 = vand.u32 %v772, 4294901760
      %v774 = vsub.f32 %v772, %v773
      %v775 = vand.u32 %v774, 4294901760
      %776 = vmatprep.subr.mxu0 %v775
      %v777 = vand.u32 %v432, 4294901760
      %v778 = vsub.f32 %v432, %v777
      %v779 = vand.u32 %v778, 4294901760
      %v780 = vsub.f32 %v778, %v779
      %v781 = vand.u32 %v780, 4294901760
      %782 = vmatpush1.msra.mxu0 %v781
      %v783 = vand.u32 %v435, 4294901760
      %v784 = vsub.f32 %v435, %v783
      %v785 = vand.u32 %v784, 4294901760
      %v786 = vsub.f32 %v784, %v785
      %v787 = vand.u32 %v786, 4294901760
      %788 = vmatprep.subr.mxu0 %v787
      %v789 = vand.u32 %v434, 4294901760
      %v790 = vsub.f32 %v434, %v789
      %v791 = vand.u32 %v790, 4294901760
      %v792 = vsub.f32 %v790, %v791
      %v793 = vand.u32 %v792, 4294901760
      %794 = vmatpush1.msra.mxu0 %v793
      %v795 = vand.u32 %v437, 4294901760
      %v796 = vsub.f32 %v437, %v795
      %v797 = vand.u32 %v796, 4294901760
      %v798 = vsub.f32 %v796, %v797
      %v799 = vand.u32 %v798, 4294901760
      %800 = vmatprep.subr.mxu0 %v799
      %v801 = vand.u32 %v436, 4294901760
      %v802 = vsub.f32 %v436, %v801
      %v803 = vand.u32 %v802, 4294901760
      %v804 = vsub.f32 %v802, %v803
      %v805 = vand.u32 %v804, 4294901760
      %806 = vmatpush1.msra.mxu0 %v805
      %v807 = vand.u32 %v439, 4294901760
      %v808 = vsub.f32 %v439, %v807
      %v809 = vand.u32 %v808, 4294901760
      %v810 = vsub.f32 %v808, %v809
      %v811 = vand.u32 %v810, 4294901760
      %812 = vmatprep.subr.mxu0 %v811
      %v813 = vand.u32 %v438, 4294901760
      %v814 = vsub.f32 %v438, %v813
      %v815 = vand.u32 %v814, 4294901760
      %v816 = vsub.f32 %v814, %v815
      %v817 = vand.u32 %v816, 4294901760
      %818 = vmatpush1.msra.mxu0 %v817
      %v819 = vand.u32 %v441, 4294901760
      %v820 = vsub.f32 %v441, %v819
      %v821 = vand.u32 %v820, 4294901760
      %v822 = vsub.f32 %v820, %v821
      %v823 = vand.u32 %v822, 4294901760
      %824 = vmatprep.subr.mxu0 %v823
      %v825 = vand.u32 %v440, 4294901760
      %v826 = vsub.f32 %v440, %v825
      %v827 = vand.u32 %v826, 4294901760
      %v828 = vsub.f32 %v826, %v827
      %v829 = vand.u32 %v828, 4294901760
      %830 = vmatpush1.msra.mxu0 %v829
      %v831 = vand.u32 %v443, 4294901760
      %v832 = vsub.f32 %v443, %v831
      %v833 = vand.u32 %v832, 4294901760
      %v834 = vsub.f32 %v832, %v833
      %v835 = vand.u32 %v834, 4294901760
      %836 = vmatprep.subr.mxu0 %v835
      %v837 = vand.u32 %v442, 4294901760
      %v838 = vsub.f32 %v442, %v837
      %v839 = vand.u32 %v838, 4294901760
      %v840 = vsub.f32 %v838, %v839
      %v841 = vand.u32 %v840, 4294901760
      %842 = vmatpush1.msra.mxu0 %v841
      %v843 = vand.u32 %v445, 4294901760
      %v844 = vsub.f32 %v445, %v843
      %v845 = vand.u32 %v844, 4294901760
      %v846 = vsub.f32 %v844, %v845
      %v847 = vand.u32 %v846, 4294901760
      %848 = vmatprep.subr.mxu0 %v847
      %v849 = vand.u32 %v444, 4294901760
      %v850 = vsub.f32 %v444, %v849
      %v851 = vand.u32 %v850, 4294901760
      %v852 = vsub.f32 %v850, %v851
      %v853 = vand.u32 %v852, 4294901760
      %854 = vmatpush1.msra.mxu0 %v853
      %v855 = vand.u32 %v447, 4294901760
      %v856 = vsub.f32 %v447, %v855
      %v857 = vand.u32 %v856, 4294901760
      %v858 = vsub.f32 %v856, %v857
      %v859 = vand.u32 %v858, 4294901760
      %860 = vmatprep.subr.mxu0 %v859
      %v861 = vand.u32 %v446, 4294901760
      %v862 = vsub.f32 %v446, %v861
      %v863 = vand.u32 %v862, 4294901760
      %v864 = vsub.f32 %v862, %v863
      %v865 = vand.u32 %v864, 4294901760
      %866 = vmatpush1.msra.mxu0 %v865
      %v867 = vand.u32 %v449, 4294901760
      %v868 = vsub.f32 %v449, %v867
      %v869 = vand.u32 %v868, 4294901760
      %v870 = vsub.f32 %v868, %v869
      %v871 = vand.u32 %v870, 4294901760
      %872 = vmatprep.subr.mxu0 %v871
      %v873 = vand.u32 %v448, 4294901760
      %v874 = vsub.f32 %v448, %v873
      %v875 = vand.u32 %v874, 4294901760
      %v876 = vsub.f32 %v874, %v875
      %v877 = vand.u32 %v876, 4294901760
      %878 = vmatpush1.msra.mxu0 %v877
      %v879 = vand.u32 %v451, 4294901760
      %v880 = vsub.f32 %v451, %v879
      %v881 = vand.u32 %v880, 4294901760
      %v882 = vsub.f32 %v880, %v881
      %v883 = vand.u32 %v882, 4294901760
      %884 = vmatprep.subr.mxu0 %v883
      %v885 = vand.u32 %v450, 4294901760
      %v886 = vsub.f32 %v450, %v885
      %v887 = vand.u32 %v886, 4294901760
      %v888 = vsub.f32 %v886, %v887
      %v889 = vand.u32 %v888, 4294901760
      %890 = vmatpush1.msra.mxu0 %v889
      %v891 = vand.u32 %v453, 4294901760
      %v892 = vsub.f32 %v453, %v891
      %v893 = vand.u32 %v892, 4294901760
      %v894 = vsub.f32 %v892, %v893
      %v895 = vand.u32 %v894, 4294901760
      %896 = vmatprep.subr.mxu0 %v895
      %v897 = vand.u32 %v452, 4294901760
      %v898 = vsub.f32 %v452, %v897
      %v899 = vand.u32 %v898, 4294901760
      %v900 = vsub.f32 %v898, %v899
      %v901 = vand.u32 %v900, 4294901760
      %902 = vmatpush1.msra.mxu0 %v901
      %v903 = vand.u32 %v455, 4294901760
      %v904 = vsub.f32 %v455, %v903
      %v905 = vand.u32 %v904, 4294901760
      %v906 = vsub.f32 %v904, %v905
      %v907 = vand.u32 %v906, 4294901760
      %908 = vmatprep.subr.mxu0 %v907
      %v909 = vand.u32 %v454, 4294901760
      %v910 = vsub.f32 %v454, %v909
      %v911 = vand.u32 %v910, 4294901760
      %v912 = vsub.f32 %v910, %v911
      %v913 = vand.u32 %v912, 4294901760
      %914 = vmatpush1.msra.mxu0 %v913
      %v915 = vand.u32 %v457, 4294901760
      %v916 = vsub.f32 %v457, %v915
      %v917 = vand.u32 %v916, 4294901760
      %v918 = vsub.f32 %v916, %v917
      %v919 = vand.u32 %v918, 4294901760
      %920 = vmatprep.subr.mxu0 %v919
      %v921 = vand.u32 %v456, 4294901760
      %v922 = vsub.f32 %v456, %v921
      %v923 = vand.u32 %v922, 4294901760
      %v924 = vsub.f32 %v922, %v923
      %v925 = vand.u32 %v924, 4294901760
      %926 = vmatpush1.msra.mxu0 %v925
      %v927 = vand.u32 %v459, 4294901760
      %v928 = vsub.f32 %v459, %v927
      %v929 = vand.u32 %v928, 4294901760
      %v930 = vsub.f32 %v928, %v929
      %v931 = vand.u32 %v930, 4294901760
      %932 = vmatprep.subr.mxu0 %v931
      %v933 = vand.u32 %v458, 4294901760
      %v934 = vsub.f32 %v458, %v933
      %v935 = vand.u32 %v934, 4294901760
      %v936 = vsub.f32 %v934, %v935
      %v937 = vand.u32 %v936, 4294901760
      %938 = vmatpush1.msra.mxu0 %v937
      %v939 = vand.u32 %v461, 4294901760
      %v940 = vsub.f32 %v461, %v939
      %v941 = vand.u32 %v940, 4294901760
      %v942 = vsub.f32 %v940, %v941
      %v943 = vand.u32 %v942, 4294901760
      %944 = vmatprep.subr.mxu0 %v943
      %v945 = vand.u32 %v460, 4294901760
      %v946 = vsub.f32 %v460, %v945
      %v947 = vand.u32 %v946, 4294901760
      %v948 = vsub.f32 %v946, %v947
      %v949 = vand.u32 %v948, 4294901760
      %950 = vmatpush1.msra.mxu0 %v949
      %v951 = vand.u32 %v463, 4294901760
      %v952 = vsub.f32 %v463, %v951
      %v953 = vand.u32 %v952, 4294901760
      %v954 = vsub.f32 %v952, %v953
      %v955 = vand.u32 %v954, 4294901760
      %956 = vmatprep.subr.mxu0 %v955
      %v957 = vand.u32 %v462, 4294901760
      %v958 = vsub.f32 %v462, %v957
      %v959 = vand.u32 %v958, 4294901760
      %v960 = vsub.f32 %v958, %v959
      %v961 = vand.u32 %v960, 4294901760
      %962 = vmatpush1.msra.mxu0 %v961
      %v963 = vand.u32 %v465, 4294901760
      %v964 = vsub.f32 %v465, %v963
      %v965 = vand.u32 %v964, 4294901760
      %v966 = vsub.f32 %v964, %v965
      %v967 = vand.u32 %v966, 4294901760
      %968 = vmatprep.subr.mxu0 %v967
      %v969 = vand.u32 %v464, 4294901760
      %v970 = vsub.f32 %v464, %v969
      %v971 = vand.u32 %v970, 4294901760
      %v972 = vsub.f32 %v970, %v971
      %v973 = vand.u32 %v972, 4294901760
      %974 = vmatpush1.msra.mxu0 %v973
      %v975 = vand.u32 %v467, 4294901760
      %v976 = vsub.f32 %v467, %v975
      %v977 = vand.u32 %v976, 4294901760
      %v978 = vsub.f32 %v976, %v977
      %v979 = vand.u32 %v978, 4294901760
      %980 = vmatprep.subr.mxu0 %v979
      %v981 = vand.u32 %v466, 4294901760
      %v982 = vsub.f32 %v466, %v981
      %v983 = vand.u32 %v982, 4294901760
      %v984 = vsub.f32 %v982, %v983
      %v985 = vand.u32 %v984, 4294901760
      %986 = vmatpush1.msra.mxu0 %v985
      %v987 = vand.u32 %v469, 4294901760
      %v988 = vsub.f32 %v469, %v987
      %v989 = vand.u32 %v988, 4294901760
      %v990 = vsub.f32 %v988, %v989
      %v991 = vand.u32 %v990, 4294901760
      %992 = vmatprep.subr.mxu0 %v991
      %v993 = vand.u32 %v468, 4294901760
      %v994 = vsub.f32 %v468, %v993
      %v995 = vand.u32 %v994, 4294901760
      %v996 = vsub.f32 %v994, %v995
      %v997 = vand.u32 %v996, 4294901760
      %998 = vmatpush1.msra.mxu0 %v997
      %v999 = vand.u32 %v405, 4294901760
      %1000 = vmatprep.mubr.f32.mxu0 %v999
      %v1001 = vand.u32 %v404, 4294901760
      %1002 = vmatmul.mubr.f32.gmra.mrb[0].mxu0 %v1001
      %v1003 = vpop.f32.mrb[0].mxu0
      %v1004 = vadd.f32 %v611, %v1003
      %v1005 = vpop.f32.mrb[0].mxu0
      %v1006 = vadd.f32 %v613, %v1005
      %1007 = vdwg.mxu0
      %v1008 = vand.u32 %v407, 4294901760
      %v1009 = vsub.f32 %v407, %v1008
      %1010 = vmatprep.subr.mxu0 %v1009
      %v1011 = vand.u32 %v406, 4294901760
      %v1012 = vsub.f32 %v406, %v1011
      %1013 = vmatpush1.msra.mxu0 %v1012
      %v1014 = vand.u32 %v409, 4294901760
      %v1015 = vsub.f32 %v409, %v1014
      %1016 = vmatprep.subr.mxu0 %v1015
      %v1017 = vand.u32 %v408, 4294901760
      %v1018 = vsub.f32 %v408, %v1017
      %1019 = vmatpush1.msra.mxu0 %v1018
      %v1020 = vand.u32 %v411, 4294901760
      %v1021 = vsub.f32 %v411, %v1020
      %1022 = vmatprep.subr.mxu0 %v1021
      %v1023 = vand.u32 %v410, 4294901760
      %v1024 = vsub.f32 %v410, %v1023
      %1025 = vmatpush1.msra.mxu0 %v1024
      %v1026 = vand.u32 %v413, 4294901760
      %v1027 = vsub.f32 %v413, %v1026
      %1028 = vmatprep.subr.mxu0 %v1027
      %v1029 = vand.u32 %v412, 4294901760
      %v1030 = vsub.f32 %v412, %v1029
      %1031 = vmatpush1.msra.mxu0 %v1030
      %v1032 = vand.u32 %v415, 4294901760
      %v1033 = vsub.f32 %v415, %v1032
      %1034 = vmatprep.subr.mxu0 %v1033
      %v1035 = vand.u32 %v414, 4294901760
      %v1036 = vsub.f32 %v414, %v1035
      %1037 = vmatpush1.msra.mxu0 %v1036
      %v1038 = vand.u32 %v417, 4294901760
      %v1039 = vsub.f32 %v417, %v1038
      %1040 = vmatprep.subr.mxu0 %v1039
      %v1041 = vand.u32 %v416, 4294901760
      %v1042 = vsub.f32 %v416, %v1041
      %1043 = vmatpush1.msra.mxu0 %v1042
      %v1044 = vand.u32 %v419, 4294901760
      %v1045 = vsub.f32 %v419, %v1044
      %1046 = vmatprep.subr.mxu0 %v1045
      %v1047 = vand.u32 %v418, 4294901760
      %v1048 = vsub.f32 %v418, %v1047
      %1049 = vmatpush1.msra.mxu0 %v1048
      %v1050 = vand.u32 %v421, 4294901760
      %v1051 = vsub.f32 %v421, %v1050
      %1052 = vmatprep.subr.mxu0 %v1051
      %v1053 = vand.u32 %v420, 4294901760
      %v1054 = vsub.f32 %v420, %v1053
      %1055 = vmatpush1.msra.mxu0 %v1054
      %v1056 = vand.u32 %v423, 4294901760
      %v1057 = vsub.f32 %v423, %v1056
      %1058 = vmatprep.subr.mxu0 %v1057
      %v1059 = vand.u32 %v422, 4294901760
      %v1060 = vsub.f32 %v422, %v1059
      %1061 = vmatpush1.msra.mxu0 %v1060
      %v1062 = vand.u32 %v425, 4294901760
      %v1063 = vsub.f32 %v425, %v1062
      %1064 = vmatprep.subr.mxu0 %v1063
      %v1065 = vand.u32 %v424, 4294901760
      %v1066 = vsub.f32 %v424, %v1065
      %1067 = vmatpush1.msra.mxu0 %v1066
      %v1068 = vand.u32 %v427, 4294901760
      %v1069 = vsub.f32 %v427, %v1068
      %1070 = vmatprep.subr.mxu0 %v1069
      %v1071 = vand.u32 %v426, 4294901760
      %v1072 = vsub.f32 %v426, %v1071
      %1073 = vmatpush1.msra.mxu0 %v1072
      %v1074 = vand.u32 %v429, 4294901760
      %v1075 = vsub.f32 %v429, %v1074
      %1076 = vmatprep.subr.mxu0 %v1075
      %v1077 = vand.u32 %v428, 4294901760
      %v1078 = vsub.f32 %v428, %v1077
      %1079 = vmatpush1.msra.mxu0 %v1078
      %v1080 = vand.u32 %v431, 4294901760
      %v1081 = vsub.f32 %v431, %v1080
      %1082 = vmatprep.subr.mxu0 %v1081
      %v1083 = vand.u32 %v430, 4294901760
      %v1084 = vsub.f32 %v430, %v1083
      %1085 = vmatpush1.msra.mxu0 %v1084
      %v1086 = vand.u32 %v433, 4294901760
      %v1087 = vsub.f32 %v433, %v1086
      %1088 = vmatprep.subr.mxu0 %v1087
      %v1089 = vand.u32 %v432, 4294901760
      %v1090 = vsub.f32 %v432, %v1089
      %1091 = vmatpush1.msra.mxu0 %v1090
      %v1092 = vand.u32 %v435, 4294901760
      %v1093 = vsub.f32 %v435, %v1092
      %1094 = vmatprep.subr.mxu0 %v1093
      %v1095 = vand.u32 %v434, 4294901760
      %v1096 = vsub.f32 %v434, %v1095
      %1097 = vmatpush1.msra.mxu0 %v1096
      %v1098 = vand.u32 %v437, 4294901760
      %v1099 = vsub.f32 %v437, %v1098
      %1100 = vmatprep.subr.mxu0 %v1099
      %v1101 = vand.u32 %v436, 4294901760
      %v1102 = vsub.f32 %v436, %v1101
      %1103 = vmatpush1.msra.mxu0 %v1102
      %v1104 = vand.u32 %v439, 4294901760
      %v1105 = vsub.f32 %v439, %v1104
      %1106 = vmatprep.subr.mxu0 %v1105
      %v1107 = vand.u32 %v438, 4294901760
      %v1108 = vsub.f32 %v438, %v1107
      %1109 = vmatpush1.msra.mxu0 %v1108
      %v1110 = vand.u32 %v441, 4294901760
      %v1111 = vsub.f32 %v441, %v1110
      %1112 = vmatprep.subr.mxu0 %v1111
      %v1113 = vand.u32 %v440, 4294901760
      %v1114 = vsub.f32 %v440, %v1113
      %1115 = vmatpush1.msra.mxu0 %v1114
      %v1116 = vand.u32 %v443, 4294901760
      %v1117 = vsub.f32 %v443, %v1116
      %1118 = vmatprep.subr.mxu0 %v1117
      %v1119 = vand.u32 %v442, 4294901760
      %v1120 = vsub.f32 %v442, %v1119
      %1121 = vmatpush1.msra.mxu0 %v1120
      %v1122 = vand.u32 %v445, 4294901760
      %v1123 = vsub.f32 %v445, %v1122
      %1124 = vmatprep.subr.mxu0 %v1123
      %v1125 = vand.u32 %v444, 4294901760
      %v1126 = vsub.f32 %v444, %v1125
      %1127 = vmatpush1.msra.mxu0 %v1126
      %v1128 = vand.u32 %v447, 4294901760
      %v1129 = vsub.f32 %v447, %v1128
      %1130 = vmatprep.subr.mxu0 %v1129
      %v1131 = vand.u32 %v446, 4294901760
      %v1132 = vsub.f32 %v446, %v1131
      %1133 = vmatpush1.msra.mxu0 %v1132
      %v1134 = vand.u32 %v449, 4294901760
      %v1135 = vsub.f32 %v449, %v1134
      %1136 = vmatprep.subr.mxu0 %v1135
      %v1137 = vand.u32 %v448, 4294901760
      %v1138 = vsub.f32 %v448, %v1137
      %1139 = vmatpush1.msra.mxu0 %v1138
      %v1140 = vand.u32 %v451, 4294901760
      %v1141 = vsub.f32 %v451, %v1140
      %1142 = vmatprep.subr.mxu0 %v1141
      %v1143 = vand.u32 %v450, 4294901760
      %v1144 = vsub.f32 %v450, %v1143
      %1145 = vmatpush1.msra.mxu0 %v1144
      %v1146 = vand.u32 %v453, 4294901760
      %v1147 = vsub.f32 %v453, %v1146
      %1148 = vmatprep.subr.mxu0 %v1147
      %v1149 = vand.u32 %v452, 4294901760
      %v1150 = vsub.f32 %v452, %v1149
      %1151 = vmatpush1.msra.mxu0 %v1150
      %v1152 = vand.u32 %v455, 4294901760
      %v1153 = vsub.f32 %v455, %v1152
      %1154 = vmatprep.subr.mxu0 %v1153
      %v1155 = vand.u32 %v454, 4294901760
      %v1156 = vsub.f32 %v454, %v1155
      %1157 = vmatpush1.msra.mxu0 %v1156
      %v1158 = vand.u32 %v457, 4294901760
      %v1159 = vsub.f32 %v457, %v1158
      %1160 = vmatprep.subr.mxu0 %v1159
      %v1161 = vand.u32 %v456, 4294901760
      %v1162 = vsub.f32 %v456, %v1161
      %1163 = vmatpush1.msra.mxu0 %v1162
      %v1164 = vand.u32 %v459, 4294901760
      %v1165 = vsub.f32 %v459, %v1164
      %1166 = vmatprep.subr.mxu0 %v1165
      %v1167 = vand.u32 %v458, 4294901760
      %v1168 = vsub.f32 %v458, %v1167
      %1169 = vmatpush1.msra.mxu0 %v1168
      %v1170 = vand.u32 %v461, 4294901760
      %v1171 = vsub.f32 %v461, %v1170
      %1172 = vmatprep.subr.mxu0 %v1171
      %v1173 = vand.u32 %v460, 4294901760
      %v1174 = vsub.f32 %v460, %v1173
      %1175 = vmatpush1.msra.mxu0 %v1174
      %v1176 = vand.u32 %v463, 4294901760
      %v1177 = vsub.f32 %v463, %v1176
      %1178 = vmatprep.subr.mxu0 %v1177
      %v1179 = vand.u32 %v462, 4294901760
      %v1180 = vsub.f32 %v462, %v1179
      %1181 = vmatpush1.msra.mxu0 %v1180
      %v1182 = vand.u32 %v465, 4294901760
      %v1183 = vsub.f32 %v465, %v1182
      %1184 = vmatprep.subr.mxu0 %v1183
      %v1185 = vand.u32 %v464, 4294901760
      %v1186 = vsub.f32 %v464, %v1185
      %1187 = vmatpush1.msra.mxu0 %v1186
      %v1188 = vand.u32 %v467, 4294901760
      %v1189 = vsub.f32 %v467, %v1188
      %1190 = vmatprep.subr.mxu0 %v1189
      %v1191 = vand.u32 %v466, 4294901760
      %v1192 = vsub.f32 %v466, %v1191
      %1193 = vmatpush1.msra.mxu0 %v1192
      %v1194 = vand.u32 %v469, 4294901760
      %v1195 = vsub.f32 %v469, %v1194
      %1196 = vmatprep.subr.mxu0 %v1195
      %v1197 = vand.u32 %v468, 4294901760
      %v1198 = vsub.f32 %v468, %v1197
      %1199 = vmatpush1.msra.mxu0 %v1198
      %v1200 = vand.u32 %v405, 4294901760
      %v1201 = vsub.f32 %v405, %v1200
      %1202 = vmatprep.mubr.f32.mxu0 %v1201
      %v1203 = vand.u32 %v404, 4294901760
      %v1204 = vsub.f32 %v404, %v1203
      %1205 = vmatmul.mubr.f32.gmra.mrb[0].mxu0 %v1204
      %v1206 = vpop.f32.mrb[0].mxu0
      %v1207 = vadd.f32 %v1004, %v1206
      %v1208 = vpop.f32.mrb[0].mxu0
      %v1209 = vadd.f32 %v1006, %v1208
      %1210 = vdwg.mxu0
      %v1211 = vand.u32 %v407, 4294901760
      %1212 = vmatprep.subr.mxu0 %v1211
      %v1213 = vand.u32 %v406, 4294901760
      %1214 = vmatpush1.msra.mxu0 %v1213
      %v1215 = vand.u32 %v409, 4294901760
      %1216 = vmatprep.subr.mxu0 %v1215
      %v1217 = vand.u32 %v408, 4294901760
      %1218 = vmatpush1.msra.mxu0 %v1217
      %v1219 = vand.u32 %v411, 4294901760
      %1220 = vmatprep.subr.mxu0 %v1219
      %v1221 = vand.u32 %v410, 4294901760
      %1222 = vmatpush1.msra.mxu0 %v1221
      %v1223 = vand.u32 %v413, 4294901760
      %1224 = vmatprep.subr.mxu0 %v1223
      %v1225 = vand.u32 %v412, 4294901760
      %1226 = vmatpush1.msra.mxu0 %v1225
      %v1227 = vand.u32 %v415, 4294901760
      %1228 = vmatprep.subr.mxu0 %v1227
      %v1229 = vand.u32 %v414, 4294901760
      %1230 = vmatpush1.msra.mxu0 %v1229
      %v1231 = vand.u32 %v417, 4294901760
      %1232 = vmatprep.subr.mxu0 %v1231
      %v1233 = vand.u32 %v416, 4294901760
      %1234 = vmatpush1.msra.mxu0 %v1233
      %v1235 = vand.u32 %v419, 4294901760
      %1236 = vmatprep.subr.mxu0 %v1235
      %v1237 = vand.u32 %v418, 4294901760
      %1238 = vmatpush1.msra.mxu0 %v1237
      %v1239 = vand.u32 %v421, 4294901760
      %1240 = vmatprep.subr.mxu0 %v1239
      %v1241 = vand.u32 %v420, 4294901760
      %1242 = vmatpush1.msra.mxu0 %v1241
      %v1243 = vand.u32 %v423, 4294901760
      %1244 = vmatprep.subr.mxu0 %v1243
      %v1245 = vand.u32 %v422, 4294901760
      %1246 = vmatpush1.msra.mxu0 %v1245
      %v1247 = vand.u32 %v425, 4294901760
      %1248 = vmatprep.subr.mxu0 %v1247
      %v1249 = vand.u32 %v424, 4294901760
      %1250 = vmatpush1.msra.mxu0 %v1249
      %v1251 = vand.u32 %v427, 4294901760
      %1252 = vmatprep.subr.mxu0 %v1251
      %v1253 = vand.u32 %v426, 4294901760
      %1254 = vmatpush1.msra.mxu0 %v1253
      %v1255 = vand.u32 %v429, 4294901760
      %1256 = vmatprep.subr.mxu0 %v1255
      %v1257 = vand.u32 %v428, 4294901760
      %1258 = vmatpush1.msra.mxu0 %v1257
      %v1259 = vand.u32 %v431, 4294901760
      %1260 = vmatprep.subr.mxu0 %v1259
      %v1261 = vand.u32 %v430, 4294901760
      %1262 = vmatpush1.msra.mxu0 %v1261
      %v1263 = vand.u32 %v433, 4294901760
      %1264 = vmatprep.subr.mxu0 %v1263
      %v1265 = vand.u32 %v432, 4294901760
      %1266 = vmatpush1.msra.mxu0 %v1265
      %v1267 = vand.u32 %v435, 4294901760
      %1268 = vmatprep.subr.mxu0 %v1267
      %v1269 = vand.u32 %v434, 4294901760
      %1270 = vmatpush1.msra.mxu0 %v1269
      %v1271 = vand.u32 %v437, 4294901760
      %1272 = vmatprep.subr.mxu0 %v1271
      %v1273 = vand.u32 %v436, 4294901760
      %1274 = vmatpush1.msra.mxu0 %v1273
      %v1275 = vand.u32 %v439, 4294901760
      %1276 = vmatprep.subr.mxu0 %v1275
      %v1277 = vand.u32 %v438, 4294901760
      %1278 = vmatpush1.msra.mxu0 %v1277
      %v1279 = vand.u32 %v441, 4294901760
      %1280 = vmatprep.subr.mxu0 %v1279
      %v1281 = vand.u32 %v440, 4294901760
      %1282 = vmatpush1.msra.mxu0 %v1281
      %v1283 = vand.u32 %v443, 4294901760
      %1284 = vmatprep.subr.mxu0 %v1283
      %v1285 = vand.u32 %v442, 4294901760
      %1286 = vmatpush1.msra.mxu0 %v1285
      %v1287 = vand.u32 %v445, 4294901760
      %1288 = vmatprep.subr.mxu0 %v1287
      %v1289 = vand.u32 %v444, 4294901760
      %1290 = vmatpush1.msra.mxu0 %v1289
      %v1291 = vand.u32 %v447, 4294901760
      %1292 = vmatprep.subr.mxu0 %v1291
      %v1293 = vand.u32 %v446, 4294901760
      %1294 = vmatpush1.msra.mxu0 %v1293
      %v1295 = vand.u32 %v449, 4294901760
      %1296 = vmatprep.subr.mxu0 %v1295
      %v1297 = vand.u32 %v448, 4294901760
      %1298 = vmatpush1.msra.mxu0 %v1297
      %v1299 = vand.u32 %v451, 4294901760
      %1300 = vmatprep.subr.mxu0 %v1299
      %v1301 = vand.u32 %v450, 4294901760
      %1302 = vmatpush1.msra.mxu0 %v1301
      %v1303 = vand.u32 %v453, 4294901760
      %1304 = vmatprep.subr.mxu0 %v1303
      %v1305 = vand.u32 %v452, 4294901760
      %1306 = vmatpush1.msra.mxu0 %v1305
      %v1307 = vand.u32 %v455, 4294901760
      %1308 = vmatprep.subr.mxu0 %v1307
      %v1309 = vand.u32 %v454, 4294901760
      %1310 = vmatpush1.msra.mxu0 %v1309
      %v1311 = vand.u32 %v457, 4294901760
      %1312 = vmatprep.subr.mxu0 %v1311
      %v1313 = vand.u32 %v456, 4294901760
      %1314 = vmatpush1.msra.mxu0 %v1313
      %v1315 = vand.u32 %v459, 4294901760
      %1316 = vmatprep.subr.mxu0 %v1315
      %v1317 = vand.u32 %v458, 4294901760
      %1318 = vmatpush1.msra.mxu0 %v1317
      %v1319 = vand.u32 %v461, 4294901760
      %1320 = vmatprep.subr.mxu0 %v1319
      %v1321 = vand.u32 %v460, 4294901760
      %1322 = vmatpush1.msra.mxu0 %v1321
      %v1323 = vand.u32 %v463, 4294901760
      %1324 = vmatprep.subr.mxu0 %v1323
      %v1325 = vand.u32 %v462, 4294901760
      %1326 = vmatpush1.msra.mxu0 %v1325
      %v1327 = vand.u32 %v465, 4294901760
      %1328 = vmatprep.subr.mxu0 %v1327
      %v1329 = vand.u32 %v464, 4294901760
      %1330 = vmatpush1.msra.mxu0 %v1329
      %v1331 = vand.u32 %v467, 4294901760
      %1332 = vmatprep.subr.mxu0 %v1331
      %v1333 = vand.u32 %v466, 4294901760
      %1334 = vmatpush1.msra.mxu0 %v1333
      %v1335 = vand.u32 %v469, 4294901760
      %1336 = vmatprep.subr.mxu0 %v1335
      %v1337 = vand.u32 %v468, 4294901760
      %1338 = vmatpush1.msra.mxu0 %v1337
      %v1339 = vand.u32 %v405, 4294901760
      %v1340 = vsub.f32 %v405, %v1339
      %v1341 = vand.u32 %v1340, 4294901760
      %1342 = vmatprep.mubr.f32.mxu0 %v1341
      %v1343 = vand.u32 %v404, 4294901760
      %v1344 = vsub.f32 %v404, %v1343
      %v1345 = vand.u32 %v1344, 4294901760
      %1346 = vmatmul.mubr.f32.gmra.mrb[0].mxu0 %v1345
      %v1347 = vpop.f32.mrb[0].mxu0
      %v1348 = vadd.f32 %v1207, %v1347
      %v1349 = vpop.f32.mrb[0].mxu0
      %v1350 = vadd.f32 %v1209, %v1349
      %1351 = vdwg.mxu0
      %v1352 = vand.u32 %v407, 4294901760
      %v1353 = vsub.f32 %v407, %v1352
      %v1354 = vand.u32 %v1353, 4294901760
      %1355 = vmatprep.subr.mxu0 %v1354
      %v1356 = vand.u32 %v406, 4294901760
      %v1357 = vsub.f32 %v406, %v1356
      %v1358 = vand.u32 %v1357, 4294901760
      %1359 = vmatpush1.msra.mxu0 %v1358
      %v1360 = vand.u32 %v409, 4294901760
      %v1361 = vsub.f32 %v409, %v1360
      %v1362 = vand.u32 %v1361, 4294901760
      %1363 = vmatprep.subr.mxu0 %v1362
      %v1364 = vand.u32 %v408, 4294901760
      %v1365 = vsub.f32 %v408, %v1364
      %v1366 = vand.u32 %v1365, 4294901760
      %1367 = vmatpush1.msra.mxu0 %v1366
      %v1368 = vand.u32 %v411, 4294901760
      %v1369 = vsub.f32 %v411, %v1368
      %v1370 = vand.u32 %v1369, 4294901760
      %1371 = vmatprep.subr.mxu0 %v1370
      %v1372 = vand.u32 %v410, 4294901760
      %v1373 = vsub.f32 %v410, %v1372
      %v1374 = vand.u32 %v1373, 4294901760
      %1375 = vmatpush1.msra.mxu0 %v1374
      %v1376 = vand.u32 %v413, 4294901760
      %v1377 = vsub.f32 %v413, %v1376
      %v1378 = vand.u32 %v1377, 4294901760
      %1379 = vmatprep.subr.mxu0 %v1378
      %v1380 = vand.u32 %v412, 4294901760
      %v1381 = vsub.f32 %v412, %v1380
      %v1382 = vand.u32 %v1381, 4294901760
      %1383 = vmatpush1.msra.mxu0 %v1382
      %v1384 = vand.u32 %v415, 4294901760
      %v1385 = vsub.f32 %v415, %v1384
      %v1386 = vand.u32 %v1385, 4294901760
      %1387 = vmatprep.subr.mxu0 %v1386
      %v1388 = vand.u32 %v414, 4294901760
      %v1389 = vsub.f32 %v414, %v1388
      %v1390 = vand.u32 %v1389, 4294901760
      %1391 = vmatpush1.msra.mxu0 %v1390
      %v1392 = vand.u32 %v417, 4294901760
      %v1393 = vsub.f32 %v417, %v1392
      %v1394 = vand.u32 %v1393, 4294901760
      %1395 = vmatprep.subr.mxu0 %v1394
      %v1396 = vand.u32 %v416, 4294901760
      %v1397 = vsub.f32 %v416, %v1396
      %v1398 = vand.u32 %v1397, 4294901760
      %1399 = vmatpush1.msra.mxu0 %v1398
      %v1400 = vand.u32 %v419, 4294901760
      %v1401 = vsub.f32 %v419, %v1400
      %v1402 = vand.u32 %v1401, 4294901760
      %1403 = vmatprep.subr.mxu0 %v1402
      %v1404 = vand.u32 %v418, 4294901760
      %v1405 = vsub.f32 %v418, %v1404
      %v1406 = vand.u32 %v1405, 4294901760
      %1407 = vmatpush1.msra.mxu0 %v1406
      %v1408 = vand.u32 %v421, 4294901760
      %v1409 = vsub.f32 %v421, %v1408
      %v1410 = vand.u32 %v1409, 4294901760
      %1411 = vmatprep.subr.mxu0 %v1410
      %v1412 = vand.u32 %v420, 4294901760
      %v1413 = vsub.f32 %v420, %v1412
      %v1414 = vand.u32 %v1413, 4294901760
      %1415 = vmatpush1.msra.mxu0 %v1414
      %v1416 = vand.u32 %v423, 4294901760
      %v1417 = vsub.f32 %v423, %v1416
      %v1418 = vand.u32 %v1417, 4294901760
      %1419 = vmatprep.subr.mxu0 %v1418
      %v1420 = vand.u32 %v422, 4294901760
      %v1421 = vsub.f32 %v422, %v1420
      %v1422 = vand.u32 %v1421, 4294901760
      %1423 = vmatpush1.msra.mxu0 %v1422
      %v1424 = vand.u32 %v425, 4294901760
      %v1425 = vsub.f32 %v425, %v1424
      %v1426 = vand.u32 %v1425, 4294901760
      %1427 = vmatprep.subr.mxu0 %v1426
      %v1428 = vand.u32 %v424, 4294901760
      %v1429 = vsub.f32 %v424, %v1428
      %v1430 = vand.u32 %v1429, 4294901760
      %1431 = vmatpush1.msra.mxu0 %v1430
      %v1432 = vand.u32 %v427, 4294901760
      %v1433 = vsub.f32 %v427, %v1432
      %v1434 = vand.u32 %v1433, 4294901760
      %1435 = vmatprep.subr.mxu0 %v1434
      %v1436 = vand.u32 %v426, 4294901760
      %v1437 = vsub.f32 %v426, %v1436
      %v1438 = vand.u32 %v1437, 4294901760
      %1439 = vmatpush1.msra.mxu0 %v1438
      %v1440 = vand.u32 %v429, 4294901760
      %v1441 = vsub.f32 %v429, %v1440
      %v1442 = vand.u32 %v1441, 4294901760
      %1443 = vmatprep.subr.mxu0 %v1442
      %v1444 = vand.u32 %v428, 4294901760
      %v1445 = vsub.f32 %v428, %v1444
      %v1446 = vand.u32 %v1445, 4294901760
      %1447 = vmatpush1.msra.mxu0 %v1446
      %v1448 = vand.u32 %v431, 4294901760
      %v1449 = vsub.f32 %v431, %v1448
      %v1450 = vand.u32 %v1449, 4294901760
      %1451 = vmatprep.subr.mxu0 %v1450
      %v1452 = vand.u32 %v430, 4294901760
      %v1453 = vsub.f32 %v430, %v1452
      %v1454 = vand.u32 %v1453, 4294901760
      %1455 = vmatpush1.msra.mxu0 %v1454
      %v1456 = vand.u32 %v433, 4294901760
      %v1457 = vsub.f32 %v433, %v1456
      %v1458 = vand.u32 %v1457, 4294901760
      %1459 = vmatprep.subr.mxu0 %v1458
      %v1460 = vand.u32 %v432, 4294901760
      %v1461 = vsub.f32 %v432, %v1460
      %v1462 = vand.u32 %v1461, 4294901760
      %1463 = vmatpush1.msra.mxu0 %v1462
      %v1464 = vand.u32 %v435, 4294901760
      %v1465 = vsub.f32 %v435, %v1464
      %v1466 = vand.u32 %v1465, 4294901760
      %1467 = vmatprep.subr.mxu0 %v1466
      %v1468 = vand.u32 %v434, 4294901760
      %v1469 = vsub.f32 %v434, %v1468
      %v1470 = vand.u32 %v1469, 4294901760
      %1471 = vmatpush1.msra.mxu0 %v1470
      %v1472 = vand.u32 %v437, 4294901760
      %v1473 = vsub.f32 %v437, %v1472
      %v1474 = vand.u32 %v1473, 4294901760
      %1475 = vmatprep.subr.mxu0 %v1474
      %v1476 = vand.u32 %v436, 4294901760
      %v1477 = vsub.f32 %v436, %v1476
      %v1478 = vand.u32 %v1477, 4294901760
      %1479 = vmatpush1.msra.mxu0 %v1478
      %v1480 = vand.u32 %v439, 4294901760
      %v1481 = vsub.f32 %v439, %v1480
      %v1482 = vand.u32 %v1481, 4294901760
      %1483 = vmatprep.subr.mxu0 %v1482
      %v1484 = vand.u32 %v438, 4294901760
      %v1485 = vsub.f32 %v438, %v1484
      %v1486 = vand.u32 %v1485, 4294901760
      %1487 = vmatpush1.msra.mxu0 %v1486
      %v1488 = vand.u32 %v441, 4294901760
      %v1489 = vsub.f32 %v441, %v1488
      %v1490 = vand.u32 %v1489, 4294901760
      %1491 = vmatprep.subr.mxu0 %v1490
      %v1492 = vand.u32 %v440, 4294901760
      %v1493 = vsub.f32 %v440, %v1492
      %v1494 = vand.u32 %v1493, 4294901760
      %1495 = vmatpush1.msra.mxu0 %v1494
      %v1496 = vand.u32 %v443, 4294901760
      %v1497 = vsub.f32 %v443, %v1496
      %v1498 = vand.u32 %v1497, 4294901760
      %1499 = vmatprep.subr.mxu0 %v1498
      %v1500 = vand.u32 %v442, 4294901760
      %v1501 = vsub.f32 %v442, %v1500
      %v1502 = vand.u32 %v1501, 4294901760
      %1503 = vmatpush1.msra.mxu0 %v1502
      %v1504 = vand.u32 %v445, 4294901760
      %v1505 = vsub.f32 %v445, %v1504
      %v1506 = vand.u32 %v1505, 4294901760
      %1507 = vmatprep.subr.mxu0 %v1506
      %v1508 = vand.u32 %v444, 4294901760
      %v1509 = vsub.f32 %v444, %v1508
      %v1510 = vand.u32 %v1509, 4294901760
      %1511 = vmatpush1.msra.mxu0 %v1510
      %v1512 = vand.u32 %v447, 4294901760
      %v1513 = vsub.f32 %v447, %v1512
      %v1514 = vand.u32 %v1513, 4294901760
      %1515 = vmatprep.subr.mxu0 %v1514
      %v1516 = vand.u32 %v446, 4294901760
      %v1517 = vsub.f32 %v446, %v1516
      %v1518 = vand.u32 %v1517, 4294901760
      %1519 = vmatpush1.msra.mxu0 %v1518
      %v1520 = vand.u32 %v449, 4294901760
      %v1521 = vsub.f32 %v449, %v1520
      %v1522 = vand.u32 %v1521, 4294901760
      %1523 = vmatprep.subr.mxu0 %v1522
      %v1524 = vand.u32 %v448, 4294901760
      %v1525 = vsub.f32 %v448, %v1524
      %v1526 = vand.u32 %v1525, 4294901760
      %1527 = vmatpush1.msra.mxu0 %v1526
      %v1528 = vand.u32 %v451, 4294901760
      %v1529 = vsub.f32 %v451, %v1528
      %v1530 = vand.u32 %v1529, 4294901760
      %1531 = vmatprep.subr.mxu0 %v1530
      %v1532 = vand.u32 %v450, 4294901760
      %v1533 = vsub.f32 %v450, %v1532
      %v1534 = vand.u32 %v1533, 4294901760
      %1535 = vmatpush1.msra.mxu0 %v1534
      %v1536 = vand.u32 %v453, 4294901760
      %v1537 = vsub.f32 %v453, %v1536
      %v1538 = vand.u32 %v1537, 4294901760
      %1539 = vmatprep.subr.mxu0 %v1538
      %v1540 = vand.u32 %v452, 4294901760
      %v1541 = vsub.f32 %v452, %v1540
      %v1542 = vand.u32 %v1541, 4294901760
      %1543 = vmatpush1.msra.mxu0 %v1542
      %v1544 = vand.u32 %v455, 4294901760
      %v1545 = vsub.f32 %v455, %v1544
      %v1546 = vand.u32 %v1545, 4294901760
      %1547 = vmatprep.subr.mxu0 %v1546
      %v1548 = vand.u32 %v454, 4294901760
      %v1549 = vsub.f32 %v454, %v1548
      %v1550 = vand.u32 %v1549, 4294901760
      %1551 = vmatpush1.msra.mxu0 %v1550
      %v1552 = vand.u32 %v457, 4294901760
      %v1553 = vsub.f32 %v457, %v1552
      %v1554 = vand.u32 %v1553, 4294901760
      %1555 = vmatprep.subr.mxu0 %v1554
      %v1556 = vand.u32 %v456, 4294901760
      %v1557 = vsub.f32 %v456, %v1556
      %v1558 = vand.u32 %v1557, 4294901760
      %1559 = vmatpush1.msra.mxu0 %v1558
      %v1560 = vand.u32 %v459, 4294901760
      %v1561 = vsub.f32 %v459, %v1560
      %v1562 = vand.u32 %v1561, 4294901760
      %1563 = vmatprep.subr.mxu0 %v1562
      %v1564 = vand.u32 %v458, 4294901760
      %v1565 = vsub.f32 %v458, %v1564
      %v1566 = vand.u32 %v1565, 4294901760
      %1567 = vmatpush1.msra.mxu0 %v1566
      %v1568 = vand.u32 %v461, 4294901760
      %v1569 = vsub.f32 %v461, %v1568
      %v1570 = vand.u32 %v1569, 4294901760
      %1571 = vmatprep.subr.mxu0 %v1570
      %v1572 = vand.u32 %v460, 4294901760
      %v1573 = vsub.f32 %v460, %v1572
      %v1574 = vand.u32 %v1573, 4294901760
      %1575 = vmatpush1.msra.mxu0 %v1574
      %v1576 = vand.u32 %v463, 4294901760
      %v1577 = vsub.f32 %v463, %v1576
      %v1578 = vand.u32 %v1577, 4294901760
      %1579 = vmatprep.subr.mxu0 %v1578
      %v1580 = vand.u32 %v462, 4294901760
      %v1581 = vsub.f32 %v462, %v1580
      %v1582 = vand.u32 %v1581, 4294901760
      %1583 = vmatpush1.msra.mxu0 %v1582
      %v1584 = vand.u32 %v465, 4294901760
      %v1585 = vsub.f32 %v465, %v1584
      %v1586 = vand.u32 %v1585, 4294901760
      %1587 = vmatprep.subr.mxu0 %v1586
      %v1588 = vand.u32 %v464, 4294901760
      %v1589 = vsub.f32 %v464, %v1588
      %v1590 = vand.u32 %v1589, 4294901760
      %1591 = vmatpush1.msra.mxu0 %v1590
      %v1592 = vand.u32 %v467, 4294901760
      %v1593 = vsub.f32 %v467, %v1592
      %v1594 = vand.u32 %v1593, 4294901760
      %1595 = vmatprep.subr.mxu0 %v1594
      %v1596 = vand.u32 %v466, 4294901760
      %v1597 = vsub.f32 %v466, %v1596
      %v1598 = vand.u32 %v1597, 4294901760
      %1599 = vmatpush1.msra.mxu0 %v1598
      %v1600 = vand.u32 %v469, 4294901760
      %v1601 = vsub.f32 %v469, %v1600
      %v1602 = vand.u32 %v1601, 4294901760
      %1603 = vmatprep.subr.mxu0 %v1602
      %v1604 = vand.u32 %v468, 4294901760
      %v1605 = vsub.f32 %v468, %v1604
      %v1606 = vand.u32 %v1605, 4294901760
      %1607 = vmatpush1.msra.mxu0 %v1606
      %v1608 = vand.u32 %v405, 4294901760
      %1609 = vmatprep.mubr.f32.mxu0 %v1608
      %v1610 = vand.u32 %v404, 4294901760
      %1611 = vmatmul.mubr.f32.gmra.mrb[0].mxu0 %v1610
      %v1612 = vpop.f32.mrb[0].mxu0
      %v1613 = vadd.f32 %v1348, %v1612
      %v1614 = vpop.f32.mrb[0].mxu0
      %v1615 = vadd.f32 %v1350, %v1614
      %1616 = vdwg.mxu0
      %v1617 = vand.u32 %v407, 4294901760
      %1618 = vmatprep.subr.mxu0 %v1617
      %v1619 = vand.u32 %v406, 4294901760
      %1620 = vmatpush1.msra.mxu0 %v1619
      %v1621 = vand.u32 %v409, 4294901760
      %1622 = vmatprep.subr.mxu0 %v1621
      %v1623 = vand.u32 %v408, 4294901760
      %1624 = vmatpush1.msra.mxu0 %v1623
      %v1625 = vand.u32 %v411, 4294901760
      %1626 = vmatprep.subr.mxu0 %v1625
      %v1627 = vand.u32 %v410, 4294901760
      %1628 = vmatpush1.msra.mxu0 %v1627
      %v1629 = vand.u32 %v413, 4294901760
      %1630 = vmatprep.subr.mxu0 %v1629
      %v1631 = vand.u32 %v412, 4294901760
      %1632 = vmatpush1.msra.mxu0 %v1631
      %v1633 = vand.u32 %v415, 4294901760
      %1634 = vmatprep.subr.mxu0 %v1633
      %v1635 = vand.u32 %v414, 4294901760
      %1636 = vmatpush1.msra.mxu0 %v1635
      %v1637 = vand.u32 %v417, 4294901760
      %1638 = vmatprep.subr.mxu0 %v1637
      %v1639 = vand.u32 %v416, 4294901760
      %1640 = vmatpush1.msra.mxu0 %v1639
      %v1641 = vand.u32 %v419, 4294901760
      %1642 = vmatprep.subr.mxu0 %v1641
      %v1643 = vand.u32 %v418, 4294901760
      %1644 = vmatpush1.msra.mxu0 %v1643
      %v1645 = vand.u32 %v421, 4294901760
      %1646 = vmatprep.subr.mxu0 %v1645
      %v1647 = vand.u32 %v420, 4294901760
      %1648 = vmatpush1.msra.mxu0 %v1647
      %v1649 = vand.u32 %v423, 4294901760
      %1650 = vmatprep.subr.mxu0 %v1649
      %v1651 = vand.u32 %v422, 4294901760
      %1652 = vmatpush1.msra.mxu0 %v1651
      %v1653 = vand.u32 %v425, 4294901760
      %1654 = vmatprep.subr.mxu0 %v1653
      %v1655 = vand.u32 %v424, 4294901760
      %1656 = vmatpush1.msra.mxu0 %v1655
      %v1657 = vand.u32 %v427, 4294901760
      %1658 = vmatprep.subr.mxu0 %v1657
      %v1659 = vand.u32 %v426, 4294901760
      %1660 = vmatpush1.msra.mxu0 %v1659
      %v1661 = vand.u32 %v429, 4294901760
      %1662 = vmatprep.subr.mxu0 %v1661
      %v1663 = vand.u32 %v428, 4294901760
      %1664 = vmatpush1.msra.mxu0 %v1663
      %v1665 = vand.u32 %v431, 4294901760
      %1666 = vmatprep.subr.mxu0 %v1665
      %v1667 = vand.u32 %v430, 4294901760
      %1668 = vmatpush1.msra.mxu0 %v1667
      %v1669 = vand.u32 %v433, 4294901760
      %1670 = vmatprep.subr.mxu0 %v1669
      %v1671 = vand.u32 %v432, 4294901760
      %1672 = vmatpush1.msra.mxu0 %v1671
      %v1673 = vand.u32 %v435, 4294901760
      %1674 = vmatprep.subr.mxu0 %v1673
      %v1675 = vand.u32 %v434, 4294901760
      %1676 = vmatpush1.msra.mxu0 %v1675
      %v1677 = vand.u32 %v437, 4294901760
      %1678 = vmatprep.subr.mxu0 %v1677
      %v1679 = vand.u32 %v436, 4294901760
      %1680 = vmatpush1.msra.mxu0 %v1679
      %v1681 = vand.u32 %v439, 4294901760
      %1682 = vmatprep.subr.mxu0 %v1681
      %v1683 = vand.u32 %v438, 4294901760
      %1684 = vmatpush1.msra.mxu0 %v1683
      %v1685 = vand.u32 %v441, 4294901760
      %1686 = vmatprep.subr.mxu0 %v1685
      %v1687 = vand.u32 %v440, 4294901760
      %1688 = vmatpush1.msra.mxu0 %v1687
      %v1689 = vand.u32 %v443, 4294901760
      %1690 = vmatprep.subr.mxu0 %v1689
      %v1691 = vand.u32 %v442, 4294901760
      %1692 = vmatpush1.msra.mxu0 %v1691
      %v1693 = vand.u32 %v445, 4294901760
      %1694 = vmatprep.subr.mxu0 %v1693
      %v1695 = vand.u32 %v444, 4294901760
      %1696 = vmatpush1.msra.mxu0 %v1695
      %v1697 = vand.u32 %v447, 4294901760
      %1698 = vmatprep.subr.mxu0 %v1697
      %v1699 = vand.u32 %v446, 4294901760
      %1700 = vmatpush1.msra.mxu0 %v1699
      %v1701 = vand.u32 %v449, 4294901760
      %1702 = vmatprep.subr.mxu0 %v1701
      %v1703 = vand.u32 %v448, 4294901760
      %1704 = vmatpush1.msra.mxu0 %v1703
      %v1705 = vand.u32 %v451, 4294901760
      %1706 = vmatprep.subr.mxu0 %v1705
      %v1707 = vand.u32 %v450, 4294901760
      %1708 = vmatpush1.msra.mxu0 %v1707
      %v1709 = vand.u32 %v453, 4294901760
      %1710 = vmatprep.subr.mxu0 %v1709
      %v1711 = vand.u32 %v452, 4294901760
      %1712 = vmatpush1.msra.mxu0 %v1711
      %v1713 = vand.u32 %v455, 4294901760
      %1714 = vmatprep.subr.mxu0 %v1713
      %v1715 = vand.u32 %v454, 4294901760
      %1716 = vmatpush1.msra.mxu0 %v1715
      %v1717 = vand.u32 %v457, 4294901760
      %1718 = vmatprep.subr.mxu0 %v1717
      %v1719 = vand.u32 %v456, 4294901760
      %1720 = vmatpush1.msra.mxu0 %v1719
      %v1721 = vand.u32 %v459, 4294901760
      %1722 = vmatprep.subr.mxu0 %v1721
      %v1723 = vand.u32 %v458, 4294901760
      %1724 = vmatpush1.msra.mxu0 %v1723
      %v1725 = vand.u32 %v461, 4294901760
      %1726 = vmatprep.subr.mxu0 %v1725
      %v1727 = vand.u32 %v460, 4294901760
      %1728 = vmatpush1.msra.mxu0 %v1727
      %v1729 = vand.u32 %v463, 4294901760
      %1730 = vmatprep.subr.mxu0 %v1729
      %v1731 = vand.u32 %v462, 4294901760
      %1732 = vmatpush1.msra.mxu0 %v1731
      %v1733 = vand.u32 %v465, 4294901760
      %1734 = vmatprep.subr.mxu0 %v1733
      %v1735 = vand.u32 %v464, 4294901760
      %1736 = vmatpush1.msra.mxu0 %v1735
      %v1737 = vand.u32 %v467, 4294901760
      %1738 = vmatprep.subr.mxu0 %v1737
      %v1739 = vand.u32 %v466, 4294901760
      %1740 = vmatpush1.msra.mxu0 %v1739
      %v1741 = vand.u32 %v469, 4294901760
      %1742 = vmatprep.subr.mxu0 %v1741
      %v1743 = vand.u32 %v468, 4294901760
      %1744 = vmatpush1.msra.mxu0 %v1743
      %v1745 = vand.u32 %v405, 4294901760
      %1746 = vmatprep.mubr.f32.mxu0 %v1745
      %v1747 = vand.u32 %v404, 4294901760
      %1748 = vmatmul.mubr.f32.gmra.mrb[0].mxu0 %v1747
      %v1749 = vpop.f32.mrb[0].mxu0
      %v1750 = vadd.f32 %v1613, %v1749
      %v1751 = vpop.f32.mrb[0].mxu0
      %v1752 = vadd.f32 %v1615, %v1751
      %1753 = vdwg.mxu0
      %1754 = vst [vmem:[#allocation9] sm:$0xff] %v1750
      %1755 = vst [vmem:[#allocation9 + $0x8] sm:$0xff] %v1752
    $region21: #{tpu_custom_call.1} parent=1 // pred_fallthru
      _
    %p1756 = scmp.gt.s32.totalorder 0, 0
    %p1757 = pnand %p59, %p1756
    %p1758 = pneg %p1757
    // Predicated region
    $region22: #{tpu_custom_call.1} parent=1 // pred_check
      _
    $region23: #{tpu_custom_call.1} parent=1 // pred_check_branch
      %1760 = sbr.rel (%p1757) target = $region25
    $region24: #{tpu_custom_call.1} parent=1 // pred_region
      %v1761 = vld [vmem:[#allocation9] sm:$0xff]
      %v1762 = vld [vmem:[#allocation9 + $0x8] sm:$0xff]
      %v1763 = vld [vmem:[#allocation6] sm:$0xff]
      %v1764 = vld [vmem:[#allocation6 + $0x8] sm:$0xff]
      %v1765 = vld [vmem:[#allocation2] sm:$0xff]
      %v1766 = vld [vmem:[#allocation2 + $0x8] sm:$0xff]
      %v1767 = vld [vmem:[#allocation2 + $0x10] sm:$0xff]
      %v1768 = vld [vmem:[#allocation2 + $0x18] sm:$0xff]
      %v1769 = vld [vmem:[#allocation2 + $0x20] sm:$0xff]
      %v1770 = vld [vmem:[#allocation2 + $0x28] sm:$0xff]
      %v1771 = vld [vmem:[#allocation2 + $0x30] sm:$0xff]
      %v1772 = vld [vmem:[#allocation2 + $0x38] sm:$0xff]
      %v1773 = vld [vmem:[#allocation2 + $0x40] sm:$0xff]
      %v1774 = vld [vmem:[#allocation2 + $0x48] sm:$0xff]
      %v1775 = vld [vmem:[#allocation2 + $0x50] sm:$0xff]
      %v1776 = vld [vmem:[#allocation2 + $0x58] sm:$0xff]
      %v1777 = vld [vmem:[#allocation2 + $0x60] sm:$0xff]
      %v1778 = vld [vmem:[#allocation2 + $0x68] sm:$0xff]
      %v1779 = vld [vmem:[#allocation2 + $0x70] sm:$0xff]
      %v1780 = vld [vmem:[#allocation2 + $0x78] sm:$0xff]
      %v1781 = vld [vmem:[#allocation2 + $0x80] sm:$0xff]
      %v1782 = vld [vmem:[#allocation2 + $0x88] sm:$0xff]
      %v1783 = vld [vmem:[#allocation2 + $0x90] sm:$0xff]
      %v1784 = vld [vmem:[#allocation2 + $0x98] sm:$0xff]
      %v1785 = vld [vmem:[#allocation2 + $0xa0] sm:$0xff]
      %v1786 = vld [vmem:[#allocation2 + $0xa8] sm:$0xff]
      %v1787 = vld [vmem:[#allocation2 + $0xb0] sm:$0xff]
      %v1788 = vld [vmem:[#allocation2 + $0xb8] sm:$0xff]
      %v1789 = vld [vmem:[#allocation2 + $0xc0] sm:$0xff]
      %v1790 = vld [vmem:[#allocation2 + $0xc8] sm:$0xff]
      %v1791 = vld [vmem:[#allocation2 + $0xd0] sm:$0xff]
      %v1792 = vld [vmem:[#allocation2 + $0xd8] sm:$0xff]
      %v1793 = vld [vmem:[#allocation2 + $0xe0] sm:$0xff]
      %v1794 = vld [vmem:[#allocation2 + $0xe8] sm:$0xff]
      %v1795 = vld [vmem:[#allocation2 + $0xf0] sm:$0xff]
      %v1796 = vld [vmem:[#allocation2 + $0xf8] sm:$0xff]
      %v1797 = vld [vmem:[#allocation2 + $0x100] sm:$0xff]
      %v1798 = vld [vmem:[#allocation2 + $0x108] sm:$0xff]
      %v1799 = vld [vmem:[#allocation2 + $0x110] sm:$0xff]
      %v1800 = vld [vmem:[#allocation2 + $0x118] sm:$0xff]
      %v1801 = vld [vmem:[#allocation2 + $0x120] sm:$0xff]
      %v1802 = vld [vmem:[#allocation2 + $0x128] sm:$0xff]
      %v1803 = vld [vmem:[#allocation2 + $0x130] sm:$0xff]
      %v1804 = vld [vmem:[#allocation2 + $0x138] sm:$0xff]
      %v1805 = vld [vmem:[#allocation2 + $0x140] sm:$0xff]
      %v1806 = vld [vmem:[#allocation2 + $0x148] sm:$0xff]
      %v1807 = vld [vmem:[#allocation2 + $0x150] sm:$0xff]
      %v1808 = vld [vmem:[#allocation2 + $0x158] sm:$0xff]
      %v1809 = vld [vmem:[#allocation2 + $0x160] sm:$0xff]
      %v1810 = vld [vmem:[#allocation2 + $0x168] sm:$0xff]
      %v1811 = vld [vmem:[#allocation2 + $0x170] sm:$0xff]
      %v1812 = vld [vmem:[#allocation2 + $0x178] sm:$0xff]
      %v1813 = vld [vmem:[#allocation2 + $0x180] sm:$0xff]
      %v1814 = vld [vmem:[#allocation2 + $0x188] sm:$0xff]
      %v1815 = vld [vmem:[#allocation2 + $0x190] sm:$0xff]
      %v1816 = vld [vmem:[#allocation2 + $0x198] sm:$0xff]
      %v1817 = vld [vmem:[#allocation2 + $0x1a0] sm:$0xff]
      %v1818 = vld [vmem:[#allocation2 + $0x1a8] sm:$0xff]
      %v1819 = vld [vmem:[#allocation2 + $0x1b0] sm:$0xff]
      %v1820 = vld [vmem:[#allocation2 + $0x1b8] sm:$0xff]
      %v1821 = vld [vmem:[#allocation2 + $0x1c0] sm:$0xff]
      %v1822 = vld [vmem:[#allocation2 + $0x1c8] sm:$0xff]
      %v1823 = vld [vmem:[#allocation2 + $0x1d0] sm:$0xff]
      %v1824 = vld [vmem:[#allocation2 + $0x1d8] sm:$0xff]
      %v1825 = vld [vmem:[#allocation2 + $0x1e0] sm:$0xff]
      %v1826 = vld [vmem:[#allocation2 + $0x1e8] sm:$0xff]
      %v1827 = vld [vmem:[#allocation2 + $0x1f0] sm:$0xff]
      %v1828 = vld [vmem:[#allocation2 + $0x1f8] sm:$0xff]
      %v1829 = vand.u32 %v1766, 4294901760
      %1830 = vmatprep.subr.mxu0 %v1829
      %v1831 = vand.u32 %v1765, 4294901760
      %1832 = vmatpush1.msra.mxu0 %v1831
      %v1833 = vand.u32 %v1768, 4294901760
      %1834 = vmatprep.subr.mxu0 %v1833
      %v1835 = vand.u32 %v1767, 4294901760
      %1836 = vmatpush1.msra.mxu0 %v1835
      %v1837 = vand.u32 %v1770, 4294901760
      %1838 = vmatprep.subr.mxu0 %v1837
      %v1839 = vand.u32 %v1769, 4294901760
      %1840 = vmatpush1.msra.mxu0 %v1839
      %v1841 = vand.u32 %v1772, 4294901760
      %1842 = vmatprep.subr.mxu0 %v1841
      %v1843 = vand.u32 %v1771, 4294901760
      %1844 = vmatpush1.msra.mxu0 %v1843
      %v1845 = vand.u32 %v1774, 4294901760
      %1846 = vmatprep.subr.mxu0 %v1845
      %v1847 = vand.u32 %v1773, 4294901760
      %1848 = vmatpush1.msra.mxu0 %v1847
      %v1849 = vand.u32 %v1776, 4294901760
      %1850 = vmatprep.subr.mxu0 %v1849
      %v1851 = vand.u32 %v1775, 4294901760
      %1852 = vmatpush1.msra.mxu0 %v1851
      %v1853 = vand.u32 %v1778, 4294901760
      %1854 = vmatprep.subr.mxu0 %v1853
      %v1855 = vand.u32 %v1777, 4294901760
      %1856 = vmatpush1.msra.mxu0 %v1855
      %v1857 = vand.u32 %v1780, 4294901760
      %1858 = vmatprep.subr.mxu0 %v1857
      %v1859 = vand.u32 %v1779, 4294901760
      %1860 = vmatpush1.msra.mxu0 %v1859
      %v1861 = vand.u32 %v1782, 4294901760
      %1862 = vmatprep.subr.mxu0 %v1861
      %v1863 = vand.u32 %v1781, 4294901760
      %1864 = vmatpush1.msra.mxu0 %v1863
      %v1865 = vand.u32 %v1784, 4294901760
      %1866 = vmatprep.subr.mxu0 %v1865
      %v1867 = vand.u32 %v1783, 4294901760
      %1868 = vmatpush1.msra.mxu0 %v1867
      %v1869 = vand.u32 %v1786, 4294901760
      %1870 = vmatprep.subr.mxu0 %v1869
      %v1871 = vand.u32 %v1785, 4294901760
      %1872 = vmatpush1.msra.mxu0 %v1871
      %v1873 = vand.u32 %v1788, 4294901760
      %1874 = vmatprep.subr.mxu0 %v1873
      %v1875 = vand.u32 %v1787, 4294901760
      %1876 = vmatpush1.msra.mxu0 %v1875
      %v1877 = vand.u32 %v1790, 4294901760
      %1878 = vmatprep.subr.mxu0 %v1877
      %v1879 = vand.u32 %v1789, 4294901760
      %1880 = vmatpush1.msra.mxu0 %v1879
      %v1881 = vand.u32 %v1792, 4294901760
      %1882 = vmatprep.subr.mxu0 %v1881
      %v1883 = vand.u32 %v1791, 4294901760
      %1884 = vmatpush1.msra.mxu0 %v1883
      %v1885 = vand.u32 %v1794, 4294901760
      %1886 = vmatprep.subr.mxu0 %v1885
      %v1887 = vand.u32 %v1793, 4294901760
      %1888 = vmatpush1.msra.mxu0 %v1887
      %v1889 = vand.u32 %v1796, 4294901760
      %1890 = vmatprep.subr.mxu0 %v1889
      %v1891 = vand.u32 %v1795, 4294901760
      %1892 = vmatpush1.msra.mxu0 %v1891
      %v1893 = vand.u32 %v1798, 4294901760
      %1894 = vmatprep.subr.mxu0 %v1893
      %v1895 = vand.u32 %v1797, 4294901760
      %1896 = vmatpush1.msra.mxu0 %v1895
      %v1897 = vand.u32 %v1800, 4294901760
      %1898 = vmatprep.subr.mxu0 %v1897
      %v1899 = vand.u32 %v1799, 4294901760
      %1900 = vmatpush1.msra.mxu0 %v1899
      %v1901 = vand.u32 %v1802, 4294901760
      %1902 = vmatprep.subr.mxu0 %v1901
      %v1903 = vand.u32 %v1801, 4294901760
      %1904 = vmatpush1.msra.mxu0 %v1903
      %v1905 = vand.u32 %v1804, 4294901760
      %1906 = vmatprep.subr.mxu0 %v1905
      %v1907 = vand.u32 %v1803, 4294901760
      %1908 = vmatpush1.msra.mxu0 %v1907
      %v1909 = vand.u32 %v1806, 4294901760
      %1910 = vmatprep.subr.mxu0 %v1909
      %v1911 = vand.u32 %v1805, 4294901760
      %1912 = vmatpush1.msra.mxu0 %v1911
      %v1913 = vand.u32 %v1808, 4294901760
      %1914 = vmatprep.subr.mxu0 %v1913
      %v1915 = vand.u32 %v1807, 4294901760
      %1916 = vmatpush1.msra.mxu0 %v1915
      %v1917 = vand.u32 %v1810, 4294901760
      %1918 = vmatprep.subr.mxu0 %v1917
      %v1919 = vand.u32 %v1809, 4294901760
      %1920 = vmatpush1.msra.mxu0 %v1919
      %v1921 = vand.u32 %v1812, 4294901760
      %1922 = vmatprep.subr.mxu0 %v1921
      %v1923 = vand.u32 %v1811, 4294901760
      %1924 = vmatpush1.msra.mxu0 %v1923
      %v1925 = vand.u32 %v1814, 4294901760
      %1926 = vmatprep.subr.mxu0 %v1925
      %v1927 = vand.u32 %v1813, 4294901760
      %1928 = vmatpush1.msra.mxu0 %v1927
      %v1929 = vand.u32 %v1816, 4294901760
      %1930 = vmatprep.subr.mxu0 %v1929
      %v1931 = vand.u32 %v1815, 4294901760
      %1932 = vmatpush1.msra.mxu0 %v1931
      %v1933 = vand.u32 %v1818, 4294901760
      %1934 = vmatprep.subr.mxu0 %v1933
      %v1935 = vand.u32 %v1817, 4294901760
      %1936 = vmatpush1.msra.mxu0 %v1935
      %v1937 = vand.u32 %v1820, 4294901760
      %1938 = vmatprep.subr.mxu0 %v1937
      %v1939 = vand.u32 %v1819, 4294901760
      %1940 = vmatpush1.msra.mxu0 %v1939
      %v1941 = vand.u32 %v1822, 4294901760
      %1942 = vmatprep.subr.mxu0 %v1941
      %v1943 = vand.u32 %v1821, 4294901760
      %1944 = vmatpush1.msra.mxu0 %v1943
      %v1945 = vand.u32 %v1824, 4294901760
      %1946 = vmatprep.subr.mxu0 %v1945
      %v1947 = vand.u32 %v1823, 4294901760
      %1948 = vmatpush1.msra.mxu0 %v1947
      %v1949 = vand.u32 %v1826, 4294901760
      %1950 = vmatprep.subr.mxu0 %v1949
      %v1951 = vand.u32 %v1825, 4294901760
      %1952 = vmatpush1.msra.mxu0 %v1951
      %v1953 = vand.u32 %v1828, 4294901760
      %1954 = vmatprep.subr.mxu0 %v1953
      %v1955 = vand.u32 %v1827, 4294901760
      %1956 = vmatpush1.msra.mxu0 %v1955
      %v1957 = vand.u32 %v1764, 4294901760
      %v1958 = vsub.f32 %v1764, %v1957
      %v1959 = vand.u32 %v1958, 4294901760
      %v1960 = vsub.f32 %v1958, %v1959
      %v1961 = vand.u32 %v1960, 4294901760
      %1962 = vmatprep.mubr.f32.mxu0 %v1961
      %v1963 = vand.u32 %v1763, 4294901760
      %v1964 = vsub.f32 %v1763, %v1963
      %v1965 = vand.u32 %v1964, 4294901760
      %v1966 = vsub.f32 %v1964, %v1965
      %v1967 = vand.u32 %v1966, 4294901760
      %1968 = vmatmul.mubr.f32.gmra.mrb[0].mxu0 %v1967
      %v1969 = vpop.f32.mrb[0].mxu0
      %v1970 = vadd.f32 0.0, %v1969
      %v1971 = vpop.f32.mrb[0].mxu0
      %v1972 = vadd.f32 0.0, %v1971
      %1973 = vdwg.mxu0
      %v1974 = vand.u32 %v1766, 4294901760
      %v1975 = vsub.f32 %v1766, %v1974
      %v1976 = vand.u32 %v1975, 4294901760
      %v1977 = vsub.f32 %v1975, %v1976
      %v1978 = vand.u32 %v1977, 4294901760
      %1979 = vmatprep.subr.mxu0 %v1978
      %v1980 = vand.u32 %v1765, 4294901760
      %v1981 = vsub.f32 %v1765, %v1980
      %v1982 = vand.u32 %v1981, 4294901760
      %v1983 = vsub.f32 %v1981, %v1982
      %v1984 = vand.u32 %v1983, 4294901760
      %1985 = vmatpush1.msra.mxu0 %v1984
      %v1986 = vand.u32 %v1768, 4294901760
      %v1987 = vsub.f32 %v1768, %v1986
      %v1988 = vand.u32 %v1987, 4294901760
      %v1989 = vsub.f32 %v1987, %v1988
      %v1990 = vand.u32 %v1989, 4294901760
      %1991 = vmatprep.subr.mxu0 %v1990
      %v1992 = vand.u32 %v1767, 4294901760
      %v1993 = vsub.f32 %v1767, %v1992
      %v1994 = vand.u32 %v1993, 4294901760
      %v1995 = vsub.f32 %v1993, %v1994
      %v1996 = vand.u32 %v1995, 4294901760
      %1997 = vmatpush1.msra.mxu0 %v1996
      %v1998 = vand.u32 %v1770, 4294901760
      %v1999 = vsub.f32 %v1770, %v1998
      %v2000 = vand.u32 %v1999, 4294901760
      %v2001 = vsub.f32 %v1999, %v2000
      %v2002 = vand.u32 %v2001, 4294901760
      %2003 = vmatprep.subr.mxu0 %v2002
      %v2004 = vand.u32 %v1769, 4294901760
      %v2005 = vsub.f32 %v1769, %v2004
      %v2006 = vand.u32 %v2005, 4294901760
      %v2007 = vsub.f32 %v2005, %v2006
      %v2008 = vand.u32 %v2007, 4294901760
      %2009 = vmatpush1.msra.mxu0 %v2008
      %v2010 = vand.u32 %v1772, 4294901760
      %v2011 = vsub.f32 %v1772, %v2010
      %v2012 = vand.u32 %v2011, 4294901760
      %v2013 = vsub.f32 %v2011, %v2012
      %v2014 = vand.u32 %v2013, 4294901760
      %2015 = vmatprep.subr.mxu0 %v2014
      %v2016 = vand.u32 %v1771, 4294901760
      %v2017 = vsub.f32 %v1771, %v2016
      %v2018 = vand.u32 %v2017, 4294901760
      %v2019 = vsub.f32 %v2017, %v2018
      %v2020 = vand.u32 %v2019, 4294901760
      %2021 = vmatpush1.msra.mxu0 %v2020
      %v2022 = vand.u32 %v1774, 4294901760
      %v2023 = vsub.f32 %v1774, %v2022
      %v2024 = vand.u32 %v2023, 4294901760
      %v2025 = vsub.f32 %v2023, %v2024
      %v2026 = vand.u32 %v2025, 4294901760
      %2027 = vmatprep.subr.mxu0 %v2026
      %v2028 = vand.u32 %v1773, 4294901760
      %v2029 = vsub.f32 %v1773, %v2028
      %v2030 = vand.u32 %v2029, 4294901760
      %v2031 = vsub.f32 %v2029, %v2030
      %v2032 = vand.u32 %v2031, 4294901760
      %2033 = vmatpush1.msra.mxu0 %v2032
      %v2034 = vand.u32 %v1776, 4294901760
      %v2035 = vsub.f32 %v1776, %v2034
      %v2036 = vand.u32 %v2035, 4294901760
      %v2037 = vsub.f32 %v2035, %v2036
      %v2038 = vand.u32 %v2037, 4294901760
      %2039 = vmatprep.subr.mxu0 %v2038
      %v2040 = vand.u32 %v1775, 4294901760
      %v2041 = vsub.f32 %v1775, %v2040
      %v2042 = vand.u32 %v2041, 4294901760
      %v2043 = vsub.f32 %v2041, %v2042
      %v2044 = vand.u32 %v2043, 4294901760
      %2045 = vmatpush1.msra.mxu0 %v2044
      %v2046 = vand.u32 %v1778, 4294901760
      %v2047 = vsub.f32 %v1778, %v2046
      %v2048 = vand.u32 %v2047, 4294901760
      %v2049 = vsub.f32 %v2047, %v2048
      %v2050 = vand.u32 %v2049, 4294901760
      %2051 = vmatprep.subr.mxu0 %v2050
      %v2052 = vand.u32 %v1777, 4294901760
      %v2053 = vsub.f32 %v1777, %v2052
      %v2054 = vand.u32 %v2053, 4294901760
      %v2055 = vsub.f32 %v2053, %v2054
      %v2056 = vand.u32 %v2055, 4294901760
      %2057 = vmatpush1.msra.mxu0 %v2056
      %v2058 = vand.u32 %v1780, 4294901760
      %v2059 = vsub.f32 %v1780, %v2058
      %v2060 = vand.u32 %v2059, 4294901760
      %v2061 = vsub.f32 %v2059, %v2060
      %v2062 = vand.u32 %v2061, 4294901760
      %2063 = vmatprep.subr.mxu0 %v2062
      %v2064 = vand.u32 %v1779, 4294901760
      %v2065 = vsub.f32 %v1779, %v2064
      %v2066 = vand.u32 %v2065, 4294901760
      %v2067 = vsub.f32 %v2065, %v2066
      %v2068 = vand.u32 %v2067, 4294901760
      %2069 = vmatpush1.msra.mxu0 %v2068
      %v2070 = vand.u32 %v1782, 4294901760
      %v2071 = vsub.f32 %v1782, %v2070
      %v2072 = vand.u32 %v2071, 4294901760
      %v2073 = vsub.f32 %v2071, %v2072
      %v2074 = vand.u32 %v2073, 4294901760
      %2075 = vmatprep.subr.mxu0 %v2074
      %v2076 = vand.u32 %v1781, 4294901760
      %v2077 = vsub.f32 %v1781, %v2076
      %v2078 = vand.u32 %v2077, 4294901760
      %v2079 = vsub.f32 %v2077, %v2078
      %v2080 = vand.u32 %v2079, 4294901760
      %2081 = vmatpush1.msra.mxu0 %v2080
      %v2082 = vand.u32 %v1784, 4294901760
      %v2083 = vsub.f32 %v1784, %v2082
      %v2084 = vand.u32 %v2083, 4294901760
      %v2085 = vsub.f32 %v2083, %v2084
      %v2086 = vand.u32 %v2085, 4294901760
      %2087 = vmatprep.subr.mxu0 %v2086
      %v2088 = vand.u32 %v1783, 4294901760
      %v2089 = vsub.f32 %v1783, %v2088
      %v2090 = vand.u32 %v2089, 4294901760
      %v2091 = vsub.f32 %v2089, %v2090
      %v2092 = vand.u32 %v2091, 4294901760
      %2093 = vmatpush1.msra.mxu0 %v2092
      %v2094 = vand.u32 %v1786, 4294901760
      %v2095 = vsub.f32 %v1786, %v2094
      %v2096 = vand.u32 %v2095, 4294901760
      %v2097 = vsub.f32 %v2095, %v2096
      %v2098 = vand.u32 %v2097, 4294901760
      %2099 = vmatprep.subr.mxu0 %v2098
      %v2100 = vand.u32 %v1785, 4294901760
      %v2101 = vsub.f32 %v1785, %v2100
      %v2102 = vand.u32 %v2101, 4294901760
      %v2103 = vsub.f32 %v2101, %v2102
      %v2104 = vand.u32 %v2103, 4294901760
      %2105 = vmatpush1.msra.mxu0 %v2104
      %v2106 = vand.u32 %v1788, 4294901760
      %v2107 = vsub.f32 %v1788, %v2106
      %v2108 = vand.u32 %v2107, 4294901760
      %v2109 = vsub.f32 %v2107, %v2108
      %v2110 = vand.u32 %v2109, 4294901760
      %2111 = vmatprep.subr.mxu0 %v2110
      %v2112 = vand.u32 %v1787, 4294901760
      %v2113 = vsub.f32 %v1787, %v2112
      %v2114 = vand.u32 %v2113, 4294901760
      %v2115 = vsub.f32 %v2113, %v2114
      %v2116 = vand.u32 %v2115, 4294901760
      %2117 = vmatpush1.msra.mxu0 %v2116
      %v2118 = vand.u32 %v1790, 4294901760
      %v2119 = vsub.f32 %v1790, %v2118
      %v2120 = vand.u32 %v2119, 4294901760
      %v2121 = vsub.f32 %v2119, %v2120
      %v2122 = vand.u32 %v2121, 4294901760
      %2123 = vmatprep.subr.mxu0 %v2122
      %v2124 = vand.u32 %v1789, 4294901760
      %v2125 = vsub.f32 %v1789, %v2124
      %v2126 = vand.u32 %v2125, 4294901760
      %v2127 = vsub.f32 %v2125, %v2126
      %v2128 = vand.u32 %v2127, 4294901760
      %2129 = vmatpush1.msra.mxu0 %v2128
      %v2130 = vand.u32 %v1792, 4294901760
      %v2131 = vsub.f32 %v1792, %v2130
      %v2132 = vand.u32 %v2131, 4294901760
      %v2133 = vsub.f32 %v2131, %v2132
      %v2134 = vand.u32 %v2133, 4294901760
      %2135 = vmatprep.subr.mxu0 %v2134
      %v2136 = vand.u32 %v1791, 4294901760
      %v2137 = vsub.f32 %v1791, %v2136
      %v2138 = vand.u32 %v2137, 4294901760
      %v2139 = vsub.f32 %v2137, %v2138
      %v2140 = vand.u32 %v2139, 4294901760
      %2141 = vmatpush1.msra.mxu0 %v2140
      %v2142 = vand.u32 %v1794, 4294901760
      %v2143 = vsub.f32 %v1794, %v2142
      %v2144 = vand.u32 %v2143, 4294901760
      %v2145 = vsub.f32 %v2143, %v2144
      %v2146 = vand.u32 %v2145, 4294901760
      %2147 = vmatprep.subr.mxu0 %v2146
      %v2148 = vand.u32 %v1793, 4294901760
      %v2149 = vsub.f32 %v1793, %v2148
      %v2150 = vand.u32 %v2149, 4294901760
      %v2151 = vsub.f32 %v2149, %v2150
      %v2152 = vand.u32 %v2151, 4294901760
      %2153 = vmatpush1.msra.mxu0 %v2152
      %v2154 = vand.u32 %v1796, 4294901760
      %v2155 = vsub.f32 %v1796, %v2154
      %v2156 = vand.u32 %v2155, 4294901760
      %v2157 = vsub.f32 %v2155, %v2156
      %v2158 = vand.u32 %v2157, 4294901760
      %2159 = vmatprep.subr.mxu0 %v2158
      %v2160 = vand.u32 %v1795, 4294901760
      %v2161 = vsub.f32 %v1795, %v2160
      %v2162 = vand.u32 %v2161, 4294901760
      %v2163 = vsub.f32 %v2161, %v2162
      %v2164 = vand.u32 %v2163, 4294901760
      %2165 = vmatpush1.msra.mxu0 %v2164
      %v2166 = vand.u32 %v1798, 4294901760
      %v2167 = vsub.f32 %v1798, %v2166
      %v2168 = vand.u32 %v2167, 4294901760
      %v2169 = vsub.f32 %v2167, %v2168
      %v2170 = vand.u32 %v2169, 4294901760
      %2171 = vmatprep.subr.mxu0 %v2170
      %v2172 = vand.u32 %v1797, 4294901760
      %v2173 = vsub.f32 %v1797, %v2172
      %v2174 = vand.u32 %v2173, 4294901760
      %v2175 = vsub.f32 %v2173, %v2174
      %v2176 = vand.u32 %v2175, 4294901760
      %2177 = vmatpush1.msra.mxu0 %v2176
      %v2178 = vand.u32 %v1800, 4294901760
      %v2179 = vsub.f32 %v1800, %v2178
      %v2180 = vand.u32 %v2179, 4294901760
      %v2181 = vsub.f32 %v2179, %v2180
      %v2182 = vand.u32 %v2181, 4294901760
      %2183 = vmatprep.subr.mxu0 %v2182
      %v2184 = vand.u32 %v1799, 4294901760
      %v2185 = vsub.f32 %v1799, %v2184
      %v2186 = vand.u32 %v2185, 4294901760
      %v2187 = vsub.f32 %v2185, %v2186
      %v2188 = vand.u32 %v2187, 4294901760
      %2189 = vmatpush1.msra.mxu0 %v2188
      %v2190 = vand.u32 %v1802, 4294901760
      %v2191 = vsub.f32 %v1802, %v2190
      %v2192 = vand.u32 %v2191, 4294901760
      %v2193 = vsub.f32 %v2191, %v2192
      %v2194 = vand.u32 %v2193, 4294901760
      %2195 = vmatprep.subr.mxu0 %v2194
      %v2196 = vand.u32 %v1801, 4294901760
      %v2197 = vsub.f32 %v1801, %v2196
      %v2198 = vand.u32 %v2197, 4294901760
      %v2199 = vsub.f32 %v2197, %v2198
      %v2200 = vand.u32 %v2199, 4294901760
      %2201 = vmatpush1.msra.mxu0 %v2200
      %v2202 = vand.u32 %v1804, 4294901760
      %v2203 = vsub.f32 %v1804, %v2202
      %v2204 = vand.u32 %v2203, 4294901760
      %v2205 = vsub.f32 %v2203, %v2204
      %v2206 = vand.u32 %v2205, 4294901760
      %2207 = vmatprep.subr.mxu0 %v2206
      %v2208 = vand.u32 %v1803, 4294901760
      %v2209 = vsub.f32 %v1803, %v2208
      %v2210 = vand.u32 %v2209, 4294901760
      %v2211 = vsub.f32 %v2209, %v2210
      %v2212 = vand.u32 %v2211, 4294901760
      %2213 = vmatpush1.msra.mxu0 %v2212
      %v2214 = vand.u32 %v1806, 4294901760
      %v2215 = vsub.f32 %v1806, %v2214
      %v2216 = vand.u32 %v2215, 4294901760
      %v2217 = vsub.f32 %v2215, %v2216
      %v2218 = vand.u32 %v2217, 4294901760
      %2219 = vmatprep.subr.mxu0 %v2218
      %v2220 = vand.u32 %v1805, 4294901760
      %v2221 = vsub.f32 %v1805, %v2220
      %v2222 = vand.u32 %v2221, 4294901760
      %v2223 = vsub.f32 %v2221, %v2222
      %v2224 = vand.u32 %v2223, 4294901760
      %2225 = vmatpush1.msra.mxu0 %v2224
      %v2226 = vand.u32 %v1808, 4294901760
      %v2227 = vsub.f32 %v1808, %v2226
      %v2228 = vand.u32 %v2227, 4294901760
      %v2229 = vsub.f32 %v2227, %v2228
      %v2230 = vand.u32 %v2229, 4294901760
      %2231 = vmatprep.subr.mxu0 %v2230
      %v2232 = vand.u32 %v1807, 4294901760
      %v2233 = vsub.f32 %v1807, %v2232
      %v2234 = vand.u32 %v2233, 4294901760
      %v2235 = vsub.f32 %v2233, %v2234
      %v2236 = vand.u32 %v2235, 4294901760
      %2237 = vmatpush1.msra.mxu0 %v2236
      %v2238 = vand.u32 %v1810, 4294901760
      %v2239 = vsub.f32 %v1810, %v2238
      %v2240 = vand.u32 %v2239, 4294901760
      %v2241 = vsub.f32 %v2239, %v2240
      %v2242 = vand.u32 %v2241, 4294901760
      %2243 = vmatprep.subr.mxu0 %v2242
      %v2244 = vand.u32 %v1809, 4294901760
      %v2245 = vsub.f32 %v1809, %v2244
      %v2246 = vand.u32 %v2245, 4294901760
      %v2247 = vsub.f32 %v2245, %v2246
      %v2248 = vand.u32 %v2247, 4294901760
      %2249 = vmatpush1.msra.mxu0 %v2248
      %v2250 = vand.u32 %v1812, 4294901760
      %v2251 = vsub.f32 %v1812, %v2250
      %v2252 = vand.u32 %v2251, 4294901760
      %v2253 = vsub.f32 %v2251, %v2252
      %v2254 = vand.u32 %v2253, 4294901760
      %2255 = vmatprep.subr.mxu0 %v2254
      %v2256 = vand.u32 %v1811, 4294901760
      %v2257 = vsub.f32 %v1811, %v2256
      %v2258 = vand.u32 %v2257, 4294901760
      %v2259 = vsub.f32 %v2257, %v2258
      %v2260 = vand.u32 %v2259, 4294901760
      %2261 = vmatpush1.msra.mxu0 %v2260
      %v2262 = vand.u32 %v1814, 4294901760
      %v2263 = vsub.f32 %v1814, %v2262
      %v2264 = vand.u32 %v2263, 4294901760
      %v2265 = vsub.f32 %v2263, %v2264
      %v2266 = vand.u32 %v2265, 4294901760
      %2267 = vmatprep.subr.mxu0 %v2266
      %v2268 = vand.u32 %v1813, 4294901760
      %v2269 = vsub.f32 %v1813, %v2268
      %v2270 = vand.u32 %v2269, 4294901760
      %v2271 = vsub.f32 %v2269, %v2270
      %v2272 = vand.u32 %v2271, 4294901760
      %2273 = vmatpush1.msra.mxu0 %v2272
      %v2274 = vand.u32 %v1816, 4294901760
      %v2275 = vsub.f32 %v1816, %v2274
      %v2276 = vand.u32 %v2275, 4294901760
      %v2277 = vsub.f32 %v2275, %v2276
      %v2278 = vand.u32 %v2277, 4294901760
      %2279 = vmatprep.subr.mxu0 %v2278
      %v2280 = vand.u32 %v1815, 4294901760
      %v2281 = vsub.f32 %v1815, %v2280
      %v2282 = vand.u32 %v2281, 4294901760
      %v2283 = vsub.f32 %v2281, %v2282
      %v2284 = vand.u32 %v2283, 4294901760
      %2285 = vmatpush1.msra.mxu0 %v2284
      %v2286 = vand.u32 %v1818, 4294901760
      %v2287 = vsub.f32 %v1818, %v2286
      %v2288 = vand.u32 %v2287, 4294901760
      %v2289 = vsub.f32 %v2287, %v2288
      %v2290 = vand.u32 %v2289, 4294901760
      %2291 = vmatprep.subr.mxu0 %v2290
      %v2292 = vand.u32 %v1817, 4294901760
      %v2293 = vsub.f32 %v1817, %v2292
      %v2294 = vand.u32 %v2293, 4294901760
      %v2295 = vsub.f32 %v2293, %v2294
      %v2296 = vand.u32 %v2295, 4294901760
      %2297 = vmatpush1.msra.mxu0 %v2296
      %v2298 = vand.u32 %v1820, 4294901760
      %v2299 = vsub.f32 %v1820, %v2298
      %v2300 = vand.u32 %v2299, 4294901760
      %v2301 = vsub.f32 %v2299, %v2300
      %v2302 = vand.u32 %v2301, 4294901760
      %2303 = vmatprep.subr.mxu0 %v2302
      %v2304 = vand.u32 %v1819, 4294901760
      %v2305 = vsub.f32 %v1819, %v2304
      %v2306 = vand.u32 %v2305, 4294901760
      %v2307 = vsub.f32 %v2305, %v2306
      %v2308 = vand.u32 %v2307, 4294901760
      %2309 = vmatpush1.msra.mxu0 %v2308
      %v2310 = vand.u32 %v1822, 4294901760
      %v2311 = vsub.f32 %v1822, %v2310
      %v2312 = vand.u32 %v2311, 4294901760
      %v2313 = vsub.f32 %v2311, %v2312
      %v2314 = vand.u32 %v2313, 4294901760
      %2315 = vmatprep.subr.mxu0 %v2314
      %v2316 = vand.u32 %v1821, 4294901760
      %v2317 = vsub.f32 %v1821, %v2316
      %v2318 = vand.u32 %v2317, 4294901760
      %v2319 = vsub.f32 %v2317, %v2318
      %v2320 = vand.u32 %v2319, 4294901760
      %2321 = vmatpush1.msra.mxu0 %v2320
      %v2322 = vand.u32 %v1824, 4294901760
      %v2323 = vsub.f32 %v1824, %v2322
      %v2324 = vand.u32 %v2323, 4294901760
      %v2325 = vsub.f32 %v2323, %v2324
      %v2326 = vand.u32 %v2325, 4294901760
      %2327 = vmatprep.subr.mxu0 %v2326
      %v2328 = vand.u32 %v1823, 4294901760
      %v2329 = vsub.f32 %v1823, %v2328
      %v2330 = vand.u32 %v2329, 4294901760
      %v2331 = vsub.f32 %v2329, %v2330
      %v2332 = vand.u32 %v2331, 4294901760
      %2333 = vmatpush1.msra.mxu0 %v2332
      %v2334 = vand.u32 %v1826, 4294901760
      %v2335 = vsub.f32 %v1826, %v2334
      %v2336 = vand.u32 %v2335, 4294901760
      %v2337 = vsub.f32 %v2335, %v2336
      %v2338 = vand.u32 %v2337, 4294901760
      %2339 = vmatprep.subr.mxu0 %v2338
      %v2340 = vand.u32 %v1825, 4294901760
      %v2341 = vsub.f32 %v1825, %v2340
      %v2342 = vand.u32 %v2341, 4294901760
      %v2343 = vsub.f32 %v2341, %v2342
      %v2344 = vand.u32 %v2343, 4294901760
      %2345 = vmatpush1.msra.mxu0 %v2344
      %v2346 = vand.u32 %v1828, 4294901760
      %v2347 = vsub.f32 %v1828, %v2346
      %v2348 = vand.u32 %v2347, 4294901760
      %v2349 = vsub.f32 %v2347, %v2348
      %v2350 = vand.u32 %v2349, 4294901760
      %2351 = vmatprep.subr.mxu0 %v2350
      %v2352 = vand.u32 %v1827, 4294901760
      %v2353 = vsub.f32 %v1827, %v2352
      %v2354 = vand.u32 %v2353, 4294901760
      %v2355 = vsub.f32 %v2353, %v2354
      %v2356 = vand.u32 %v2355, 4294901760
      %2357 = vmatpush1.msra.mxu0 %v2356
      %v2358 = vand.u32 %v1764, 4294901760
      %2359 = vmatprep.mubr.f32.mxu0 %v2358
      %v2360 = vand.u32 %v1763, 4294901760
      %2361 = vmatmul.mubr.f32.gmra.mrb[0].mxu0 %v2360
      %v2362 = vpop.f32.mrb[0].mxu0
      %v2363 = vadd.f32 %v1970, %v2362
      %v2364 = vpop.f32.mrb[0].mxu0
      %v2365 = vadd.f32 %v1972, %v2364
      %2366 = vdwg.mxu0
      %v2367 = vand.u32 %v1766, 4294901760
      %v2368 = vsub.f32 %v1766, %v2367
      %2369 = vmatprep.subr.mxu0 %v2368
      %v2370 = vand.u32 %v1765, 4294901760
      %v2371 = vsub.f32 %v1765, %v2370
      %2372 = vmatpush1.msra.mxu0 %v2371
      %v2373 = vand.u32 %v1768, 4294901760
      %v2374 = vsub.f32 %v1768, %v2373
      %2375 = vmatprep.subr.mxu0 %v2374
      %v2376 = vand.u32 %v1767, 4294901760
      %v2377 = vsub.f32 %v1767, %v2376
      %2378 = vmatpush1.msra.mxu0 %v2377
      %v2379 = vand.u32 %v1770, 4294901760
      %v2380 = vsub.f32 %v1770, %v2379
      %2381 = vmatprep.subr.mxu0 %v2380
      %v2382 = vand.u32 %v1769, 4294901760
      %v2383 = vsub.f32 %v1769, %v2382
      %2384 = vmatpush1.msra.mxu0 %v2383
      %v2385 = vand.u32 %v1772, 4294901760
      %v2386 = vsub.f32 %v1772, %v2385
      %2387 = vmatprep.subr.mxu0 %v2386
      %v2388 = vand.u32 %v1771, 4294901760
      %v2389 = vsub.f32 %v1771, %v2388
      %2390 = vmatpush1.msra.mxu0 %v2389
      %v2391 = vand.u32 %v1774, 4294901760
      %v2392 = vsub.f32 %v1774, %v2391
      %2393 = vmatprep.subr.mxu0 %v2392
      %v2394 = vand.u32 %v1773, 4294901760
      %v2395 = vsub.f32 %v1773, %v2394
      %2396 = vmatpush1.msra.mxu0 %v2395
      %v2397 = vand.u32 %v1776, 4294901760
      %v2398 = vsub.f32 %v1776, %v2397
      %2399 = vmatprep.subr.mxu0 %v2398
      %v2400 = vand.u32 %v1775, 4294901760
      %v2401 = vsub.f32 %v1775, %v2400
      %2402 = vmatpush1.msra.mxu0 %v2401
      %v2403 = vand.u32 %v1778, 4294901760
      %v2404 = vsub.f32 %v1778, %v2403
      %2405 = vmatprep.subr.mxu0 %v2404
      %v2406 = vand.u32 %v1777, 4294901760
      %v2407 = vsub.f32 %v1777, %v2406
      %2408 = vmatpush1.msra.mxu0 %v2407
      %v2409 = vand.u32 %v1780, 4294901760
      %v2410 = vsub.f32 %v1780, %v2409
      %2411 = vmatprep.subr.mxu0 %v2410
      %v2412 = vand.u32 %v1779, 4294901760
      %v2413 = vsub.f32 %v1779, %v2412
      %2414 = vmatpush1.msra.mxu0 %v2413
      %v2415 = vand.u32 %v1782, 4294901760
      %v2416 = vsub.f32 %v1782, %v2415
      %2417 = vmatprep.subr.mxu0 %v2416
      %v2418 = vand.u32 %v1781, 4294901760
      %v2419 = vsub.f32 %v1781, %v2418
      %2420 = vmatpush1.msra.mxu0 %v2419
      %v2421 = vand.u32 %v1784, 4294901760
      %v2422 = vsub.f32 %v1784, %v2421
      %2423 = vmatprep.subr.mxu0 %v2422
      %v2424 = vand.u32 %v1783, 4294901760
      %v2425 = vsub.f32 %v1783, %v2424
      %2426 = vmatpush1.msra.mxu0 %v2425
      %v2427 = vand.u32 %v1786, 4294901760
      %v2428 = vsub.f32 %v1786, %v2427
      %2429 = vmatprep.subr.mxu0 %v2428
      %v2430 = vand.u32 %v1785, 4294901760
      %v2431 = vsub.f32 %v1785, %v2430
      %2432 = vmatpush1.msra.mxu0 %v2431
      %v2433 = vand.u32 %v1788, 4294901760
      %v2434 = vsub.f32 %v1788, %v2433
      %2435 = vmatprep.subr.mxu0 %v2434
      %v2436 = vand.u32 %v1787, 4294901760
      %v2437 = vsub.f32 %v1787, %v2436
      %2438 = vmatpush1.msra.mxu0 %v2437
      %v2439 = vand.u32 %v1790, 4294901760
      %v2440 = vsub.f32 %v1790, %v2439
      %2441 = vmatprep.subr.mxu0 %v2440
      %v2442 = vand.u32 %v1789, 4294901760
      %v2443 = vsub.f32 %v1789, %v2442
      %2444 = vmatpush1.msra.mxu0 %v2443
      %v2445 = vand.u32 %v1792, 4294901760
      %v2446 = vsub.f32 %v1792, %v2445
      %2447 = vmatprep.subr.mxu0 %v2446
      %v2448 = vand.u32 %v1791, 4294901760
      %v2449 = vsub.f32 %v1791, %v2448
      %2450 = vmatpush1.msra.mxu0 %v2449
      %v2451 = vand.u32 %v1794, 4294901760
      %v2452 = vsub.f32 %v1794, %v2451
      %2453 = vmatprep.subr.mxu0 %v2452
      %v2454 = vand.u32 %v1793, 4294901760
      %v2455 = vsub.f32 %v1793, %v2454
      %2456 = vmatpush1.msra.mxu0 %v2455
      %v2457 = vand.u32 %v1796, 4294901760
      %v2458 = vsub.f32 %v1796, %v2457
      %2459 = vmatprep.subr.mxu0 %v2458
      %v2460 = vand.u32 %v1795, 4294901760
      %v2461 = vsub.f32 %v1795, %v2460
      %2462 = vmatpush1.msra.mxu0 %v2461
      %v2463 = vand.u32 %v1798, 4294901760
      %v2464 = vsub.f32 %v1798, %v2463
      %2465 = vmatprep.subr.mxu0 %v2464
      %v2466 = vand.u32 %v1797, 4294901760
      %v2467 = vsub.f32 %v1797, %v2466
      %2468 = vmatpush1.msra.mxu0 %v2467
      %v2469 = vand.u32 %v1800, 4294901760
      %v2470 = vsub.f32 %v1800, %v2469
      %2471 = vmatprep.subr.mxu0 %v2470
      %v2472 = vand.u32 %v1799, 4294901760
      %v2473 = vsub.f32 %v1799, %v2472
      %2474 = vmatpush1.msra.mxu0 %v2473
      %v2475 = vand.u32 %v1802, 4294901760
      %v2476 = vsub.f32 %v1802, %v2475
      %2477 = vmatprep.subr.mxu0 %v2476
      %v2478 = vand.u32 %v1801, 4294901760
      %v2479 = vsub.f32 %v1801, %v2478
      %2480 = vmatpush1.msra.mxu0 %v2479
      %v2481 = vand.u32 %v1804, 4294901760
      %v2482 = vsub.f32 %v1804, %v2481
      %2483 = vmatprep.subr.mxu0 %v2482
      %v2484 = vand.u32 %v1803, 4294901760
      %v2485 = vsub.f32 %v1803, %v2484
      %2486 = vmatpush1.msra.mxu0 %v2485
      %v2487 = vand.u32 %v1806, 4294901760
      %v2488 = vsub.f32 %v1806, %v2487
      %2489 = vmatprep.subr.mxu0 %v2488
      %v2490 = vand.u32 %v1805, 4294901760
      %v2491 = vsub.f32 %v1805, %v2490
      %2492 = vmatpush1.msra.mxu0 %v2491
      %v2493 = vand.u32 %v1808, 4294901760
      %v2494 = vsub.f32 %v1808, %v2493
      %2495 = vmatprep.subr.mxu0 %v2494
      %v2496 = vand.u32 %v1807, 4294901760
      %v2497 = vsub.f32 %v1807, %v2496
      %2498 = vmatpush1.msra.mxu0 %v2497
      %v2499 = vand.u32 %v1810, 4294901760
      %v2500 = vsub.f32 %v1810, %v2499
      %2501 = vmatprep.subr.mxu0 %v2500
      %v2502 = vand.u32 %v1809, 4294901760
      %v2503 = vsub.f32 %v1809, %v2502
      %2504 = vmatpush1.msra.mxu0 %v2503
      %v2505 = vand.u32 %v1812, 4294901760
      %v2506 = vsub.f32 %v1812, %v2505
      %2507 = vmatprep.subr.mxu0 %v2506
      %v2508 = vand.u32 %v1811, 4294901760
      %v2509 = vsub.f32 %v1811, %v2508
      %2510 = vmatpush1.msra.mxu0 %v2509
      %v2511 = vand.u32 %v1814, 4294901760
      %v2512 = vsub.f32 %v1814, %v2511
      %2513 = vmatprep.subr.mxu0 %v2512
      %v2514 = vand.u32 %v1813, 4294901760
      %v2515 = vsub.f32 %v1813, %v2514
      %2516 = vmatpush1.msra.mxu0 %v2515
      %v2517 = vand.u32 %v1816, 4294901760
      %v2518 = vsub.f32 %v1816, %v2517
      %2519 = vmatprep.subr.mxu0 %v2518
      %v2520 = vand.u32 %v1815, 4294901760
      %v2521 = vsub.f32 %v1815, %v2520
      %2522 = vmatpush1.msra.mxu0 %v2521
      %v2523 = vand.u32 %v1818, 4294901760
      %v2524 = vsub.f32 %v1818, %v2523
      %2525 = vmatprep.subr.mxu0 %v2524
      %v2526 = vand.u32 %v1817, 4294901760
      %v2527 = vsub.f32 %v1817, %v2526
      %2528 = vmatpush1.msra.mxu0 %v2527
      %v2529 = vand.u32 %v1820, 4294901760
      %v2530 = vsub.f32 %v1820, %v2529
      %2531 = vmatprep.subr.mxu0 %v2530
      %v2532 = vand.u32 %v1819, 4294901760
      %v2533 = vsub.f32 %v1819, %v2532
      %2534 = vmatpush1.msra.mxu0 %v2533
      %v2535 = vand.u32 %v1822, 4294901760
      %v2536 = vsub.f32 %v1822, %v2535
      %2537 = vmatprep.subr.mxu0 %v2536
      %v2538 = vand.u32 %v1821, 4294901760
      %v2539 = vsub.f32 %v1821, %v2538
      %2540 = vmatpush1.msra.mxu0 %v2539
      %v2541 = vand.u32 %v1824, 4294901760
      %v2542 = vsub.f32 %v1824, %v2541
      %2543 = vmatprep.subr.mxu0 %v2542
      %v2544 = vand.u32 %v1823, 4294901760
      %v2545 = vsub.f32 %v1823, %v2544
      %2546 = vmatpush1.msra.mxu0 %v2545
      %v2547 = vand.u32 %v1826, 4294901760
      %v2548 = vsub.f32 %v1826, %v2547
      %2549 = vmatprep.subr.mxu0 %v2548
      %v2550 = vand.u32 %v1825, 4294901760
      %v2551 = vsub.f32 %v1825, %v2550
      %2552 = vmatpush1.msra.mxu0 %v2551
      %v2553 = vand.u32 %v1828, 4294901760
      %v2554 = vsub.f32 %v1828, %v2553
      %2555 = vmatprep.subr.mxu0 %v2554
      %v2556 = vand.u32 %v1827, 4294901760
      %v2557 = vsub.f32 %v1827, %v2556
      %2558 = vmatpush1.msra.mxu0 %v2557
      %v2559 = vand.u32 %v1764, 4294901760
      %v2560 = vsub.f32 %v1764, %v2559
      %2561 = vmatprep.mubr.f32.mxu0 %v2560
      %v2562 = vand.u32 %v1763, 4294901760
      %v2563 = vsub.f32 %v1763, %v2562
      %2564 = vmatmul.mubr.f32.gmra.mrb[0].mxu0 %v2563
      %v2565 = vpop.f32.mrb[0].mxu0
      %v2566 = vadd.f32 %v2363, %v2565
      %v2567 = vpop.f32.mrb[0].mxu0
      %v2568 = vadd.f32 %v2365, %v2567
      %2569 = vdwg.mxu0
      %v2570 = vand.u32 %v1766, 4294901760
      %2571 = vmatprep.subr.mxu0 %v2570
      %v2572 = vand.u32 %v1765, 4294901760
      %2573 = vmatpush1.msra.mxu0 %v2572
      %v2574 = vand.u32 %v1768, 4294901760
      %2575 = vmatprep.subr.mxu0 %v2574
      %v2576 = vand.u32 %v1767, 4294901760
      %2577 = vmatpush1.msra.mxu0 %v2576
      %v2578 = vand.u32 %v1770, 4294901760
      %2579 = vmatprep.subr.mxu0 %v2578
      %v2580 = vand.u32 %v1769, 4294901760
      %2581 = vmatpush1.msra.mxu0 %v2580
      %v2582 = vand.u32 %v1772, 4294901760
      %2583 = vmatprep.subr.mxu0 %v2582
      %v2584 = vand.u32 %v1771, 4294901760
      %2585 = vmatpush1.msra.mxu0 %v2584
      %v2586 = vand.u32 %v1774, 4294901760
      %2587 = vmatprep.subr.mxu0 %v2586
      %v2588 = vand.u32 %v1773, 4294901760
      %2589 = vmatpush1.msra.mxu0 %v2588
      %v2590 = vand.u32 %v1776, 4294901760
      %2591 = vmatprep.subr.mxu0 %v2590
      %v2592 = vand.u32 %v1775, 4294901760
      %2593 = vmatpush1.msra.mxu0 %v2592
      %v2594 = vand.u32 %v1778, 4294901760
      %2595 = vmatprep.subr.mxu0 %v2594
      %v2596 = vand.u32 %v1777, 4294901760
      %2597 = vmatpush1.msra.mxu0 %v2596
      %v2598 = vand.u32 %v1780, 4294901760
      %2599 = vmatprep.subr.mxu0 %v2598
      %v2600 = vand.u32 %v1779, 4294901760
      %2601 = vmatpush1.msra.mxu0 %v2600
      %v2602 = vand.u32 %v1782, 4294901760
      %2603 = vmatprep.subr.mxu0 %v2602
      %v2604 = vand.u32 %v1781, 4294901760
      %2605 = vmatpush1.msra.mxu0 %v2604
      %v2606 = vand.u32 %v1784, 4294901760
      %2607 = vmatprep.subr.mxu0 %v2606
      %v2608 = vand.u32 %v1783, 4294901760
      %2609 = vmatpush1.msra.mxu0 %v2608
      %v2610 = vand.u32 %v1786, 4294901760
      %2611 = vmatprep.subr.mxu0 %v2610
      %v2612 = vand.u32 %v1785, 4294901760
      %2613 = vmatpush1.msra.mxu0 %v2612
      %v2614 = vand.u32 %v1788, 4294901760
      %2615 = vmatprep.subr.mxu0 %v2614
      %v2616 = vand.u32 %v1787, 4294901760
      %2617 = vmatpush1.msra.mxu0 %v2616
      %v2618 = vand.u32 %v1790, 4294901760
      %2619 = vmatprep.subr.mxu0 %v2618
      %v2620 = vand.u32 %v1789, 4294901760
      %2621 = vmatpush1.msra.mxu0 %v2620
      %v2622 = vand.u32 %v1792, 4294901760
      %2623 = vmatprep.subr.mxu0 %v2622
      %v2624 = vand.u32 %v1791, 4294901760
      %2625 = vmatpush1.msra.mxu0 %v2624
      %v2626 = vand.u32 %v1794, 4294901760
      %2627 = vmatprep.subr.mxu0 %v2626
      %v2628 = vand.u32 %v1793, 4294901760
      %2629 = vmatpush1.msra.mxu0 %v2628
      %v2630 = vand.u32 %v1796, 4294901760
      %2631 = vmatprep.subr.mxu0 %v2630
      %v2632 = vand.u32 %v1795, 4294901760
      %2633 = vmatpush1.msra.mxu0 %v2632
      %v2634 = vand.u32 %v1798, 4294901760
      %2635 = vmatprep.subr.mxu0 %v2634
      %v2636 = vand.u32 %v1797, 4294901760
      %2637 = vmatpush1.msra.mxu0 %v2636
      %v2638 = vand.u32 %v1800, 4294901760
      %2639 = vmatprep.subr.mxu0 %v2638
      %v2640 = vand.u32 %v1799, 4294901760
      %2641 = vmatpush1.msra.mxu0 %v2640
      %v2642 = vand.u32 %v1802, 4294901760
      %2643 = vmatprep.subr.mxu0 %v2642
      %v2644 = vand.u32 %v1801, 4294901760
      %2645 = vmatpush1.msra.mxu0 %v2644
      %v2646 = vand.u32 %v1804, 4294901760
      %2647 = vmatprep.subr.mxu0 %v2646
      %v2648 = vand.u32 %v1803, 4294901760
      %2649 = vmatpush1.msra.mxu0 %v2648
      %v2650 = vand.u32 %v1806, 4294901760
      %2651 = vmatprep.subr.mxu0 %v2650
      %v2652 = vand.u32 %v1805, 4294901760
      %2653 = vmatpush1.msra.mxu0 %v2652
      %v2654 = vand.u32 %v1808, 4294901760
      %2655 = vmatprep.subr.mxu0 %v2654
      %v2656 = vand.u32 %v1807, 4294901760
      %2657 = vmatpush1.msra.mxu0 %v2656
      %v2658 = vand.u32 %v1810, 4294901760
      %2659 = vmatprep.subr.mxu0 %v2658
      %v2660 = vand.u32 %v1809, 4294901760
      %2661 = vmatpush1.msra.mxu0 %v2660
      %v2662 = vand.u32 %v1812, 4294901760
      %2663 = vmatprep.subr.mxu0 %v2662
      %v2664 = vand.u32 %v1811, 4294901760
      %2665 = vmatpush1.msra.mxu0 %v2664
      %v2666 = vand.u32 %v1814, 4294901760
      %2667 = vmatprep.subr.mxu0 %v2666
      %v2668 = vand.u32 %v1813, 4294901760
      %2669 = vmatpush1.msra.mxu0 %v2668
      %v2670 = vand.u32 %v1816, 4294901760
      %2671 = vmatprep.subr.mxu0 %v2670
      %v2672 = vand.u32 %v1815, 4294901760
      %2673 = vmatpush1.msra.mxu0 %v2672
      %v2674 = vand.u32 %v1818, 4294901760
      %2675 = vmatprep.subr.mxu0 %v2674
      %v2676 = vand.u32 %v1817, 4294901760
      %2677 = vmatpush1.msra.mxu0 %v2676
      %v2678 = vand.u32 %v1820, 4294901760
      %2679 = vmatprep.subr.mxu0 %v2678
      %v2680 = vand.u32 %v1819, 4294901760
      %2681 = vmatpush1.msra.mxu0 %v2680
      %v2682 = vand.u32 %v1822, 4294901760
      %2683 = vmatprep.subr.mxu0 %v2682
      %v2684 = vand.u32 %v1821, 4294901760
      %2685 = vmatpush1.msra.mxu0 %v2684
      %v2686 = vand.u32 %v1824, 4294901760
      %2687 = vmatprep.subr.mxu0 %v2686
      %v2688 = vand.u32 %v1823, 4294901760
      %2689 = vmatpush1.msra.mxu0 %v2688
      %v2690 = vand.u32 %v1826, 4294901760
      %2691 = vmatprep.subr.mxu0 %v2690
      %v2692 = vand.u32 %v1825, 4294901760
      %2693 = vmatpush1.msra.mxu0 %v2692
      %v2694 = vand.u32 %v1828, 4294901760
      %2695 = vmatprep.subr.mxu0 %v2694
      %v2696 = vand.u32 %v1827, 4294901760
      %2697 = vmatpush1.msra.mxu0 %v2696
      %v2698 = vand.u32 %v1764, 4294901760
      %v2699 = vsub.f32 %v1764, %v2698
      %v2700 = vand.u32 %v2699, 4294901760
      %2701 = vmatprep.mubr.f32.mxu0 %v2700
      %v2702 = vand.u32 %v1763, 4294901760
      %v2703 = vsub.f32 %v1763, %v2702
      %v2704 = vand.u32 %v2703, 4294901760
      %2705 = vmatmul.mubr.f32.gmra.mrb[0].mxu0 %v2704
      %v2706 = vpop.f32.mrb[0].mxu0
      %v2707 = vadd.f32 %v2566, %v2706
      %v2708 = vpop.f32.mrb[0].mxu0
      %v2709 = vadd.f32 %v2568, %v2708
      %2710 = vdwg.mxu0
      %v2711 = vand.u32 %v1766, 4294901760
      %v2712 = vsub.f32 %v1766, %v2711
      %v2713 = vand.u32 %v2712, 4294901760
      %2714 = vmatprep.subr.mxu0 %v2713
      %v2715 = vand.u32 %v1765, 4294901760
      %v2716 = vsub.f32 %v1765, %v2715
      %v2717 = vand.u32 %v2716, 4294901760
      %2718 = vmatpush1.msra.mxu0 %v2717
      %v2719 = vand.u32 %v1768, 4294901760
      %v2720 = vsub.f32 %v1768, %v2719
      %v2721 = vand.u32 %v2720, 4294901760
      %2722 = vmatprep.subr.mxu0 %v2721
      %v2723 = vand.u32 %v1767, 4294901760
      %v2724 = vsub.f32 %v1767, %v2723
      %v2725 = vand.u32 %v2724, 4294901760
      %2726 = vmatpush1.msra.mxu0 %v2725
      %v2727 = vand.u32 %v1770, 4294901760
      %v2728 = vsub.f32 %v1770, %v2727
      %v2729 = vand.u32 %v2728, 4294901760
      %2730 = vmatprep.subr.mxu0 %v2729
      %v2731 = vand.u32 %v1769, 4294901760
      %v2732 = vsub.f32 %v1769, %v2731
      %v2733 = vand.u32 %v2732, 4294901760
      %2734 = vmatpush1.msra.mxu0 %v2733
      %v2735 = vand.u32 %v1772, 4294901760
      %v2736 = vsub.f32 %v1772, %v2735
      %v2737 = vand.u32 %v2736, 4294901760
      %2738 = vmatprep.subr.mxu0 %v2737
      %v2739 = vand.u32 %v1771, 4294901760
      %v2740 = vsub.f32 %v1771, %v2739
      %v2741 = vand.u32 %v2740, 4294901760
      %2742 = vmatpush1.msra.mxu0 %v2741
      %v2743 = vand.u32 %v1774, 4294901760
      %v2744 = vsub.f32 %v1774, %v2743
      %v2745 = vand.u32 %v2744, 4294901760
      %2746 = vmatprep.subr.mxu0 %v2745
      %v2747 = vand.u32 %v1773, 4294901760
      %v2748 = vsub.f32 %v1773, %v2747
      %v2749 = vand.u32 %v2748, 4294901760
      %2750 = vmatpush1.msra.mxu0 %v2749
      %v2751 = vand.u32 %v1776, 4294901760
      %v2752 = vsub.f32 %v1776, %v2751
      %v2753 = vand.u32 %v2752, 4294901760
      %2754 = vmatprep.subr.mxu0 %v2753
      %v2755 = vand.u32 %v1775, 4294901760
      %v2756 = vsub.f32 %v1775, %v2755
      %v2757 = vand.u32 %v2756, 4294901760
      %2758 = vmatpush1.msra.mxu0 %v2757
      %v2759 = vand.u32 %v1778, 4294901760
      %v2760 = vsub.f32 %v1778, %v2759
      %v2761 = vand.u32 %v2760, 4294901760
      %2762 = vmatprep.subr.mxu0 %v2761
      %v2763 = vand.u32 %v1777, 4294901760
      %v2764 = vsub.f32 %v1777, %v2763
      %v2765 = vand.u32 %v2764, 4294901760
      %2766 = vmatpush1.msra.mxu0 %v2765
      %v2767 = vand.u32 %v1780, 4294901760
      %v2768 = vsub.f32 %v1780, %v2767
      %v2769 = vand.u32 %v2768, 4294901760
      %2770 = vmatprep.subr.mxu0 %v2769
      %v2771 = vand.u32 %v1779, 4294901760
      %v2772 = vsub.f32 %v1779, %v2771
      %v2773 = vand.u32 %v2772, 4294901760
      %2774 = vmatpush1.msra.mxu0 %v2773
      %v2775 = vand.u32 %v1782, 4294901760
      %v2776 = vsub.f32 %v1782, %v2775
      %v2777 = vand.u32 %v2776, 4294901760
      %2778 = vmatprep.subr.mxu0 %v2777
      %v2779 = vand.u32 %v1781, 4294901760
      %v2780 = vsub.f32 %v1781, %v2779
      %v2781 = vand.u32 %v2780, 4294901760
      %2782 = vmatpush1.msra.mxu0 %v2781
      %v2783 = vand.u32 %v1784, 4294901760
      %v2784 = vsub.f32 %v1784, %v2783
      %v2785 = vand.u32 %v2784, 4294901760
      %2786 = vmatprep.subr.mxu0 %v2785
      %v2787 = vand.u32 %v1783, 4294901760
      %v2788 = vsub.f32 %v1783, %v2787
      %v2789 = vand.u32 %v2788, 4294901760
      %2790 = vmatpush1.msra.mxu0 %v2789
      %v2791 = vand.u32 %v1786, 4294901760
      %v2792 = vsub.f32 %v1786, %v2791
      %v2793 = vand.u32 %v2792, 4294901760
      %2794 = vmatprep.subr.mxu0 %v2793
      %v2795 = vand.u32 %v1785, 4294901760
      %v2796 = vsub.f32 %v1785, %v2795
      %v2797 = vand.u32 %v2796, 4294901760
      %2798 = vmatpush1.msra.mxu0 %v2797
      %v2799 = vand.u32 %v1788, 4294901760
      %v2800 = vsub.f32 %v1788, %v2799
      %v2801 = vand.u32 %v2800, 4294901760
      %2802 = vmatprep.subr.mxu0 %v2801
      %v2803 = vand.u32 %v1787, 4294901760
      %v2804 = vsub.f32 %v1787, %v2803
      %v2805 = vand.u32 %v2804, 4294901760
      %2806 = vmatpush1.msra.mxu0 %v2805
      %v2807 = vand.u32 %v1790, 4294901760
      %v2808 = vsub.f32 %v1790, %v2807
      %v2809 = vand.u32 %v2808, 4294901760
      %2810 = vmatprep.subr.mxu0 %v2809
      %v2811 = vand.u32 %v1789, 4294901760
      %v2812 = vsub.f32 %v1789, %v2811
      %v2813 = vand.u32 %v2812, 4294901760
      %2814 = vmatpush1.msra.mxu0 %v2813
      %v2815 = vand.u32 %v1792, 4294901760
      %v2816 = vsub.f32 %v1792, %v2815
      %v2817 = vand.u32 %v2816, 4294901760
      %2818 = vmatprep.subr.mxu0 %v2817
      %v2819 = vand.u32 %v1791, 4294901760
      %v2820 = vsub.f32 %v1791, %v2819
      %v2821 = vand.u32 %v2820, 4294901760
      %2822 = vmatpush1.msra.mxu0 %v2821
      %v2823 = vand.u32 %v1794, 4294901760
      %v2824 = vsub.f32 %v1794, %v2823
      %v2825 = vand.u32 %v2824, 4294901760
      %2826 = vmatprep.subr.mxu0 %v2825
      %v2827 = vand.u32 %v1793, 4294901760
      %v2828 = vsub.f32 %v1793, %v2827
      %v2829 = vand.u32 %v2828, 4294901760
      %2830 = vmatpush1.msra.mxu0 %v2829
      %v2831 = vand.u32 %v1796, 4294901760
      %v2832 = vsub.f32 %v1796, %v2831
      %v2833 = vand.u32 %v2832, 4294901760
      %2834 = vmatprep.subr.mxu0 %v2833
      %v2835 = vand.u32 %v1795, 4294901760
      %v2836 = vsub.f32 %v1795, %v2835
      %v2837 = vand.u32 %v2836, 4294901760
      %2838 = vmatpush1.msra.mxu0 %v2837
      %v2839 = vand.u32 %v1798, 4294901760
      %v2840 = vsub.f32 %v1798, %v2839
      %v2841 = vand.u32 %v2840, 4294901760
      %2842 = vmatprep.subr.mxu0 %v2841
      %v2843 = vand.u32 %v1797, 4294901760
      %v2844 = vsub.f32 %v1797, %v2843
      %v2845 = vand.u32 %v2844, 4294901760
      %2846 = vmatpush1.msra.mxu0 %v2845
      %v2847 = vand.u32 %v1800, 4294901760
      %v2848 = vsub.f32 %v1800, %v2847
      %v2849 = vand.u32 %v2848, 4294901760
      %2850 = vmatprep.subr.mxu0 %v2849
      %v2851 = vand.u32 %v1799, 4294901760
      %v2852 = vsub.f32 %v1799, %v2851
      %v2853 = vand.u32 %v2852, 4294901760
      %2854 = vmatpush1.msra.mxu0 %v2853
      %v2855 = vand.u32 %v1802, 4294901760
      %v2856 = vsub.f32 %v1802, %v2855
      %v2857 = vand.u32 %v2856, 4294901760
      %2858 = vmatprep.subr.mxu0 %v2857
      %v2859 = vand.u32 %v1801, 4294901760
      %v2860 = vsub.f32 %v1801, %v2859
      %v2861 = vand.u32 %v2860, 4294901760
      %2862 = vmatpush1.msra.mxu0 %v2861
      %v2863 = vand.u32 %v1804, 4294901760
      %v2864 = vsub.f32 %v1804, %v2863
      %v2865 = vand.u32 %v2864, 4294901760
      %2866 = vmatprep.subr.mxu0 %v2865
      %v2867 = vand.u32 %v1803, 4294901760
      %v2868 = vsub.f32 %v1803, %v2867
      %v2869 = vand.u32 %v2868, 4294901760
      %2870 = vmatpush1.msra.mxu0 %v2869
      %v2871 = vand.u32 %v1806, 4294901760
      %v2872 = vsub.f32 %v1806, %v2871
      %v2873 = vand.u32 %v2872, 4294901760
      %2874 = vmatprep.subr.mxu0 %v2873
      %v2875 = vand.u32 %v1805, 4294901760
      %v2876 = vsub.f32 %v1805, %v2875
      %v2877 = vand.u32 %v2876, 4294901760
      %2878 = vmatpush1.msra.mxu0 %v2877
      %v2879 = vand.u32 %v1808, 4294901760
      %v2880 = vsub.f32 %v1808, %v2879
      %v2881 = vand.u32 %v2880, 4294901760
      %2882 = vmatprep.subr.mxu0 %v2881
      %v2883 = vand.u32 %v1807, 4294901760
      %v2884 = vsub.f32 %v1807, %v2883
      %v2885 = vand.u32 %v2884, 4294901760
      %2886 = vmatpush1.msra.mxu0 %v2885
      %v2887 = vand.u32 %v1810, 4294901760
      %v2888 = vsub.f32 %v1810, %v2887
      %v2889 = vand.u32 %v2888, 4294901760
      %2890 = vmatprep.subr.mxu0 %v2889
      %v2891 = vand.u32 %v1809, 4294901760
      %v2892 = vsub.f32 %v1809, %v2891
      %v2893 = vand.u32 %v2892, 4294901760
      %2894 = vmatpush1.msra.mxu0 %v2893
      %v2895 = vand.u32 %v1812, 4294901760
      %v2896 = vsub.f32 %v1812, %v2895
      %v2897 = vand.u32 %v2896, 4294901760
      %2898 = vmatprep.subr.mxu0 %v2897
      %v2899 = vand.u32 %v1811, 4294901760
      %v2900 = vsub.f32 %v1811, %v2899
      %v2901 = vand.u32 %v2900, 4294901760
      %2902 = vmatpush1.msra.mxu0 %v2901
      %v2903 = vand.u32 %v1814, 4294901760
      %v2904 = vsub.f32 %v1814, %v2903
      %v2905 = vand.u32 %v2904, 4294901760
      %2906 = vmatprep.subr.mxu0 %v2905
      %v2907 = vand.u32 %v1813, 4294901760
      %v2908 = vsub.f32 %v1813, %v2907
      %v2909 = vand.u32 %v2908, 4294901760
      %2910 = vmatpush1.msra.mxu0 %v2909
      %v2911 = vand.u32 %v1816, 4294901760
      %v2912 = vsub.f32 %v1816, %v2911
      %v2913 = vand.u32 %v2912, 4294901760
      %2914 = vmatprep.subr.mxu0 %v2913
      %v2915 = vand.u32 %v1815, 4294901760
      %v2916 = vsub.f32 %v1815, %v2915
      %v2917 = vand.u32 %v2916, 4294901760
      %2918 = vmatpush1.msra.mxu0 %v2917
      %v2919 = vand.u32 %v1818, 4294901760
      %v2920 = vsub.f32 %v1818, %v2919
      %v2921 = vand.u32 %v2920, 4294901760
      %2922 = vmatprep.subr.mxu0 %v2921
      %v2923 = vand.u32 %v1817, 4294901760
      %v2924 = vsub.f32 %v1817, %v2923
      %v2925 = vand.u32 %v2924, 4294901760
      %2926 = vmatpush1.msra.mxu0 %v2925
      %v2927 = vand.u32 %v1820, 4294901760
      %v2928 = vsub.f32 %v1820, %v2927
      %v2929 = vand.u32 %v2928, 4294901760
      %2930 = vmatprep.subr.mxu0 %v2929
      %v2931 = vand.u32 %v1819, 4294901760
      %v2932 = vsub.f32 %v1819, %v2931
      %v2933 = vand.u32 %v2932, 4294901760
      %2934 = vmatpush1.msra.mxu0 %v2933
      %v2935 = vand.u32 %v1822, 4294901760
      %v2936 = vsub.f32 %v1822, %v2935
      %v2937 = vand.u32 %v2936, 4294901760
      %2938 = vmatprep.subr.mxu0 %v2937
      %v2939 = vand.u32 %v1821, 4294901760
      %v2940 = vsub.f32 %v1821, %v2939
      %v2941 = vand.u32 %v2940, 4294901760
      %2942 = vmatpush1.msra.mxu0 %v2941
      %v2943 = vand.u32 %v1824, 4294901760
      %v2944 = vsub.f32 %v1824, %v2943
      %v2945 = vand.u32 %v2944, 4294901760
      %2946 = vmatprep.subr.mxu0 %v2945
      %v2947 = vand.u32 %v1823, 4294901760
      %v2948 = vsub.f32 %v1823, %v2947
      %v2949 = vand.u32 %v2948, 4294901760
      %2950 = vmatpush1.msra.mxu0 %v2949
      %v2951 = vand.u32 %v1826, 4294901760
      %v2952 = vsub.f32 %v1826, %v2951
      %v2953 = vand.u32 %v2952, 4294901760
      %2954 = vmatprep.subr.mxu0 %v2953
      %v2955 = vand.u32 %v1825, 4294901760
      %v2956 = vsub.f32 %v1825, %v2955
      %v2957 = vand.u32 %v2956, 4294901760
      %2958 = vmatpush1.msra.mxu0 %v2957
      %v2959 = vand.u32 %v1828, 4294901760
      %v2960 = vsub.f32 %v1828, %v2959
      %v2961 = vand.u32 %v2960, 4294901760
      %2962 = vmatprep.subr.mxu0 %v2961
      %v2963 = vand.u32 %v1827, 4294901760
      %v2964 = vsub.f32 %v1827, %v2963
      %v2965 = vand.u32 %v2964, 4294901760
      %2966 = vmatpush1.msra.mxu0 %v2965
      %v2967 = vand.u32 %v1764, 4294901760
      %2968 = vmatprep.mubr.f32.mxu0 %v2967
      %v2969 = vand.u32 %v1763, 4294901760
      %2970 = vmatmul.mubr.f32.gmra.mrb[0].mxu0 %v2969
      %v2971 = vpop.f32.mrb[0].mxu0
      %v2972 = vadd.f32 %v2707, %v2971
      %v2973 = vpop.f32.mrb[0].mxu0
      %v2974 = vadd.f32 %v2709, %v2973
      %2975 = vdwg.mxu0
      %v2976 = vand.u32 %v1766, 4294901760
      %2977 = vmatprep.subr.mxu0 %v2976
      %v2978 = vand.u32 %v1765, 4294901760
      %2979 = vmatpush1.msra.mxu0 %v2978
      %v2980 = vand.u32 %v1768, 4294901760
      %2981 = vmatprep.subr.mxu0 %v2980
      %v2982 = vand.u32 %v1767, 4294901760
      %2983 = vmatpush1.msra.mxu0 %v2982
      %v2984 = vand.u32 %v1770, 4294901760
      %2985 = vmatprep.subr.mxu0 %v2984
      %v2986 = vand.u32 %v1769, 4294901760
      %2987 = vmatpush1.msra.mxu0 %v2986
      %v2988 = vand.u32 %v1772, 4294901760
      %2989 = vmatprep.subr.mxu0 %v2988
      %v2990 = vand.u32 %v1771, 4294901760
      %2991 = vmatpush1.msra.mxu0 %v2990
      %v2992 = vand.u32 %v1774, 4294901760
      %2993 = vmatprep.subr.mxu0 %v2992
      %v2994 = vand.u32 %v1773, 4294901760
      %2995 = vmatpush1.msra.mxu0 %v2994
      %v2996 = vand.u32 %v1776, 4294901760
      %2997 = vmatprep.subr.mxu0 %v2996
      %v2998 = vand.u32 %v1775, 4294901760
      %2999 = vmatpush1.msra.mxu0 %v2998
      %v3000 = vand.u32 %v1778, 4294901760
      %3001 = vmatprep.subr.mxu0 %v3000
      %v3002 = vand.u32 %v1777, 4294901760
      %3003 = vmatpush1.msra.mxu0 %v3002
      %v3004 = vand.u32 %v1780, 4294901760
      %3005 = vmatprep.subr.mxu0 %v3004
      %v3006 = vand.u32 %v1779, 4294901760
      %3007 = vmatpush1.msra.mxu0 %v3006
      %v3008 = vand.u32 %v1782, 4294901760
      %3009 = vmatprep.subr.mxu0 %v3008
      %v3010 = vand.u32 %v1781, 4294901760
      %3011 = vmatpush1.msra.mxu0 %v3010
      %v3012 = vand.u32 %v1784, 4294901760
      %3013 = vmatprep.subr.mxu0 %v3012
      %v3014 = vand.u32 %v1783, 4294901760
      %3015 = vmatpush1.msra.mxu0 %v3014
      %v3016 = vand.u32 %v1786, 4294901760
      %3017 = vmatprep.subr.mxu0 %v3016
      %v3018 = vand.u32 %v1785, 4294901760
      %3019 = vmatpush1.msra.mxu0 %v3018
      %v3020 = vand.u32 %v1788, 4294901760
      %3021 = vmatprep.subr.mxu0 %v3020
      %v3022 = vand.u32 %v1787, 4294901760
      %3023 = vmatpush1.msra.mxu0 %v3022
      %v3024 = vand.u32 %v1790, 4294901760
      %3025 = vmatprep.subr.mxu0 %v3024
      %v3026 = vand.u32 %v1789, 4294901760
      %3027 = vmatpush1.msra.mxu0 %v3026
      %v3028 = vand.u32 %v1792, 4294901760
      %3029 = vmatprep.subr.mxu0 %v3028
      %v3030 = vand.u32 %v1791, 4294901760
      %3031 = vmatpush1.msra.mxu0 %v3030
      %v3032 = vand.u32 %v1794, 4294901760
      %3033 = vmatprep.subr.mxu0 %v3032
      %v3034 = vand.u32 %v1793, 4294901760
      %3035 = vmatpush1.msra.mxu0 %v3034
      %v3036 = vand.u32 %v1796, 4294901760
      %3037 = vmatprep.subr.mxu0 %v3036
      %v3038 = vand.u32 %v1795, 4294901760
      %3039 = vmatpush1.msra.mxu0 %v3038
      %v3040 = vand.u32 %v1798, 4294901760
      %3041 = vmatprep.subr.mxu0 %v3040
      %v3042 = vand.u32 %v1797, 4294901760
      %3043 = vmatpush1.msra.mxu0 %v3042
      %v3044 = vand.u32 %v1800, 4294901760
      %3045 = vmatprep.subr.mxu0 %v3044
      %v3046 = vand.u32 %v1799, 4294901760
      %3047 = vmatpush1.msra.mxu0 %v3046
      %v3048 = vand.u32 %v1802, 4294901760
      %3049 = vmatprep.subr.mxu0 %v3048
      %v3050 = vand.u32 %v1801, 4294901760
      %3051 = vmatpush1.msra.mxu0 %v3050
      %v3052 = vand.u32 %v1804, 4294901760
      %3053 = vmatprep.subr.mxu0 %v3052
      %v3054 = vand.u32 %v1803, 4294901760
      %3055 = vmatpush1.msra.mxu0 %v3054
      %v3056 = vand.u32 %v1806, 4294901760
      %3057 = vmatprep.subr.mxu0 %v3056
      %v3058 = vand.u32 %v1805, 4294901760
      %3059 = vmatpush1.msra.mxu0 %v3058
      %v3060 = vand.u32 %v1808, 4294901760
      %3061 = vmatprep.subr.mxu0 %v3060
      %v3062 = vand.u32 %v1807, 4294901760
      %3063 = vmatpush1.msra.mxu0 %v3062
      %v3064 = vand.u32 %v1810, 4294901760
      %3065 = vmatprep.subr.mxu0 %v3064
      %v3066 = vand.u32 %v1809, 4294901760
      %3067 = vmatpush1.msra.mxu0 %v3066
      %v3068 = vand.u32 %v1812, 4294901760
      %3069 = vmatprep.subr.mxu0 %v3068
      %v3070 = vand.u32 %v1811, 4294901760
      %3071 = vmatpush1.msra.mxu0 %v3070
      %v3072 = vand.u32 %v1814, 4294901760
      %3073 = vmatprep.subr.mxu0 %v3072
      %v3074 = vand.u32 %v1813, 4294901760
      %3075 = vmatpush1.msra.mxu0 %v3074
      %v3076 = vand.u32 %v1816, 4294901760
      %3077 = vmatprep.subr.mxu0 %v3076
      %v3078 = vand.u32 %v1815, 4294901760
      %3079 = vmatpush1.msra.mxu0 %v3078
      %v3080 = vand.u32 %v1818, 4294901760
      %3081 = vmatprep.subr.mxu0 %v3080
      %v3082 = vand.u32 %v1817, 4294901760
      %3083 = vmatpush1.msra.mxu0 %v3082
      %v3084 = vand.u32 %v1820, 4294901760
      %3085 = vmatprep.subr.mxu0 %v3084
      %v3086 = vand.u32 %v1819, 4294901760
      %3087 = vmatpush1.msra.mxu0 %v3086
      %v3088 = vand.u32 %v1822, 4294901760
      %3089 = vmatprep.subr.mxu0 %v3088
      %v3090 = vand.u32 %v1821, 4294901760
      %3091 = vmatpush1.msra.mxu0 %v3090
      %v3092 = vand.u32 %v1824, 4294901760
      %3093 = vmatprep.subr.mxu0 %v3092
      %v3094 = vand.u32 %v1823, 4294901760
      %3095 = vmatpush1.msra.mxu0 %v3094
      %v3096 = vand.u32 %v1826, 4294901760
      %3097 = vmatprep.subr.mxu0 %v3096
      %v3098 = vand.u32 %v1825, 4294901760
      %3099 = vmatpush1.msra.mxu0 %v3098
      %v3100 = vand.u32 %v1828, 4294901760
      %3101 = vmatprep.subr.mxu0 %v3100
      %v3102 = vand.u32 %v1827, 4294901760
      %3103 = vmatpush1.msra.mxu0 %v3102
      %v3104 = vand.u32 %v1764, 4294901760
      %3105 = vmatprep.mubr.f32.mxu0 %v3104
      %v3106 = vand.u32 %v1763, 4294901760
      %3107 = vmatmul.mubr.f32.gmra.mrb[0].mxu0 %v3106
      %v3108 = vpop.f32.mrb[0].mxu0
      %v3109 = vadd.f32 %v2972, %v3108
      %v3110 = vpop.f32.mrb[0].mxu0
      %v3111 = vadd.f32 %v2974, %v3110
      %3112 = vdwg.mxu0
      %v3113 = vadd.f32 %v1761, %v3109
      %v3114 = vadd.f32 %v1762, %v3111
      %3115 = vst [vmem:[#allocation9] sm:$0xff] %v3113
      %3116 = vst [vmem:[#allocation9 + $0x8] sm:$0xff] %v3114
    $region25: #{tpu_custom_call.1} parent=1 // pred_fallthru
      _
    %p3117 = scmp.ge.s32.totalorder 0, %s58
    %p3118 = pnand %p3117, %p399
    %p3119 = pneg %p3118
    // Predicated region
    $region26: #{tpu_custom_call.1} parent=1 // pred_check
      _
    $region27: #{tpu_custom_call.1} parent=1 // pred_check_branch
      %3121 = sbr.rel (%p3118) target = $region29
    $region28: #{tpu_custom_call.1} parent=1 // pred_region
      %3122 = vst [vmem:[#allocation9] sm:$0xff] 0.0
      %3123 = vst [vmem:[#allocation9 + $0x8] sm:$0xff] 0.0
    $region29: #{tpu_custom_call.1} parent=1 // pred_fallthru
      _
    // Predicated region
    $region30: #{tpu_custom_call.1} parent=1 // pred_check
      _
    $region31: #{tpu_custom_call.1} parent=1 // pred_check_branch
      %3125 = sbr.rel (0) target = $region33
    $region32: #{tpu_custom_call.1} parent=1 // pred_region
      %s3127 = ssub.s32 256, 256
      %3128 = vsyncadd [#allocation8], %s3127
      %s3130 = sshll.u32 [#allocation9], 4
      %s3131 = int_to_ptr.vmem [resolvable:$true] %s3130
      %3133 = dma.vmem_to_hbm [thread:$0]  %s3131, 256, %s4, [#allocation8]
    $region33: #{tpu_custom_call.1} parent=1 // pred_fallthru
      _
    // Predicated region
    $region34: #{tpu_custom_call.1} parent=1 // pred_check
      _
    $region35: #{tpu_custom_call.1} parent=1 // pred_check_branch
      %3135 = sbr.rel (0) target = $region37
    $region36: #{tpu_custom_call.1} parent=1 // pred_region
      %3136 = dma.done [#allocation8], 256
    $region37: #{tpu_custom_call.1} parent=1 // pred_fallthru
      _
    %3137 = vsyncpa [#allocation7], 1
    %3138 = vsyncpa [#allocation8], 1

</llo_original>
